<compile_context>
chip_gen: v5e
topology: v5e:2x2
jax: 0.10.0
libtpu: 0.0.40
codegen_flags: <defaults>
</compile_context>

<pallas_src>
import functools

import numpy as np
import jax
import jax.numpy as jnp
from jax.experimental import pallas as pl
from jax.experimental.pallas import tpu as pltpu

LEAKY_SLOPE = 0.2


def _leaky(x):
    return jnp.where(x > 0, x, LEAKY_SLOPE * x)


# --------------------------------------------------------------------------- #
# Pallas kernel
# --------------------------------------------------------------------------- #
def _fnet_block_kernel(typ, H, W, Cin, Cmid, Cout,
                       x_ref, w1_ref, b1_ref, w2_ref, b2_ref, o_ref):
    Bb = x_ref.shape[0]
    M = Bb * H * W
    cdt = x_ref.dtype          # MXU-input dtype (f32 or bf16); accumulation is f32

    def pad_hw(t, c):
        """(Bb, H, W, c) -> (Bb, H+2, W+2, c) with a 1-px zero halo (SAME padding)."""
        zr = jnp.zeros((Bb, 1, W, c), t.dtype)
        t = jnp.concatenate([zr, t, zr], axis=1)
        zc = jnp.zeros((Bb, H + 2, 1, c), t.dtype)
        return jnp.concatenate([zc, t, zc], axis=2)

    def conv3x3(xp, w_ref, b_ref, cin):
        """3x3 conv as 3 accumulated matmuls (one per ky), each K = 3*cin.

        Only one (M, 3*cin) patch tensor is live at a time (1/3 of a full 9*cin
        im2col); f32 MXU accumulation; bias + leaky-ReLU epilogue stays f32.
        """
        acc = None
        for dy in range(3):                                   # static, unrolled
            rows = xp[:, dy:dy + H]                           # (Bb, H, W+2, cin)
            patch = jnp.concatenate(
                [rows[:, :, dx:dx + W, :] for dx in range(3)],
                axis=-1)                                      # (Bb, H, W, 3*cin)
            part = jnp.dot(patch.reshape(M, 3 * cin), w_ref[dy],
                           preferred_element_type=jnp.float32)
            acc = part if acc is None else acc + part
        return _leaky(acc + b_ref[...])                       # (M, cout) f32

    # ---- ConvLeaky: conv3x3 -> leaky -> conv3x3 -> leaky ----------------------
    x4 = x_ref[...].reshape(Bb, H, W, Cin)
    h1 = conv3x3(pad_hw(x4, Cin), w1_ref, b1_ref, Cin)                  # (M, Cmid) f32
    h1c = h1.reshape(Bb, H, W, Cmid).astype(cdt)
    h2 = conv3x3(pad_hw(h1c, Cmid), w2_ref, b2_ref, Cmid)               # (M, Cout) f32
    t = h2.reshape(Bb, H, W, Cout)                                      # f32

    # ---- final stage ----------------------------------------------------------
    if typ == "maxpool":
        # max_pool2d(kernel_size=2): pure VPU/XLU reduction.
        p = t.reshape(Bb, H // 2, 2, W // 2, 2, Cout).max(axis=4).max(axis=2)
        o_ref[...] = p.reshape(Bb, H // 2, (W // 2) * Cout).astype(o_ref.dtype)
    else:
        # Bilinear x2 (align_corners=False) as separable VPU blends:
        #   even out = 0.75*x + 0.25*x_prev ; odd out = 0.75*x + 0.25*x_next
        # with edge clamp.  No MXU, no kron matrices, all f32.
        def upsample2x(v, axis):
            n = v.shape[axis]
            head = jax.lax.slice_in_dim(v, 0, 1, axis=axis)
            tail = jax.lax.slice_in_dim(v, n - 1, n, axis=axis)
            prev = jnp.concatenate(
                [head, jax.lax.slice_in_dim(v, 0, n - 1, axis=axis)], axis=axis)
            nxt = jnp.concatenate(
                [jax.lax.slice_in_dim(v, 1, n, axis=axis), tail], axis=axis)
            even = 0.75 * v + 0.25 * prev
            odd = 0.75 * v + 0.25 * nxt
            inter = jnp.concatenate(
                [jnp.expand_dims(even, axis + 1), jnp.expand_dims(odd, axis + 1)],
                axis=axis + 1)
            new_shape = list(v.shape)
            new_shape[axis] = 2 * n
            return inter.reshape(new_shape)

        up = upsample2x(upsample2x(t, 1), 2)                  # (Bb, 2H, 2W, Cout) f32
        o_ref[...] = up.reshape(Bb, 2 * H, 2 * W * Cout).astype(o_ref.dtype)


# --------------------------------------------------------------------------- #
# VMEM-aware tiling helpers
# --------------------------------------------------------------------------- #
def _vmem_capacity_bytes():
    try:
        info = pltpu.get_tpu_info()
        for name in ("vmem_capacity_bytes", "vmem_bytes", "vmem_size_bytes"):
            v = getattr(info, name, None)
            if v:
                return int(v)
    except Exception:
        pass
    return 64 * 1024 * 1024            # conservative (v7x-sized) fallback


def _estimate_step_vmem(Bb, H, W, Cin, Cmid, Cout, typ, cbytes, obytes):
    """Rough per-grid-step VMEM footprint (bytes), deliberately conservative."""
    Hp, Wp = H + 2, W + 2
    M = Bb * H * W
    Ho, Wo = (H // 2, W // 2) if typ == "maxpool" else (2 * H, 2 * W)
    b = 0
    b += 2 * Bb * H * W * Cin * cbytes          # double-buffered input block
    b += 2 * Bb * Ho * Wo * Cout * obytes       # double-buffered output block
    b += Bb * Hp * Wp * Cin * cbytes            # padded x value
    b += Bb * Hp * Wp * Cmid * cbytes           # padded h1 value
    b += M * 3 * max(Cin, Cmid) * cbytes        # peak im2col patch (one ky live)
    b += M * Cmid * (4 + cbytes)                # h1 f32 + cast copy
    b += M * Cout * 4                           # h2 f32
    if typ == "bilinear":
        b += 5 * Bb * (2 * H) * W * Cout * 4    # H-axis blend temporaries (f32)
        b += 3 * Bb * Ho * Wo * Cout * 4        # W-axis blend temporaries (f32)
    return int(b * 1.25) + (2 << 20)            # relayout / pipelining slack


def _pick_batch_block(B, H, W, Cin, Cmid, Cout, typ, cbytes, obytes, vmem_cap):
    budget = int(0.45 * vmem_cap)               # ~50% of per-generation VMEM
    divisors = [d for d in range(1, B + 1) if B % d == 0]

    def fits(d):
        return _estimate_step_vmem(d, H, W, Cin, Cmid, Cout, typ,
                                   cbytes, obytes) <= budget

    # Prefer >= 2 grid steps: v7x megacore sharding + DMA/compute pipelining.
    good = [d for d in divisors if fits(d) and (B // d) >= 2]
    if good:
        return max(good)
    ok = [d for d in divisors if fits(d)]
    if ok:
        return max(ok)
    # TODO(synk): row-tile H (1-row halo) when even Bb=1 exceeds the VMEM budget.
    return 1


# --------------------------------------------------------------------------- #
# Wrappers
# --------------------------------------------------------------------------- #
def fnet_block_nhwc(x_nhwc, params, typ, *, compute_dtype=jnp.bfloat16,
                    out_dtype=None, batch_block=None):
    """FNetBlock forward on NHWC input; returns NHWC output."""
    w1, b1, w2, b2 = params                     # w: HWIO (3,3,Ci,Co); b: (Co,)/(1,Co)
    B, H, W, Cin = x_nhwc.shape
    Cmid = w1.shape[-1]
    Cout = w2.shape[-1]
    assert w1.shape[:3] == (3, 3, Cin) and w2.shape[:3] == (3, 3, Cmid)

    if typ == "maxpool":
        assert H % 2 == 0 and W % 2 == 0
        Ho, Wo = H // 2, W // 2
    elif typ == "bilinear":
        Ho, Wo = 2 * H, 2 * W
    else:
        raise Exception("Type does not match any of maxpool or bilinear")

    out_dtype = compute_dtype if out_dtype is None else out_dtype
    cbytes = jnp.dtype(compute_dtype).itemsize
    obytes = jnp.dtype(out_dtype).itemsize

    vmem_cap = _vmem_capacity_bytes()
    if batch_block is None:
        batch_block = _pick_batch_block(B, H, W, Cin, Cmid, Cout, typ,
                                        cbytes, obytes, vmem_cap)
    Bb = batch_block
    assert B % Bb == 0

    # Lane-dense input slab (free reshape of contiguous NHWC) + per-ky packed weights.
    x = x_nhwc.reshape(B, H, W * Cin).astype(compute_dtype)
    w1m = jnp.asarray(w1, compute_dtype).reshape(3, 3 * Cin, Cmid)
    w2m = jnp.asarray(w2, compute_dtype).reshape(3, 3 * Cmid, Cout)
    b1f = jnp.asarray(b1, jnp.float32).reshape(1, Cmid)
    b2f = jnp.asarray(b2, jnp.float32).reshape(1, Cout)

    est = _estimate_step_vmem(Bb, H, W, Cin, Cmid, Cout, typ, cbytes, obytes)
    vmem_limit = int(min(max(est + (8 << 20), 32 << 20), 0.8 * vmem_cap))
    vmem_limit = max(vmem_limit, 16 << 20)

    kernel = functools.partial(_fnet_block_kernel, typ, H, W, Cin, Cmid, Cout)

    out_flat = pl.pallas_call(
        kernel,
        out_shape=jax.ShapeDtypeStruct((B, Ho, Wo * Cout), out_dtype),
        grid_spec=pltpu.PrefetchScalarGridSpec(
            num_scalar_prefetch=0,
            grid=(B // Bb,),
            in_specs=[
                pl.BlockSpec((Bb, H, W * Cin), lambda i: (i, 0, 0)),
                pl.BlockSpec((3, 3 * Cin, Cmid), lambda i: (0, 0, 0)),
                pl.BlockSpec((1, Cmid), lambda i: (0, 0)),
                pl.BlockSpec((3, 3 * Cmid, Cout), lambda i: (0, 0, 0)),
                pl.BlockSpec((1, Cout), lambda i: (0, 0)),
            ],
            # Lane-dense output slab (last dim Wo*Cout).
            out_specs=pl.BlockSpec((Bb, Ho, Wo * Cout), lambda i: (i, 0, 0)),
        ),
        compiler_params=pltpu.CompilerParams(
            dimension_semantics=("parallel",),
            vmem_limit_bytes=vmem_limit,
        ),
    )(x, w1m, b1f, w2m, b2f)

    return out_flat.reshape(B, Ho, Wo, Cout)


def fnet_block_forward(x_nchw, params, typ, *, compute_dtype=jnp.bfloat16,
                       out_dtype=None, batch_block=None):
    """NCHW drop-in wrapper (parity with the PyTorch module's interface).

    TODO(synk): keep the surrounding model in NHWC / (B, H, W*C) end-to-end and call
    fnet_block_nhwc directly -- these transposes are HBM round trips that exist only
    for the NCHW interface.
    """
    x = jnp.transpose(x_nchw, (0, 2, 3, 1))
    out = fnet_block_nhwc(x, params, typ, compute_dtype=compute_dtype,
                          out_dtype=out_dtype, batch_block=batch_block)
    return jnp.transpose(out, (0, 3, 1, 2))


# --------------------------------------------------------------------------- #
# Pure-JAX / numpy reference (for verification)
# --------------------------------------------------------------------------- #
def _reference(x_nchw, params, typ):
    w1, b1, w2, b2 = params
    x = jnp.transpose(x_nchw, (0, 2, 3, 1)).astype(jnp.float32)

    def conv(v, w, b):
        y = jax.lax.conv_general_dilated(
            v, jnp.asarray(w, jnp.float32), window_strides=(1, 1), padding="SAME",
            dimension_numbers=("NHWC", "HWIO", "NHWC"))
        return y + jnp.asarray(b, jnp.float32).reshape(1, 1, 1, -1)

    h = _leaky(conv(x, w1, b1))
    h = _leaky(conv(h, w2, b2))

    if typ == "maxpool":
        B, H, W, C = h.shape
        out = h.reshape(B, H // 2, 2, W // 2, 2, C).max(axis=(2, 4))
    else:
        hn = np.asarray(h)
        B, H, W, C = hn.shape
        out_np = np.zeros((B, 2 * H, 2 * W, C), np.float32)
        for i in range(2 * H):
            si = max((i + 0.5) / 2.0 - 0.5, 0.0)
            i0 = int(np.floor(si)); fi = si - i0; i1 = min(i0 + 1, H - 1)
            for j in range(2 * W):
                sj = max((j + 0.5) / 2.0 - 0.5, 0.0)
                j0 = int(np.floor(sj)); fj = sj - j0; j1 = min(j0 + 1, W - 1)
                out_np[:, i, j, :] = (
                    (1 - fi) * (1 - fj) * hn[:, i0, j0, :]
                    + (1 - fi) * fj * hn[:, i0, j1, :]
                    + fi * (1 - fj) * hn[:, i1, j0, :]
                    + fi * fj * hn[:, i1, j1, :])
        out = jnp.asarray(out_np)
    return jnp.transpose(out, (0, 3, 1, 2))


# --------------------------------------------------------------------------- #
if __name__ == "__main__":
    key = jax.random.PRNGKey(0)
    B, Cin, Cout, H, W = 2, 4, 8, 16, 16
    ks = jax.random.split(key, 5)

    x = jax.random.normal(ks[0], (B, Cin, H, W), jnp.float32)
    # Deterministic synthetic parameters (conv weights stored as HWIO).
    w1 = jax.random.normal(ks[1], (3, 3, Cin, Cout), jnp.float32) * 0.1
    b1 = jax.random.normal(ks[2], (1, Cout), jnp.float32) * 0.1
    w2 = jax.random.normal(ks[3], (3, 3, Cout, Cout), jnp.float32) * 0.1
    b2 = jax.random.normal(ks[4], (1, Cout), jnp.float32) * 0.1
    params = (w1, b1, w2, b2)

    for typ in ("maxpool", "bilinear"):
        ref = np.asarray(jax.block_until_ready(_reference(x, params, typ)))
        # f32: exact-algorithm check.  bf16: MXU-input cast + bf16 output slab,
        # compared with a correspondingly looser tolerance.
        for cdt, tol in ((jnp.float32, 1e-4), (jnp.bfloat16, 5e-2)):
            out = jax.block_until_ready(
                fnet_block_forward(x, params, typ, compute_dtype=cdt))
            assert out.shape == ref.shape, (typ, cdt, out.shape, ref.shape)
            out_f32 = np.asarray(out.astype(jnp.float32))
            assert np.allclose(out_f32, ref, rtol=tol, atol=tol), \
                f"mismatch typ={typ} dtype={cdt}"

    print("KERNEL_OK")
</pallas_src>

<mosaic_0001>
module attributes {stable_mosaic.version = 11 : i64} {
  func.func @_fnet_block_kernel(%arg0: i32, %arg1: memref<1x16x64xf32, #tpu.memory_space<vmem>>, %arg2: memref<3x12x8xf32, #tpu.memory_space<vmem>>, %arg3: memref<1x8xf32, #tpu.memory_space<vmem>>, %arg4: memref<3x24x8xf32, #tpu.memory_space<vmem>>, %arg5: memref<1x8xf32, #tpu.memory_space<vmem>>, %arg6: memref<1x8x64xf32, #tpu.memory_space<vmem>>) attributes {dimension_semantics = [#tpu.dimension_semantics<parallel>], iteration_bounds = array<i64: 2>, scalar_prefetch = 0 : i64, scratch_operands = 0 : i64, tpu.core_type = #tpu.core_type<tc>, window_params = [{transform_indices = @transform_0, window_bounds = array<i64: 1, 16, 64>}, {pipeline_mode = #tpu.pipeline_mode<synchronous>, transform_indices = @transform_1, window_bounds = array<i64: 3, 12, 8>}, {pipeline_mode = #tpu.pipeline_mode<synchronous>, transform_indices = @transform_2, window_bounds = array<i64: 1, 8>}, {pipeline_mode = #tpu.pipeline_mode<synchronous>, transform_indices = @transform_3, window_bounds = array<i64: 3, 24, 8>}, {pipeline_mode = #tpu.pipeline_mode<synchronous>, transform_indices = @transform_4, window_bounds = array<i64: 1, 8>}, {transform_indices = @transform_5, window_bounds = array<i64: 1, 8, 64>}]} {
    %c0 = arith.constant 0 : index
    %c0_0 = arith.constant 0 : index
    %c0_1 = arith.constant 0 : index
    %0 = vector.load %arg1[%c0, %c0_0, %c0_1] : memref<1x16x64xf32, #tpu.memory_space<vmem>>, vector<1x16x64xf32>
    %1 = vector.shape_cast %0 : vector<1x16x64xf32> to vector<1x16x16x4xf32>
    %cst = arith.constant 0.000000e+00 : f32
    %2 = vector.broadcast %cst : f32 to vector<1x1x16x4xf32>
    %3 = tpu.concatenate %2, %1, %2 in 1 : vector<1x1x16x4xf32>, vector<1x16x16x4xf32>, vector<1x1x16x4xf32> -> vector<1x18x16x4xf32>
    %cst_2 = arith.constant 0.000000e+00 : f32
    %4 = vector.broadcast %cst_2 : f32 to vector<1x18x1x4xf32>
    %5 = tpu.concatenate %4, %3, %4 in 2 : vector<1x18x1x4xf32>, vector<1x18x16x4xf32>, vector<1x18x1x4xf32> -> vector<1x18x18x4xf32>
    %6 = vector.extract_strided_slice %5 {offsets = [0, 0, 0, 0], sizes = [1, 16, 18, 4], strides = [1, 1, 1, 1]} : vector<1x18x18x4xf32> to vector<1x16x18x4xf32>
    %7 = vector.extract_strided_slice %6 {offsets = [0, 0, 0, 0], sizes = [1, 16, 16, 4], strides = [1, 1, 1, 1]} : vector<1x16x18x4xf32> to vector<1x16x16x4xf32>
    %8 = vector.extract_strided_slice %6 {offsets = [0, 0, 1, 0], sizes = [1, 16, 16, 4], strides = [1, 1, 1, 1]} : vector<1x16x18x4xf32> to vector<1x16x16x4xf32>
    %9 = vector.extract_strided_slice %6 {offsets = [0, 0, 2, 0], sizes = [1, 16, 16, 4], strides = [1, 1, 1, 1]} : vector<1x16x18x4xf32> to vector<1x16x16x4xf32>
    %10 = tpu.concatenate %7, %8, %9 in 3 : vector<1x16x16x4xf32>, vector<1x16x16x4xf32>, vector<1x16x16x4xf32> -> vector<1x16x16x12xf32>
    %11 = vector.shape_cast %10 : vector<1x16x16x12xf32> to vector<256x12xf32>
    %c0_3 = arith.constant 0 : index
    %c0_4 = arith.constant 0 : index
    %c0_5 = arith.constant 0 : index
    %12 = vector.load %arg2[%c0_3, %c0_4, %c0_5] : memref<3x12x8xf32, #tpu.memory_space<vmem>>, vector<1x12x8xf32>
    %13 = vector.shape_cast %12 : vector<1x12x8xf32> to vector<12x8xf32>
    %cst_6 = arith.constant dense<0.000000e+00> : vector<256x8xf32>
    %14 = tpu.matmul %11, %13, %cst_6 {dimension_numbers = #tpu.dot_dimension_numbers<[1], [0], [0], [1], [0, 0, 1, 1], [], []>} : vector<256x12xf32>, vector<12x8xf32>, vector<256x8xf32> -> vector<256x8xf32>
    %15 = vector.extract_strided_slice %5 {offsets = [0, 1, 0, 0], sizes = [1, 16, 18, 4], strides = [1, 1, 1, 1]} : vector<1x18x18x4xf32> to vector<1x16x18x4xf32>
    %16 = vector.extract_strided_slice %15 {offsets = [0, 0, 0, 0], sizes = [1, 16, 16, 4], strides = [1, 1, 1, 1]} : vector<1x16x18x4xf32> to vector<1x16x16x4xf32>
    %17 = vector.extract_strided_slice %15 {offsets = [0, 0, 1, 0], sizes = [1, 16, 16, 4], strides = [1, 1, 1, 1]} : vector<1x16x18x4xf32> to vector<1x16x16x4xf32>
    %18 = vector.extract_strided_slice %15 {offsets = [0, 0, 2, 0], sizes = [1, 16, 16, 4], strides = [1, 1, 1, 1]} : vector<1x16x18x4xf32> to vector<1x16x16x4xf32>
    %19 = tpu.concatenate %16, %17, %18 in 3 : vector<1x16x16x4xf32>, vector<1x16x16x4xf32>, vector<1x16x16x4xf32> -> vector<1x16x16x12xf32>
    %20 = vector.shape_cast %19 : vector<1x16x16x12xf32> to vector<256x12xf32>
    %c1 = arith.constant 1 : index
    %c0_7 = arith.constant 0 : index
    %c0_8 = arith.constant 0 : index
    %21 = vector.load %arg2[%c1, %c0_7, %c0_8] : memref<3x12x8xf32, #tpu.memory_space<vmem>>, vector<1x12x8xf32>
    %22 = vector.shape_cast %21 : vector<1x12x8xf32> to vector<12x8xf32>
    %cst_9 = arith.constant dense<0.000000e+00> : vector<256x8xf32>
    %23 = tpu.matmul %20, %22, %cst_9 {dimension_numbers = #tpu.dot_dimension_numbers<[1], [0], [0], [1], [0, 0, 1, 1], [], []>} : vector<256x12xf32>, vector<12x8xf32>, vector<256x8xf32> -> vector<256x8xf32>
    %24 = arith.addf %14, %23 : vector<256x8xf32>
    %25 = vector.extract_strided_slice %5 {offsets = [0, 2, 0, 0], sizes = [1, 16, 18, 4], strides = [1, 1, 1, 1]} : vector<1x18x18x4xf32> to vector<1x16x18x4xf32>
    %26 = vector.extract_strided_slice %25 {offsets = [0, 0, 0, 0], sizes = [1, 16, 16, 4], strides = [1, 1, 1, 1]} : vector<1x16x18x4xf32> to vector<1x16x16x4xf32>
    %27 = vector.extract_strided_slice %25 {offsets = [0, 0, 1, 0], sizes = [1, 16, 16, 4], strides = [1, 1, 1, 1]} : vector<1x16x18x4xf32> to vector<1x16x16x4xf32>
    %28 = vector.extract_strided_slice %25 {offsets = [0, 0, 2, 0], sizes = [1, 16, 16, 4], strides = [1, 1, 1, 1]} : vector<1x16x18x4xf32> to vector<1x16x16x4xf32>
    %29 = tpu.concatenate %26, %27, %28 in 3 : vector<1x16x16x4xf32>, vector<1x16x16x4xf32>, vector<1x16x16x4xf32> -> vector<1x16x16x12xf32>
    %30 = vector.shape_cast %29 : vector<1x16x16x12xf32> to vector<256x12xf32>
    %c2 = arith.constant 2 : index
    %c0_10 = arith.constant 0 : index
    %c0_11 = arith.constant 0 : index
    %31 = vector.load %arg2[%c2, %c0_10, %c0_11] : memref<3x12x8xf32, #tpu.memory_space<vmem>>, vector<1x12x8xf32>
    %32 = vector.shape_cast %31 : vector<1x12x8xf32> to vector<12x8xf32>
    %cst_12 = arith.constant dense<0.000000e+00> : vector<256x8xf32>
    %33 = tpu.matmul %30, %32, %cst_12 {dimension_numbers = #tpu.dot_dimension_numbers<[1], [0], [0], [1], [0, 0, 1, 1], [], []>} : vector<256x12xf32>, vector<12x8xf32>, vector<256x8xf32> -> vector<256x8xf32>
    %34 = arith.addf %24, %33 : vector<256x8xf32>
    %c0_13 = arith.constant 0 : index
    %c0_14 = arith.constant 0 : index
    %35 = vector.load %arg3[%c0_13, %c0_14] : memref<1x8xf32, #tpu.memory_space<vmem>>, vector<1x8xf32>
    %36 = vector.broadcast %35 : vector<1x8xf32> to vector<256x8xf32>
    %37 = arith.addf %34, %36 : vector<256x8xf32>
    %cst_15 = arith.constant 0.000000e+00 : f32
    %38 = vector.broadcast %cst_15 : f32 to vector<256x8xf32>
    %39 = arith.cmpf ogt, %37, %38 : vector<256x8xf32>
    %cst_16 = arith.constant 2.000000e-01 : f32
    %40 = vector.broadcast %cst_16 : f32 to vector<256x8xf32>
    %41 = arith.mulf %40, %37 : vector<256x8xf32>
    %42 = arith.select %39, %37, %41 : vector<256x8xi1>, vector<256x8xf32>
    %43 = vector.shape_cast %42 : vector<256x8xf32> to vector<1x16x16x8xf32>
    %cst_17 = arith.constant 0.000000e+00 : f32
    %44 = vector.broadcast %cst_17 : f32 to vector<1x1x16x8xf32>
    %45 = tpu.concatenate %44, %43, %44 in 1 : vector<1x1x16x8xf32>, vector<1x16x16x8xf32>, vector<1x1x16x8xf32> -> vector<1x18x16x8xf32>
    %cst_18 = arith.constant 0.000000e+00 : f32
    %46 = vector.broadcast %cst_18 : f32 to vector<1x18x1x8xf32>
    %47 = tpu.concatenate %46, %45, %46 in 2 : vector<1x18x1x8xf32>, vector<1x18x16x8xf32>, vector<1x18x1x8xf32> -> vector<1x18x18x8xf32>
    %48 = vector.extract_strided_slice %47 {offsets = [0, 0, 0, 0], sizes = [1, 16, 18, 8], strides = [1, 1, 1, 1]} : vector<1x18x18x8xf32> to vector<1x16x18x8xf32>
    %49 = vector.extract_strided_slice %48 {offsets = [0, 0, 0, 0], sizes = [1, 16, 16, 8], strides = [1, 1, 1, 1]} : vector<1x16x18x8xf32> to vector<1x16x16x8xf32>
    %50 = vector.extract_strided_slice %48 {offsets = [0, 0, 1, 0], sizes = [1, 16, 16, 8], strides = [1, 1, 1, 1]} : vector<1x16x18x8xf32> to vector<1x16x16x8xf32>
    %51 = vector.extract_strided_slice %48 {offsets = [0, 0, 2, 0], sizes = [1, 16, 16, 8], strides = [1, 1, 1, 1]} : vector<1x16x18x8xf32> to vector<1x16x16x8xf32>
    %52 = tpu.concatenate %49, %50, %51 in 3 : vector<1x16x16x8xf32>, vector<1x16x16x8xf32>, vector<1x16x16x8xf32> -> vector<1x16x16x24xf32>
    %53 = vector.shape_cast %52 : vector<1x16x16x24xf32> to vector<256x24xf32>
    %c0_19 = arith.constant 0 : index
    %c0_20 = arith.constant 0 : index
    %c0_21 = arith.constant 0 : index
    %54 = vector.load %arg4[%c0_19, %c0_20, %c0_21] : memref<3x24x8xf32, #tpu.memory_space<vmem>>, vector<1x24x8xf32>
    %55 = vector.shape_cast %54 : vector<1x24x8xf32> to vector<24x8xf32>
    %cst_22 = arith.constant dense<0.000000e+00> : vector<256x8xf32>
    %56 = tpu.matmul %53, %55, %cst_22 {dimension_numbers = #tpu.dot_dimension_numbers<[1], [0], [0], [1], [0, 0, 1, 1], [], []>} : vector<256x24xf32>, vector<24x8xf32>, vector<256x8xf32> -> vector<256x8xf32>
    %57 = vector.extract_strided_slice %47 {offsets = [0, 1, 0, 0], sizes = [1, 16, 18, 8], strides = [1, 1, 1, 1]} : vector<1x18x18x8xf32> to vector<1x16x18x8xf32>
    %58 = vector.extract_strided_slice %57 {offsets = [0, 0, 0, 0], sizes = [1, 16, 16, 8], strides = [1, 1, 1, 1]} : vector<1x16x18x8xf32> to vector<1x16x16x8xf32>
    %59 = vector.extract_strided_slice %57 {offsets = [0, 0, 1, 0], sizes = [1, 16, 16, 8], strides = [1, 1, 1, 1]} : vector<1x16x18x8xf32> to vector<1x16x16x8xf32>
    %60 = vector.extract_strided_slice %57 {offsets = [0, 0, 2, 0], sizes = [1, 16, 16, 8], strides = [1, 1, 1, 1]} : vector<1x16x18x8xf32> to vector<1x16x16x8xf32>
    %61 = tpu.concatenate %58, %59, %60 in 3 : vector<1x16x16x8xf32>, vector<1x16x16x8xf32>, vector<1x16x16x8xf32> -> vector<1x16x16x24xf32>
    %62 = vector.shape_cast %61 : vector<1x16x16x24xf32> to vector<256x24xf32>
    %c1_23 = arith.constant 1 : index
    %c0_24 = arith.constant 0 : index
    %c0_25 = arith.constant 0 : index
    %63 = vector.load %arg4[%c1_23, %c0_24, %c0_25] : memref<3x24x8xf32, #tpu.memory_space<vmem>>, vector<1x24x8xf32>
    %64 = vector.shape_cast %63 : vector<1x24x8xf32> to vector<24x8xf32>
    %cst_26 = arith.constant dense<0.000000e+00> : vector<256x8xf32>
    %65 = tpu.matmul %62, %64, %cst_26 {dimension_numbers = #tpu.dot_dimension_numbers<[1], [0], [0], [1], [0, 0, 1, 1], [], []>} : vector<256x24xf32>, vector<24x8xf32>, vector<256x8xf32> -> vector<256x8xf32>
    %66 = arith.addf %56, %65 : vector<256x8xf32>
    %67 = vector.extract_strided_slice %47 {offsets = [0, 2, 0, 0], sizes = [1, 16, 18, 8], strides = [1, 1, 1, 1]} : vector<1x18x18x8xf32> to vector<1x16x18x8xf32>
    %68 = vector.extract_strided_slice %67 {offsets = [0, 0, 0, 0], sizes = [1, 16, 16, 8], strides = [1, 1, 1, 1]} : vector<1x16x18x8xf32> to vector<1x16x16x8xf32>
    %69 = vector.extract_strided_slice %67 {offsets = [0, 0, 1, 0], sizes = [1, 16, 16, 8], strides = [1, 1, 1, 1]} : vector<1x16x18x8xf32> to vector<1x16x16x8xf32>
    %70 = vector.extract_strided_slice %67 {offsets = [0, 0, 2, 0], sizes = [1, 16, 16, 8], strides = [1, 1, 1, 1]} : vector<1x16x18x8xf32> to vector<1x16x16x8xf32>
    %71 = tpu.concatenate %68, %69, %70 in 3 : vector<1x16x16x8xf32>, vector<1x16x16x8xf32>, vector<1x16x16x8xf32> -> vector<1x16x16x24xf32>
    %72 = vector.shape_cast %71 : vector<1x16x16x24xf32> to vector<256x24xf32>
    %c2_27 = arith.constant 2 : index
    %c0_28 = arith.constant 0 : index
    %c0_29 = arith.constant 0 : index
    %73 = vector.load %arg4[%c2_27, %c0_28, %c0_29] : memref<3x24x8xf32, #tpu.memory_space<vmem>>, vector<1x24x8xf32>
    %74 = vector.shape_cast %73 : vector<1x24x8xf32> to vector<24x8xf32>
    %cst_30 = arith.constant dense<0.000000e+00> : vector<256x8xf32>
    %75 = tpu.matmul %72, %74, %cst_30 {dimension_numbers = #tpu.dot_dimension_numbers<[1], [0], [0], [1], [0, 0, 1, 1], [], []>} : vector<256x24xf32>, vector<24x8xf32>, vector<256x8xf32> -> vector<256x8xf32>
    %76 = arith.addf %66, %75 : vector<256x8xf32>
    %c0_31 = arith.constant 0 : index
    %c0_32 = arith.constant 0 : index
    %77 = vector.load %arg5[%c0_31, %c0_32] : memref<1x8xf32, #tpu.memory_space<vmem>>, vector<1x8xf32>
    %78 = vector.broadcast %77 : vector<1x8xf32> to vector<256x8xf32>
    %79 = arith.addf %76, %78 : vector<256x8xf32>
    %cst_33 = arith.constant 0.000000e+00 : f32
    %80 = vector.broadcast %cst_33 : f32 to vector<256x8xf32>
    %81 = arith.cmpf ogt, %79, %80 : vector<256x8xf32>
    %cst_34 = arith.constant 2.000000e-01 : f32
    %82 = vector.broadcast %cst_34 : f32 to vector<256x8xf32>
    %83 = arith.mulf %82, %79 : vector<256x8xf32>
    %84 = arith.select %81, %79, %83 : vector<256x8xi1>, vector<256x8xf32>
    %85 = vector.shape_cast %84 : vector<256x8xf32> to vector<1x16x16x8xf32>
    %86 = vector.shape_cast %85 : vector<1x16x16x8xf32> to vector<1x8x2x8x2x8xf32>
    %cst_35 = arith.constant dense<0xFF800000> : vector<1x8x2x8x8xf32>
    %87 = vector.multi_reduction <maximumf>, %86, %cst_35 [4] : vector<1x8x2x8x2x8xf32> to vector<1x8x2x8x8xf32>
    %cst_36 = arith.constant dense<0xFF800000> : vector<1x8x8x8xf32>
    %88 = vector.multi_reduction <maximumf>, %87, %cst_36 [2] : vector<1x8x2x8x8xf32> to vector<1x8x8x8xf32>
    %89 = vector.shape_cast %88 : vector<1x8x8x8xf32> to vector<1x8x64xf32>
    %c0_37 = arith.constant 0 : index
    %c0_38 = arith.constant 0 : index
    %c0_39 = arith.constant 0 : index
    %90 = vector.load %arg6[%c0_37, %c0_38, %c0_39] : memref<1x8x64xf32, #tpu.memory_space<vmem>>, vector<1x8x64xf32>
    tpu.vector_store %arg6[%c0_37, %c0_38, %c0_39], %89 {strides = array<i32>} : memref<1x8x64xf32, #tpu.memory_space<vmem>>, vector<1x8x64xf32>,
    return
  }
  func.func @transform_0(%arg0: i32) -> (i32, i32, i32) {
    %c0_i32 = arith.constant 0 : i32
    %c0_i32_0 = arith.constant 0 : i32
    %c0_i32_1 = arith.constant 0 : i32
    return %arg0, %c0_i32, %c0_i32_0 : i32, i32, i32
  }
  func.func @transform_1(%arg0: i32) -> (i32, i32, i32) {
    %c0_i32 = arith.constant 0 : i32
    %c0_i32_0 = arith.constant 0 : i32
    %c0_i32_1 = arith.constant 0 : i32
    %c0_i32_2 = arith.constant 0 : i32
    return %c0_i32, %c0_i32_0, %c0_i32_1 : i32, i32, i32
  }
  func.func @transform_2(%arg0: i32) -> (i32, i32) {
    %c0_i32 = arith.constant 0 : i32
    %c0_i32_0 = arith.constant 0 : i32
    %c0_i32_1 = arith.constant 0 : i32
    return %c0_i32, %c0_i32_0 : i32, i32
  }
  func.func @transform_3(%arg0: i32) -> (i32, i32, i32) {
    %c0_i32 = arith.constant 0 : i32
    %c0_i32_0 = arith.constant 0 : i32
    %c0_i32_1 = arith.constant 0 : i32
    %c0_i32_2 = arith.constant 0 : i32
    return %c0_i32, %c0_i32_0, %c0_i32_1 : i32, i32, i32
  }
  func.func @transform_4(%arg0: i32) -> (i32, i32) {
    %c0_i32 = arith.constant 0 : i32
    %c0_i32_0 = arith.constant 0 : i32
    %c0_i32_1 = arith.constant 0 : i32
    return %c0_i32, %c0_i32_0 : i32, i32
  }
  func.func @transform_5(%arg0: i32) -> (i32, i32, i32) {
    %c0_i32 = arith.constant 0 : i32
    %c0_i32_0 = arith.constant 0 : i32
    %c0_i32_1 = arith.constant 0 : i32
    return %arg0, %c0_i32, %c0_i32_0 : i32, i32, i32
  }
}

</mosaic_0001>

<llo_original>
// kernel: tpu_custom_call.1
$region0: #{tpu_custom_call.1}
  #allocation0 [shape = 'u32[]', space=smem, size = 0x4, offset = 0x4, fixed_abs, tag = 'smem constant byte address 0x4 - core index']
  #allocation1 [shape = 'u32[72,128]{1,0:T(1,128)}', space=vmem, size = 0x9000, scoped, tag = 'internal scratch']
  %s0 = inlined_call_operand.vmem [shape: f32[2,16,64], index: 0, kind: input, shape index: {}]
  %s1 = inlined_call_operand.vmem [shape: f32[3,12,8], index: 1, kind: input, shape index: {}]
  %s2 = inlined_call_operand.vmem [shape: f32[1,8], index: 2, kind: input, shape index: {}]
  %s3 = inlined_call_operand.vmem [shape: f32[3,24,8], index: 3, kind: input, shape index: {}]
  %s4 = inlined_call_operand.vmem [shape: f32[1,8], index: 4, kind: input, shape index: {}]
  %s5 = inlined_call_operand.hbm [shape: f32[2,8,64], index: 5, kind: output, shape index: {}]
  %s6 = sld [smem:[#allocation0]]
  $region53: #{tpu_custom_call.1} parent=0
    _
  %s8 = ssub.s32 1, %s6
  %s9 = scalar_select 0, %s8, %s6
  $region1: #{tpu_custom_call.1} parent=0
    #allocation2 [shape = 'u8[8192]{0}', space=vmem, size = 0x2000, scoped, tag = 'output window, operand 0']
    #allocation3 [shape = 's32[2]{0}', space=sflag, size = 0x8, scoped, tag = 'scoped memory for tpu_custom_call.1']
    %10 = vsyncpa [#allocation3], 0
    %s11 = scalar_lea.sflag [#allocation3], 1
    %12 = vsyncpa %s11, 0
    loop: start=0, step=1, limit=4
    $region2: #{tpu_custom_call.1} parent=1 // loop_pre_header
      _
    $region3: #{tpu_custom_call.1} parent=1 // loop_header
      %s14 = sphi 0, %s18
      %p15 = scmp.ge.s32.totalorder %s14, 4
      %s24 = sphi 0, %s26
      %s27 = sphi 0, %s24
      %s28 = sphi 0, %s27
      %s44 = sphi 0, %s28
      %s48 = sphi 0, %s48
      %s50 = sphi 0, %s48
      %s51 = sphi 0, %s50
      %s65 = sphi 0, %s51
      %s69 = sphi 0, %s69
      %s71 = sphi 0, %s69
      %s72 = sphi 0, %s71
      %s86 = sphi 0, %s72
      %s90 = sphi 0, %s90
      %s92 = sphi 0, %s90
      %s93 = sphi 0, %s92
      %s107 = sphi 0, %s93
      %s111 = sphi 0, %s111
      %s113 = sphi 0, %s111
      %s114 = sphi 0, %s113
      %s128 = sphi 0, %s114
      %s134 = sphi 0, %s136
      %s137 = sphi 0, %s134
      %s138 = sphi 0, %s137
      %s154 = sphi 0, %s138
    $region4: #{tpu_custom_call.1} parent=1 // loop_header_branch
      %17 = sbr.rel (%p15) target = $region8
    $region5: #{tpu_custom_call.1} parent=1 // loop_body
      %s19 = ssub.s32 %s14, 1
      %s20 = ssub.s32 %s14, 2
      %s21 = sadd.s32 %s14, 1
      %s22 = ssub.s32 %s14, %s21
      %p23 = scmp.eq.s32.totalorder %s22, 0
      %s25 = sadd.s32 %s24, 1
      %s26 = scalar_select %p23, %s24, %s25
      %p29 = pneg %p23
      %p30 = scmp.eq.s32.totalorder %s14, 1
      %p31 = por %p29, %p30
      %p32 = scmp.ne.s32.totalorder %s24, %s27
      %p33 = scmp.eq.s32.totalorder %s14, 0
      %p34 = por %p32, %p33
      %p35 = scmp.ne.s32.totalorder %s24, %s27
      %p36 = scmp.eq.s32.totalorder %s19, 1
      %p37 = por %p35, %p36
      %p38 = scmp.ne.s32.totalorder %s27, %s28
      %p39 = scmp.eq.s32.totalorder %s19, 0
      %p40 = por %p38, %p39
      %p41 = scmp.ne.s32.totalorder %s27, %s28
      %p42 = scmp.eq.s32.totalorder %s20, 1
      %p43 = por %p41, %p42
      %p45 = scmp.ne.s32.totalorder %s28, %s44
      %p46 = scmp.eq.s32.totalorder %s20, 0
      %p47 = por %p45, %p46
      %s49 = sadd.s32 %s48, 1
      %p52 = scmp.eq.s32.totalorder %s14, 1
      %p53 = scmp.ne.s32.totalorder %s48, %s50
      %p54 = scmp.eq.s32.totalorder %s14, 0
      %p55 = por %p53, %p54
      %p56 = scmp.ne.s32.totalorder %s48, %s50
      %p57 = scmp.eq.s32.totalorder %s19, 1
      %p58 = por %p56, %p57
      %p59 = scmp.ne.s32.totalorder %s50, %s51
      %p60 = scmp.eq.s32.totalorder %s19, 0
      %p61 = por %p59, %p60
      %p62 = scmp.ne.s32.totalorder %s50, %s51
      %p63 = scmp.eq.s32.totalorder %s20, 1
      %p64 = por %p62, %p63
      %p66 = scmp.ne.s32.totalorder %s51, %s65
      %p67 = scmp.eq.s32.totalorder %s20, 0
      %p68 = por %p66, %p67
      %s70 = sadd.s32 %s69, 1
      %p73 = scmp.eq.s32.totalorder %s14, 1
      %p74 = scmp.ne.s32.totalorder %s69, %s71
      %p75 = scmp.eq.s32.totalorder %s14, 0
      %p76 = por %p74, %p75
      %p77 = scmp.ne.s32.totalorder %s69, %s71
      %p78 = scmp.eq.s32.totalorder %s19, 1
      %p79 = por %p77, %p78
      %p80 = scmp.ne.s32.totalorder %s71, %s72
      %p81 = scmp.eq.s32.totalorder %s19, 0
      %p82 = por %p80, %p81
      %p83 = scmp.ne.s32.totalorder %s71, %s72
      %p84 = scmp.eq.s32.totalorder %s20, 1
      %p85 = por %p83, %p84
      %p87 = scmp.ne.s32.totalorder %s72, %s86
      %p88 = scmp.eq.s32.totalorder %s20, 0
      %p89 = por %p87, %p88
      %s91 = sadd.s32 %s90, 1
      %p94 = scmp.eq.s32.totalorder %s14, 1
      %p95 = scmp.ne.s32.totalorder %s90, %s92
      %p96 = scmp.eq.s32.totalorder %s14, 0
      %p97 = por %p95, %p96
      %p98 = scmp.ne.s32.totalorder %s90, %s92
      %p99 = scmp.eq.s32.totalorder %s19, 1
      %p100 = por %p98, %p99
      %p101 = scmp.ne.s32.totalorder %s92, %s93
      %p102 = scmp.eq.s32.totalorder %s19, 0
      %p103 = por %p101, %p102
      %p104 = scmp.ne.s32.totalorder %s92, %s93
      %p105 = scmp.eq.s32.totalorder %s20, 1
      %p106 = por %p104, %p105
      %p108 = scmp.ne.s32.totalorder %s93, %s107
      %p109 = scmp.eq.s32.totalorder %s20, 0
      %p110 = por %p108, %p109
      %s112 = sadd.s32 %s111, 1
      %p115 = scmp.eq.s32.totalorder %s14, 1
      %p116 = scmp.ne.s32.totalorder %s111, %s113
      %p117 = scmp.eq.s32.totalorder %s14, 0
      %p118 = por %p116, %p117
      %p119 = scmp.ne.s32.totalorder %s111, %s113
      %p120 = scmp.eq.s32.totalorder %s19, 1
      %p121 = por %p119, %p120
      %p122 = scmp.ne.s32.totalorder %s113, %s114
      %p123 = scmp.eq.s32.totalorder %s19, 0
      %p124 = por %p122, %p123
      %p125 = scmp.ne.s32.totalorder %s113, %s114
      %p126 = scmp.eq.s32.totalorder %s20, 1
      %p127 = por %p125, %p126
      %p129 = scmp.ne.s32.totalorder %s114, %s128
      %p130 = scmp.eq.s32.totalorder %s20, 0
      %p131 = por %p129, %p130
      %s132 = ssub.s32 %s14, %s21
      %p133 = scmp.eq.s32.totalorder %s132, 0
      %s135 = sadd.s32 %s134, 1
      %s136 = scalar_select %p133, %s134, %s135
      %p139 = pneg %p133
      %p140 = scmp.eq.s32.totalorder %s14, 1
      %p141 = por %p139, %p140
      %p142 = scmp.ne.s32.totalorder %s134, %s137
      %p143 = scmp.eq.s32.totalorder %s14, 0
      %p144 = por %p142, %p143
      %p145 = scmp.ne.s32.totalorder %s134, %s137
      %p146 = scmp.eq.s32.totalorder %s19, 1
      %p147 = por %p145, %p146
      %p148 = scmp.ne.s32.totalorder %s137, %s138
      %p149 = scmp.eq.s32.totalorder %s19, 0
      %p150 = por %p148, %p149
      %p151 = scmp.ne.s32.totalorder %s137, %s138
      %p152 = scmp.eq.s32.totalorder %s20, 1
      %p153 = por %p151, %p152
      %p155 = scmp.ne.s32.totalorder %s138, %s154
      %p156 = scmp.eq.s32.totalorder %s20, 0
      %p157 = por %p155, %p156
      %p158 = scmp.le.s32.totalorder 1, %s14
      %p159 = scmp.lt.s32.totalorder %s14, 3
      %p160 = pnand %p158, %p159
      %p161 = pneg %p160
      // Predicated region
      $region9: #{tpu_custom_call.1} parent=5 // pred_check
        _
      $region10: #{tpu_custom_call.1} parent=5 // pred_check_branch
        %163 = sbr.rel (%p160) target = $region12
      $region11: #{tpu_custom_call.1} parent=5 // pred_region
        %s164 = ssub.s32 %s14, 1
        // Predicated region
        $region13: #{tpu_custom_call.1} parent=11 // pred_check
          %p165 = pneg %p61
        $region14: #{tpu_custom_call.1} parent=11 // pred_check_branch
          %167 = sbr.rel (%p165) target = $region16
        $region15: #{tpu_custom_call.1} parent=11 // pred_region
          _
        $region16: #{tpu_custom_call.1} parent=11 // pred_fallthru
          _
        // Predicated region
        $region17: #{tpu_custom_call.1} parent=11 // pred_check
          %p168 = pneg %p82
        $region18: #{tpu_custom_call.1} parent=11 // pred_check_branch
          %170 = sbr.rel (%p168) target = $region20
        $region19: #{tpu_custom_call.1} parent=11 // pred_region
          _
        $region20: #{tpu_custom_call.1} parent=11 // pred_fallthru
          _
        // Predicated region
        $region21: #{tpu_custom_call.1} parent=11 // pred_check
          %p171 = pneg %p103
        $region22: #{tpu_custom_call.1} parent=11 // pred_check_branch
          %173 = sbr.rel (%p171) target = $region24
        $region23: #{tpu_custom_call.1} parent=11 // pred_region
          _
        $region24: #{tpu_custom_call.1} parent=11 // pred_fallthru
          _
        // Predicated region
        $region25: #{tpu_custom_call.1} parent=11 // pred_check
          %p174 = pneg %p124
        $region26: #{tpu_custom_call.1} parent=11 // pred_check_branch
          %176 = sbr.rel (%p174) target = $region28
        $region27: #{tpu_custom_call.1} parent=11 // pred_region
          _
        $region28: #{tpu_custom_call.1} parent=11 // pred_fallthru
          _
      $region12: #{tpu_custom_call.1} parent=5 // pred_fallthru
        _
      %p177 = scmp.lt.s32.totalorder %s14, 2
      // Predicated region
      $region29: #{tpu_custom_call.1} parent=5 // pred_check
        %p178 = pneg %p177
      $region30: #{tpu_custom_call.1} parent=5 // pred_check_branch
        %180 = sbr.rel (%p178) target = $region32
      $region31: #{tpu_custom_call.1} parent=5 // pred_region
        // Predicated region
        $region33: #{tpu_custom_call.1} parent=31 // pred_check
          %p181 = pneg %p34
        $region34: #{tpu_custom_call.1} parent=31 // pred_check_branch
          %183 = sbr.rel (%p181) target = $region36
        $region35: #{tpu_custom_call.1} parent=31 // pred_region
          %p184 = scmp.lt.s32.totalorder %s14, 1
          %s185 = scalar_select %p184, %s14, 1
          %s186 = smul.addr %s185, 2
          %s187 = smul.addr %s186, 8
          %s188 = scalar_lea.vmem %s0, %s187
        $region36: #{tpu_custom_call.1} parent=31 // pred_fallthru
          _
      $region32: #{tpu_custom_call.1} parent=5 // pred_fallthru
        _
      %p189 = scmp.le.s32.totalorder 1, %s14
      %p190 = scmp.lt.s32.totalorder %s14, 3
      %p191 = pnand %p189, %p190
      %p192 = pneg %p191
      // Predicated region
      $region37: #{tpu_custom_call.1} parent=5 // pred_check
        _
      $region38: #{tpu_custom_call.1} parent=5 // pred_check_branch
        %194 = sbr.rel (%p191) target = $region40
      $region39: #{tpu_custom_call.1} parent=5 // pred_region
        %s195 = ssub.s32 %s14, 1
        %p196 = scmp.lt.s32.totalorder %s19, 1
        %s197 = scalar_select %p196, %s19, 1
        %s198 = smul.addr %s197, 2
        %s199 = smul.addr %s198, 8
        %s200 = scalar_lea.vmem %s0, %s199
        %p201 = pneg %p40
        %p202 = pneg %p37
        %p203 = pneg %p61
        %p204 = pneg %p58
        %p205 = pneg %p82
        %p206 = pneg %p79
        %p207 = pneg %p103
        %p208 = pneg %p100
        %p209 = pneg %p124
        %p210 = pneg %p121
        %p211 = pneg %p150
        %p212 = pneg %p147
        %s213 = sand.u32 %s137, 1
        %s214 = scalar_lea.sflag [#allocation3], %s213
        %s215 = sand.u32 %s137, 1
        %s216 = smul.addr %s215, 8
        %s217 = scalar_lea.vmem [#allocation2], %s216
        %p218 = scmp.lt.s32.totalorder %s19, 1
        %s219 = scalar_select %p218, %s19, 1
        %s220 = smul.addr %s219, 2
        %s221 = smul.addr %s220, 8
        %s222 = scalar_lea.vmem %s0, %s221
        %v223 = vld [vmem:[%s222] sm:$0xff]
        %v224 = vld [vmem:[%s222 + $0x8] sm:$0xff]
        %227 = vrot.lane.b32.xlu0 %v223, 124
        %v228 = vpop.permute.xlu0 %227
        %229 = vrot.lane.b32.xlu0 %v224, 124
        %v230 = vpop.permute.xlu0 %229
        %233 = vrot.lane.b32.xlu0 %v223, 120
        %v234 = vpop.permute.xlu0 %233
        %235 = vrot.lane.b32.xlu0 %v224, 120
        %v236 = vpop.permute.xlu0 %235
        %239 = vrot.lane.b32.xlu0 %v223, 116
        %v240 = vpop.permute.xlu0 %239
        %241 = vrot.lane.b32.xlu0 %v224, 116
        %v242 = vpop.permute.xlu0 %241
        %245 = vrot.lane.b32.xlu0 %v223, 112
        %v246 = vpop.permute.xlu0 %245
        %247 = vrot.lane.b32.xlu0 %v224, 112
        %v248 = vpop.permute.xlu0 %247
        %251 = vrot.lane.b32.xlu0 %v223, 108
        %v252 = vpop.permute.xlu0 %251
        %253 = vrot.lane.b32.xlu0 %v224, 108
        %v254 = vpop.permute.xlu0 %253
        %257 = vrot.lane.b32.xlu0 %v223, 104
        %v258 = vpop.permute.xlu0 %257
        %259 = vrot.lane.b32.xlu0 %v224, 104
        %v260 = vpop.permute.xlu0 %259
        %263 = vrot.lane.b32.xlu0 %v223, 100
        %v264 = vpop.permute.xlu0 %263
        %265 = vrot.lane.b32.xlu0 %v224, 100
        %v266 = vpop.permute.xlu0 %265
        %269 = vrot.lane.b32.xlu0 %v223, 96
        %v270 = vpop.permute.xlu0 %269
        %271 = vrot.lane.b32.xlu0 %v224, 96
        %v272 = vpop.permute.xlu0 %271
        %275 = vrot.lane.b32.xlu0 %v223, 92
        %v276 = vpop.permute.xlu0 %275
        %277 = vrot.lane.b32.xlu0 %v224, 92
        %v278 = vpop.permute.xlu0 %277
        %281 = vrot.lane.b32.xlu0 %v223, 88
        %v282 = vpop.permute.xlu0 %281
        %283 = vrot.lane.b32.xlu0 %v224, 88
        %v284 = vpop.permute.xlu0 %283
        %287 = vrot.lane.b32.xlu0 %v223, 84
        %v288 = vpop.permute.xlu0 %287
        %289 = vrot.lane.b32.xlu0 %v224, 84
        %v290 = vpop.permute.xlu0 %289
        %293 = vrot.lane.b32.xlu0 %v223, 80
        %v294 = vpop.permute.xlu0 %293
        %295 = vrot.lane.b32.xlu0 %v224, 80
        %v296 = vpop.permute.xlu0 %295
        %299 = vrot.lane.b32.xlu0 %v223, 76
        %v300 = vpop.permute.xlu0 %299
        %301 = vrot.lane.b32.xlu0 %v224, 76
        %v302 = vpop.permute.xlu0 %301
        %305 = vrot.lane.b32.xlu0 %v223, 72
        %v306 = vpop.permute.xlu0 %305
        %307 = vrot.lane.b32.xlu0 %v224, 72
        %v308 = vpop.permute.xlu0 %307
        %311 = vrot.lane.b32.xlu0 %v223, 68
        %v312 = vpop.permute.xlu0 %311
        %313 = vrot.lane.b32.xlu0 %v224, 68
        %v314 = vpop.permute.xlu0 %313
        %v317 = vrot.slane %v234, 4
        %vm318 = vcmask 1047556
        %v319 = vsel %vm318, %v317, %v223
        %v320 = vrot.slane %v223, 4
        %v321 = vsel %vm318, %v234, %v320
        %v323 = vunpack.c.l.s4 1983009808
        %v324 = vunpack.c.0.s8 %v323
        %v325 = vperm.slane %v319, %v324
        %v327 = vunpack.c.l.s4 1983009808
        %v328 = vunpack.c.0.s8 %v327
        %v329 = vperm.slane %v321, %v328
        %v330 = vrot.slane %v240, 4
        %v331 = vsel %vm318, %v330, %v228
        %v332 = vrot.slane %v228, 4
        %v333 = vsel %vm318, %v240, %v332
        %v335 = vunpack.c.l.s4 1983009808
        %v336 = vunpack.c.0.s8 %v335
        %v337 = vperm.slane %v331, %v336
        %v339 = vunpack.c.l.s4 1983009808
        %v340 = vunpack.c.0.s8 %v339
        %v341 = vperm.slane %v333, %v340
        %v342 = vrot.slane %v258, 4
        %v343 = vsel %vm318, %v342, %v246
        %v344 = vrot.slane %v246, 4
        %v345 = vsel %vm318, %v258, %v344
        %v347 = vunpack.c.l.s4 1983009808
        %v348 = vunpack.c.0.s8 %v347
        %v349 = vperm.slane %v343, %v348
        %v351 = vunpack.c.l.s4 1983009808
        %v352 = vunpack.c.0.s8 %v351
        %v353 = vperm.slane %v345, %v352
        %v354 = vrot.slane %v264, 4
        %v355 = vsel %vm318, %v354, %v252
        %v356 = vrot.slane %v252, 4
        %v357 = vsel %vm318, %v264, %v356
        %v359 = vunpack.c.l.s4 1983009808
        %v360 = vunpack.c.0.s8 %v359
        %v361 = vperm.slane %v355, %v360
        %v363 = vunpack.c.l.s4 1983009808
        %v364 = vunpack.c.0.s8 %v363
        %v365 = vperm.slane %v357, %v364
        %v366 = vrot.slane %v337, 4
        %v367 = vsel %vm318, %v366, %v325
        %v368 = vrot.slane %v325, 4
        %v369 = vsel %vm318, %v337, %v368
        %v371 = vunpack.c.l.s4 1934713408
        %v372 = vunpack.c.0.s8 %v371
        %v373 = vperm.slane %v367, %v372
        %v375 = vunpack.c.l.s4 1934713408
        %v376 = vunpack.c.0.s8 %v375
        %v377 = vperm.slane %v369, %v376
        %v378 = vrot.slane %v341, 4
        %v379 = vsel %vm318, %v378, %v329
        %v380 = vrot.slane %v329, 4
        %v381 = vsel %vm318, %v341, %v380
        %v383 = vunpack.c.l.s4 1934713408
        %v384 = vunpack.c.0.s8 %v383
        %v385 = vperm.slane %v379, %v384
        %v387 = vunpack.c.l.s4 1934713408
        %v388 = vunpack.c.0.s8 %v387
        %v389 = vperm.slane %v381, %v388
        %v390 = vrot.slane %v361, 4
        %v391 = vsel %vm318, %v390, %v349
        %v392 = vrot.slane %v349, 4
        %v393 = vsel %vm318, %v361, %v392
        %v395 = vunpack.c.l.s4 1934713408
        %v396 = vunpack.c.0.s8 %v395
        %v397 = vperm.slane %v391, %v396
        %v399 = vunpack.c.l.s4 1934713408
        %v400 = vunpack.c.0.s8 %v399
        %v401 = vperm.slane %v393, %v400
        %v402 = vrot.slane %v365, 4
        %v403 = vsel %vm318, %v402, %v353
        %v404 = vrot.slane %v353, 4
        %v405 = vsel %vm318, %v365, %v404
        %v407 = vunpack.c.l.s4 1934713408
        %v408 = vunpack.c.0.s8 %v407
        %v409 = vperm.slane %v403, %v408
        %v411 = vunpack.c.l.s4 1934713408
        %v412 = vunpack.c.0.s8 %v411
        %v413 = vperm.slane %v405, %v412
        %v414 = vrot.slane %v397, 4
        %v415 = vsel %vm318, %v414, %v373
        %v416 = vrot.slane %v373, 4
        %v417 = vsel %vm318, %v397, %v416
        %v418 = vrot.slane %v401, 4
        %v419 = vsel %vm318, %v418, %v377
        %v420 = vrot.slane %v377, 4
        %v421 = vsel %vm318, %v401, %v420
        %v422 = vrot.slane %v409, 4
        %v423 = vsel %vm318, %v422, %v385
        %v424 = vrot.slane %v385, 4
        %v425 = vsel %vm318, %v409, %v424
        %v426 = vrot.slane %v413, 4
        %v427 = vsel %vm318, %v426, %v389
        %v428 = vrot.slane %v389, 4
        %v429 = vsel %vm318, %v413, %v428
        %v430 = vrot.slane %v282, 4
        %v431 = vsel %vm318, %v430, %v270
        %v432 = vrot.slane %v270, 4
        %v433 = vsel %vm318, %v282, %v432
        %v435 = vunpack.c.l.s4 1983009808
        %v436 = vunpack.c.0.s8 %v435
        %v437 = vperm.slane %v431, %v436
        %v439 = vunpack.c.l.s4 1983009808
        %v440 = vunpack.c.0.s8 %v439
        %v441 = vperm.slane %v433, %v440
        %v442 = vrot.slane %v288, 4
        %v443 = vsel %vm318, %v442, %v276
        %v444 = vrot.slane %v276, 4
        %v445 = vsel %vm318, %v288, %v444
        %v447 = vunpack.c.l.s4 1983009808
        %v448 = vunpack.c.0.s8 %v447
        %v449 = vperm.slane %v443, %v448
        %v451 = vunpack.c.l.s4 1983009808
        %v452 = vunpack.c.0.s8 %v451
        %v453 = vperm.slane %v445, %v452
        %v454 = vrot.slane %v306, 4
        %v455 = vsel %vm318, %v454, %v294
        %v456 = vrot.slane %v294, 4
        %v457 = vsel %vm318, %v306, %v456
        %v459 = vunpack.c.l.s4 1983009808
        %v460 = vunpack.c.0.s8 %v459
        %v461 = vperm.slane %v455, %v460
        %v463 = vunpack.c.l.s4 1983009808
        %v464 = vunpack.c.0.s8 %v463
        %v465 = vperm.slane %v457, %v464
        %v466 = vrot.slane %v312, 4
        %v467 = vsel %vm318, %v466, %v300
        %v468 = vrot.slane %v300, 4
        %v469 = vsel %vm318, %v312, %v468
        %v471 = vunpack.c.l.s4 1983009808
        %v472 = vunpack.c.0.s8 %v471
        %v473 = vperm.slane %v467, %v472
        %v475 = vunpack.c.l.s4 1983009808
        %v476 = vunpack.c.0.s8 %v475
        %v477 = vperm.slane %v469, %v476
        %v478 = vrot.slane %v449, 4
        %v479 = vsel %vm318, %v478, %v437
        %v480 = vrot.slane %v437, 4
        %v481 = vsel %vm318, %v449, %v480
        %v483 = vunpack.c.l.s4 1934713408
        %v484 = vunpack.c.0.s8 %v483
        %v485 = vperm.slane %v479, %v484
        %v487 = vunpack.c.l.s4 1934713408
        %v488 = vunpack.c.0.s8 %v487
        %v489 = vperm.slane %v481, %v488
        %v490 = vrot.slane %v453, 4
        %v491 = vsel %vm318, %v490, %v441
        %v492 = vrot.slane %v441, 4
        %v493 = vsel %vm318, %v453, %v492
        %v495 = vunpack.c.l.s4 1934713408
        %v496 = vunpack.c.0.s8 %v495
        %v497 = vperm.slane %v491, %v496
        %v499 = vunpack.c.l.s4 1934713408
        %v500 = vunpack.c.0.s8 %v499
        %v501 = vperm.slane %v493, %v500
        %v502 = vrot.slane %v473, 4
        %v503 = vsel %vm318, %v502, %v461
        %v504 = vrot.slane %v461, 4
        %v505 = vsel %vm318, %v473, %v504
        %v507 = vunpack.c.l.s4 1934713408
        %v508 = vunpack.c.0.s8 %v507
        %v509 = vperm.slane %v503, %v508
        %v511 = vunpack.c.l.s4 1934713408
        %v512 = vunpack.c.0.s8 %v511
        %v513 = vperm.slane %v505, %v512
        %v514 = vrot.slane %v477, 4
        %v515 = vsel %vm318, %v514, %v465
        %v516 = vrot.slane %v465, 4
        %v517 = vsel %vm318, %v477, %v516
        %v519 = vunpack.c.l.s4 1934713408
        %v520 = vunpack.c.0.s8 %v519
        %v521 = vperm.slane %v515, %v520
        %v523 = vunpack.c.l.s4 1934713408
        %v524 = vunpack.c.0.s8 %v523
        %v525 = vperm.slane %v517, %v524
        %v526 = vrot.slane %v509, 4
        %v527 = vsel %vm318, %v526, %v485
        %v528 = vrot.slane %v485, 4
        %v529 = vsel %vm318, %v509, %v528
        %v530 = vrot.slane %v513, 4
        %v531 = vsel %vm318, %v530, %v489
        %v532 = vrot.slane %v489, 4
        %v533 = vsel %vm318, %v513, %v532
        %v534 = vrot.slane %v521, 4
        %v535 = vsel %vm318, %v534, %v497
        %v536 = vrot.slane %v497, 4
        %v537 = vsel %vm318, %v521, %v536
        %v538 = vrot.slane %v525, 4
        %v539 = vsel %vm318, %v538, %v501
        %v540 = vrot.slane %v501, 4
        %v541 = vsel %vm318, %v525, %v540
        %v542 = vrot.slane %v236, 4
        %v543 = vsel %vm318, %v542, %v224
        %v544 = vrot.slane %v224, 4
        %v545 = vsel %vm318, %v236, %v544
        %v547 = vunpack.c.l.s4 1983009808
        %v548 = vunpack.c.0.s8 %v547
        %v549 = vperm.slane %v543, %v548
        %v551 = vunpack.c.l.s4 1983009808
        %v552 = vunpack.c.0.s8 %v551
        %v553 = vperm.slane %v545, %v552
        %v554 = vrot.slane %v242, 4
        %v555 = vsel %vm318, %v554, %v230
        %v556 = vrot.slane %v230, 4
        %v557 = vsel %vm318, %v242, %v556
        %v559 = vunpack.c.l.s4 1983009808
        %v560 = vunpack.c.0.s8 %v559
        %v561 = vperm.slane %v555, %v560
        %v563 = vunpack.c.l.s4 1983009808
        %v564 = vunpack.c.0.s8 %v563
        %v565 = vperm.slane %v557, %v564
        %v566 = vrot.slane %v260, 4
        %v567 = vsel %vm318, %v566, %v248
        %v568 = vrot.slane %v248, 4
        %v569 = vsel %vm318, %v260, %v568
        %v571 = vunpack.c.l.s4 1983009808
        %v572 = vunpack.c.0.s8 %v571
        %v573 = vperm.slane %v567, %v572
        %v575 = vunpack.c.l.s4 1983009808
        %v576 = vunpack.c.0.s8 %v575
        %v577 = vperm.slane %v569, %v576
        %v578 = vrot.slane %v266, 4
        %v579 = vsel %vm318, %v578, %v254
        %v580 = vrot.slane %v254, 4
        %v581 = vsel %vm318, %v266, %v580
        %v583 = vunpack.c.l.s4 1983009808
        %v584 = vunpack.c.0.s8 %v583
        %v585 = vperm.slane %v579, %v584
        %v587 = vunpack.c.l.s4 1983009808
        %v588 = vunpack.c.0.s8 %v587
        %v589 = vperm.slane %v581, %v588
        %v590 = vrot.slane %v561, 4
        %v591 = vsel %vm318, %v590, %v549
        %v592 = vrot.slane %v549, 4
        %v593 = vsel %vm318, %v561, %v592
        %v595 = vunpack.c.l.s4 1934713408
        %v596 = vunpack.c.0.s8 %v595
        %v597 = vperm.slane %v591, %v596
        %v599 = vunpack.c.l.s4 1934713408
        %v600 = vunpack.c.0.s8 %v599
        %v601 = vperm.slane %v593, %v600
        %v602 = vrot.slane %v565, 4
        %v603 = vsel %vm318, %v602, %v553
        %v604 = vrot.slane %v553, 4
        %v605 = vsel %vm318, %v565, %v604
        %v607 = vunpack.c.l.s4 1934713408
        %v608 = vunpack.c.0.s8 %v607
        %v609 = vperm.slane %v603, %v608
        %v611 = vunpack.c.l.s4 1934713408
        %v612 = vunpack.c.0.s8 %v611
        %v613 = vperm.slane %v605, %v612
        %v614 = vrot.slane %v585, 4
        %v615 = vsel %vm318, %v614, %v573
        %v616 = vrot.slane %v573, 4
        %v617 = vsel %vm318, %v585, %v616
        %v619 = vunpack.c.l.s4 1934713408
        %v620 = vunpack.c.0.s8 %v619
        %v621 = vperm.slane %v615, %v620
        %v623 = vunpack.c.l.s4 1934713408
        %v624 = vunpack.c.0.s8 %v623
        %v625 = vperm.slane %v617, %v624
        %v626 = vrot.slane %v589, 4
        %v627 = vsel %vm318, %v626, %v577
        %v628 = vrot.slane %v577, 4
        %v629 = vsel %vm318, %v589, %v628
        %v631 = vunpack.c.l.s4 1934713408
        %v632 = vunpack.c.0.s8 %v631
        %v633 = vperm.slane %v627, %v632
        %v635 = vunpack.c.l.s4 1934713408
        %v636 = vunpack.c.0.s8 %v635
        %v637 = vperm.slane %v629, %v636
        %v638 = vrot.slane %v621, 4
        %v639 = vsel %vm318, %v638, %v597
        %v640 = vrot.slane %v597, 4
        %v641 = vsel %vm318, %v621, %v640
        %v642 = vrot.slane %v625, 4
        %v643 = vsel %vm318, %v642, %v601
        %v644 = vrot.slane %v601, 4
        %v645 = vsel %vm318, %v625, %v644
        %v646 = vrot.slane %v633, 4
        %v647 = vsel %vm318, %v646, %v609
        %v648 = vrot.slane %v609, 4
        %v649 = vsel %vm318, %v633, %v648
        %v650 = vrot.slane %v637, 4
        %v651 = vsel %vm318, %v650, %v613
        %v652 = vrot.slane %v613, 4
        %v653 = vsel %vm318, %v637, %v652
        %v654 = vrot.slane %v284, 4
        %v655 = vsel %vm318, %v654, %v272
        %v656 = vrot.slane %v272, 4
        %v657 = vsel %vm318, %v284, %v656
        %v659 = vunpack.c.l.s4 1983009808
        %v660 = vunpack.c.0.s8 %v659
        %v661 = vperm.slane %v655, %v660
        %v663 = vunpack.c.l.s4 1983009808
        %v664 = vunpack.c.0.s8 %v663
        %v665 = vperm.slane %v657, %v664
        %v666 = vrot.slane %v290, 4
        %v667 = vsel %vm318, %v666, %v278
        %v668 = vrot.slane %v278, 4
        %v669 = vsel %vm318, %v290, %v668
        %v671 = vunpack.c.l.s4 1983009808
        %v672 = vunpack.c.0.s8 %v671
        %v673 = vperm.slane %v667, %v672
        %v675 = vunpack.c.l.s4 1983009808
        %v676 = vunpack.c.0.s8 %v675
        %v677 = vperm.slane %v669, %v676
        %v678 = vrot.slane %v308, 4
        %v679 = vsel %vm318, %v678, %v296
        %v680 = vrot.slane %v296, 4
        %v681 = vsel %vm318, %v308, %v680
        %v683 = vunpack.c.l.s4 1983009808
        %v684 = vunpack.c.0.s8 %v683
        %v685 = vperm.slane %v679, %v684
        %v687 = vunpack.c.l.s4 1983009808
        %v688 = vunpack.c.0.s8 %v687
        %v689 = vperm.slane %v681, %v688
        %v690 = vrot.slane %v314, 4
        %v691 = vsel %vm318, %v690, %v302
        %v692 = vrot.slane %v302, 4
        %v693 = vsel %vm318, %v314, %v692
        %v695 = vunpack.c.l.s4 1983009808
        %v696 = vunpack.c.0.s8 %v695
        %v697 = vperm.slane %v691, %v696
        %v699 = vunpack.c.l.s4 1983009808
        %v700 = vunpack.c.0.s8 %v699
        %v701 = vperm.slane %v693, %v700
        %v702 = vrot.slane %v673, 4
        %v703 = vsel %vm318, %v702, %v661
        %v704 = vrot.slane %v661, 4
        %v705 = vsel %vm318, %v673, %v704
        %v707 = vunpack.c.l.s4 1934713408
        %v708 = vunpack.c.0.s8 %v707
        %v709 = vperm.slane %v703, %v708
        %v711 = vunpack.c.l.s4 1934713408
        %v712 = vunpack.c.0.s8 %v711
        %v713 = vperm.slane %v705, %v712
        %v714 = vrot.slane %v677, 4
        %v715 = vsel %vm318, %v714, %v665
        %v716 = vrot.slane %v665, 4
        %v717 = vsel %vm318, %v677, %v716
        %v719 = vunpack.c.l.s4 1934713408
        %v720 = vunpack.c.0.s8 %v719
        %v721 = vperm.slane %v715, %v720
        %v723 = vunpack.c.l.s4 1934713408
        %v724 = vunpack.c.0.s8 %v723
        %v725 = vperm.slane %v717, %v724
        %v726 = vrot.slane %v697, 4
        %v727 = vsel %vm318, %v726, %v685
        %v728 = vrot.slane %v685, 4
        %v729 = vsel %vm318, %v697, %v728
        %v731 = vunpack.c.l.s4 1934713408
        %v732 = vunpack.c.0.s8 %v731
        %v733 = vperm.slane %v727, %v732
        %v735 = vunpack.c.l.s4 1934713408
        %v736 = vunpack.c.0.s8 %v735
        %v737 = vperm.slane %v729, %v736
        %v738 = vrot.slane %v701, 4
        %v739 = vsel %vm318, %v738, %v689
        %v740 = vrot.slane %v689, 4
        %v741 = vsel %vm318, %v701, %v740
        %v743 = vunpack.c.l.s4 1934713408
        %v744 = vunpack.c.0.s8 %v743
        %v745 = vperm.slane %v739, %v744
        %v747 = vunpack.c.l.s4 1934713408
        %v748 = vunpack.c.0.s8 %v747
        %v749 = vperm.slane %v741, %v748
        %v750 = vrot.slane %v733, 4
        %v751 = vsel %vm318, %v750, %v709
        %v752 = vrot.slane %v709, 4
        %v753 = vsel %vm318, %v733, %v752
        %v754 = vrot.slane %v737, 4
        %v755 = vsel %vm318, %v754, %v713
        %v756 = vrot.slane %v713, 4
        %v757 = vsel %vm318, %v737, %v756
        %v758 = vrot.slane %v745, 4
        %v759 = vsel %vm318, %v758, %v721
        %v760 = vrot.slane %v721, 4
        %v761 = vsel %vm318, %v745, %v760
        %v762 = vrot.slane %v749, 4
        %v763 = vsel %vm318, %v762, %v725
        %v764 = vrot.slane %v725, 4
        %v765 = vsel %vm318, %v749, %v764
        %vm799 = vcmask 1040384
        %v800 = vrot.slane 0.0, 7
        %v801 = vsel %vm799, %v800, %v800
        %v802 = vrot.slane %v415, 7
        %v803 = vrot.slane %v527, 7
        %v804 = vsel %vm799, %v802, %v803
        %v805 = vrot.slane %v417, 7
        %v806 = vrot.slane %v529, 7
        %v807 = vsel %vm799, %v805, %v806
        %v808 = vrot.slane %v419, 7
        %v809 = vrot.slane %v531, 7
        %v810 = vsel %vm799, %v808, %v809
        %v811 = vrot.slane %v421, 7
        %v812 = vrot.slane %v533, 7
        %v813 = vsel %vm799, %v811, %v812
        %v814 = vrot.slane %v423, 7
        %v815 = vrot.slane %v535, 7
        %v816 = vsel %vm799, %v814, %v815
        %v817 = vrot.slane %v425, 7
        %v818 = vrot.slane %v537, 7
        %v819 = vsel %vm799, %v817, %v818
        %v820 = vrot.slane %v427, 7
        %v821 = vrot.slane %v539, 7
        %v822 = vsel %vm799, %v820, %v821
        %v823 = vrot.slane %v429, 7
        %v824 = vrot.slane %v541, 7
        %v825 = vsel %vm799, %v823, %v824
        %v826 = vrot.slane %v639, 7
        %v827 = vrot.slane %v751, 7
        %v828 = vsel %vm799, %v826, %v827
        %v829 = vrot.slane %v641, 7
        %v830 = vrot.slane %v753, 7
        %v831 = vsel %vm799, %v829, %v830
        %v832 = vrot.slane %v643, 7
        %v833 = vrot.slane %v755, 7
        %v834 = vsel %vm799, %v832, %v833
        %v835 = vrot.slane %v645, 7
        %v836 = vrot.slane %v757, 7
        %v837 = vsel %vm799, %v835, %v836
        %v838 = vrot.slane %v647, 7
        %v839 = vrot.slane %v759, 7
        %v840 = vsel %vm799, %v838, %v839
        %v841 = vrot.slane %v649, 7
        %v842 = vrot.slane %v761, 7
        %v843 = vsel %vm799, %v841, %v842
        %v844 = vrot.slane %v651, 7
        %v845 = vrot.slane %v763, 7
        %v846 = vsel %vm799, %v844, %v845
        %v847 = vrot.slane %v653, 7
        %v848 = vrot.slane %v765, 7
        %v849 = vsel %vm799, %v847, %v848
        %v900 = vsel %vm799, 0.0, %v800
        %v901 = vsel %vm799, 0.0, %v802
        %v902 = vsel %vm799, 0.0, %v805
        %v903 = vsel %vm799, 0.0, %v808
        %v904 = vsel %vm799, 0.0, %v811
        %v905 = vsel %vm799, 0.0, %v814
        %v906 = vsel %vm799, 0.0, %v817
        %v907 = vsel %vm799, 0.0, %v820
        %v908 = vsel %vm799, 0.0, %v823
        %v909 = vsel %vm799, 0.0, %v826
        %v910 = vsel %vm799, 0.0, %v829
        %v911 = vsel %vm799, 0.0, %v832
        %v912 = vsel %vm799, 0.0, %v835
        %v913 = vsel %vm799, 0.0, %v838
        %v914 = vsel %vm799, 0.0, %v841
        %v915 = vsel %vm799, 0.0, %v844
        %v916 = vsel %vm799, 0.0, %v847
        %v917 = vsel %vm799, %v800, 0.0
        %v918 = vsel %vm799, %v803, 0.0
        %v919 = vsel %vm799, %v806, 0.0
        %v920 = vsel %vm799, %v809, 0.0
        %v921 = vsel %vm799, %v812, 0.0
        %v922 = vsel %vm799, %v815, 0.0
        %v923 = vsel %vm799, %v818, 0.0
        %v924 = vsel %vm799, %v821, 0.0
        %v925 = vsel %vm799, %v824, 0.0
        %v926 = vsel %vm799, %v827, 0.0
        %v927 = vsel %vm799, %v830, 0.0
        %v928 = vsel %vm799, %v833, 0.0
        %v929 = vsel %vm799, %v836, 0.0
        %v930 = vsel %vm799, %v839, 0.0
        %v931 = vsel %vm799, %v842, 0.0
        %v932 = vsel %vm799, %v845, 0.0
        %v933 = vsel %vm799, %v848, 0.0
        %vm966 = vcmask 1046528
        %v967 = vrot.slane %v900, 1
        %v968 = vrot.slane %v801, 1
        %v969 = vsel %vm966, %v967, %v968
        %v970 = vrot.slane %v917, 1
        %v971 = vsel %vm966, %v968, %v970
        %v972 = vrot.slane %v901, 1
        %v973 = vrot.slane %v804, 1
        %v974 = vsel %vm966, %v972, %v973
        %v975 = vrot.slane %v918, 1
        %v976 = vsel %vm966, %v973, %v975
        %v977 = vrot.slane %v902, 1
        %v978 = vrot.slane %v807, 1
        %v979 = vsel %vm966, %v977, %v978
        %v980 = vrot.slane %v919, 1
        %v981 = vsel %vm966, %v978, %v980
        %v982 = vrot.slane %v903, 1
        %v983 = vrot.slane %v810, 1
        %v984 = vsel %vm966, %v982, %v983
        %v985 = vrot.slane %v920, 1
        %v986 = vsel %vm966, %v983, %v985
        %v987 = vrot.slane %v904, 1
        %v988 = vrot.slane %v813, 1
        %v989 = vsel %vm966, %v987, %v988
        %v990 = vrot.slane %v921, 1
        %v991 = vsel %vm966, %v988, %v990
        %v992 = vrot.slane %v905, 1
        %v993 = vrot.slane %v816, 1
        %v994 = vsel %vm966, %v992, %v993
        %v995 = vrot.slane %v922, 1
        %v996 = vsel %vm966, %v993, %v995
        %v997 = vrot.slane %v906, 1
        %v998 = vrot.slane %v819, 1
        %v999 = vsel %vm966, %v997, %v998
        %v1000 = vrot.slane %v923, 1
        %v1001 = vsel %vm966, %v998, %v1000
        %v1002 = vrot.slane %v907, 1
        %v1003 = vrot.slane %v822, 1
        %v1004 = vsel %vm966, %v1002, %v1003
        %v1005 = vrot.slane %v924, 1
        %v1006 = vsel %vm966, %v1003, %v1005
        %v1007 = vrot.slane %v908, 1
        %v1008 = vrot.slane %v825, 1
        %v1009 = vsel %vm966, %v1007, %v1008
        %v1010 = vrot.slane %v925, 1
        %v1011 = vsel %vm966, %v1008, %v1010
        %v1012 = vrot.slane %v909, 1
        %v1013 = vrot.slane %v828, 1
        %v1014 = vsel %vm966, %v1012, %v1013
        %v1015 = vrot.slane %v926, 1
        %v1016 = vsel %vm966, %v1013, %v1015
        %v1017 = vrot.slane %v910, 1
        %v1018 = vrot.slane %v831, 1
        %v1019 = vsel %vm966, %v1017, %v1018
        %v1020 = vrot.slane %v927, 1
        %v1021 = vsel %vm966, %v1018, %v1020
        %v1022 = vrot.slane %v911, 1
        %v1023 = vrot.slane %v834, 1
        %v1024 = vsel %vm966, %v1022, %v1023
        %v1025 = vrot.slane %v928, 1
        %v1026 = vsel %vm966, %v1023, %v1025
        %v1027 = vrot.slane %v912, 1
        %v1028 = vrot.slane %v837, 1
        %v1029 = vsel %vm966, %v1027, %v1028
        %v1030 = vrot.slane %v929, 1
        %v1031 = vsel %vm966, %v1028, %v1030
        %v1032 = vrot.slane %v913, 1
        %v1033 = vrot.slane %v840, 1
        %v1034 = vsel %vm966, %v1032, %v1033
        %v1035 = vrot.slane %v930, 1
        %v1036 = vsel %vm966, %v1033, %v1035
        %v1037 = vrot.slane %v914, 1
        %v1038 = vrot.slane %v843, 1
        %v1039 = vsel %vm966, %v1037, %v1038
        %v1040 = vrot.slane %v931, 1
        %v1041 = vsel %vm966, %v1038, %v1040
        %v1042 = vrot.slane %v915, 1
        %v1043 = vrot.slane %v846, 1
        %v1044 = vsel %vm966, %v1042, %v1043
        %v1045 = vrot.slane %v932, 1
        %v1046 = vsel %vm966, %v1043, %v1045
        %1047 = vrot.lane.b32.xlu0 %v969, 4
        %v1048 = vpop.permute.xlu0 %1047
        %1049 = vrot.lane.b32.xlu0 %v971, 4
        %v1050 = vpop.permute.xlu0 %1049
        %1051 = vrot.lane.b32.xlu0 %v974, 4
        %v1052 = vpop.permute.xlu0 %1051
        %1053 = vrot.lane.b32.xlu0 %v976, 4
        %v1054 = vpop.permute.xlu0 %1053
        %1055 = vrot.lane.b32.xlu0 %v979, 4
        %v1056 = vpop.permute.xlu0 %1055
        %1057 = vrot.lane.b32.xlu0 %v981, 4
        %v1058 = vpop.permute.xlu0 %1057
        %1059 = vrot.lane.b32.xlu0 %v984, 4
        %v1060 = vpop.permute.xlu0 %1059
        %1061 = vrot.lane.b32.xlu0 %v986, 4
        %v1062 = vpop.permute.xlu0 %1061
        %1063 = vrot.lane.b32.xlu0 %v989, 4
        %v1064 = vpop.permute.xlu0 %1063
        %1065 = vrot.lane.b32.xlu0 %v991, 4
        %v1066 = vpop.permute.xlu0 %1065
        %1067 = vrot.lane.b32.xlu0 %v994, 4
        %v1068 = vpop.permute.xlu0 %1067
        %1069 = vrot.lane.b32.xlu0 %v996, 4
        %v1070 = vpop.permute.xlu0 %1069
        %1071 = vrot.lane.b32.xlu0 %v999, 4
        %v1072 = vpop.permute.xlu0 %1071
        %1073 = vrot.lane.b32.xlu0 %v1001, 4
        %v1074 = vpop.permute.xlu0 %1073
        %1075 = vrot.lane.b32.xlu0 %v1004, 4
        %v1076 = vpop.permute.xlu0 %1075
        %1077 = vrot.lane.b32.xlu0 %v1006, 4
        %v1078 = vpop.permute.xlu0 %1077
        %1079 = vrot.lane.b32.xlu0 %v1009, 4
        %v1080 = vpop.permute.xlu0 %1079
        %1081 = vrot.lane.b32.xlu0 %v1011, 4
        %v1082 = vpop.permute.xlu0 %1081
        %1083 = vrot.lane.b32.xlu0 %v1014, 4
        %v1084 = vpop.permute.xlu0 %1083
        %1085 = vrot.lane.b32.xlu0 %v1016, 4
        %v1086 = vpop.permute.xlu0 %1085
        %1087 = vrot.lane.b32.xlu0 %v1019, 4
        %v1088 = vpop.permute.xlu0 %1087
        %1089 = vrot.lane.b32.xlu0 %v1021, 4
        %v1090 = vpop.permute.xlu0 %1089
        %1091 = vrot.lane.b32.xlu0 %v1024, 4
        %v1092 = vpop.permute.xlu0 %1091
        %1093 = vrot.lane.b32.xlu0 %v1026, 4
        %v1094 = vpop.permute.xlu0 %1093
        %1095 = vrot.lane.b32.xlu0 %v1029, 4
        %v1096 = vpop.permute.xlu0 %1095
        %1097 = vrot.lane.b32.xlu0 %v1031, 4
        %v1098 = vpop.permute.xlu0 %1097
        %1099 = vrot.lane.b32.xlu0 %v1034, 4
        %v1100 = vpop.permute.xlu0 %1099
        %1101 = vrot.lane.b32.xlu0 %v1036, 4
        %v1102 = vpop.permute.xlu0 %1101
        %1103 = vrot.lane.b32.xlu0 %v1039, 4
        %v1104 = vpop.permute.xlu0 %1103
        %1105 = vrot.lane.b32.xlu0 %v1041, 4
        %v1106 = vpop.permute.xlu0 %1105
        %1107 = vrot.lane.b32.xlu0 %v1044, 4
        %v1108 = vpop.permute.xlu0 %1107
        %1109 = vrot.lane.b32.xlu0 %v1046, 4
        %v1110 = vpop.permute.xlu0 %1109
        %vm1143 = vcmask 1045504
        %v1144 = vrot.slane %v900, 2
        %v1145 = vrot.slane %v801, 2
        %v1146 = vsel %vm1143, %v1144, %v1145
        %v1147 = vrot.slane %v917, 2
        %v1148 = vsel %vm1143, %v1145, %v1147
        %v1149 = vrot.slane %v901, 2
        %v1150 = vrot.slane %v804, 2
        %v1151 = vsel %vm1143, %v1149, %v1150
        %v1152 = vrot.slane %v918, 2
        %v1153 = vsel %vm1143, %v1150, %v1152
        %v1154 = vrot.slane %v902, 2
        %v1155 = vrot.slane %v807, 2
        %v1156 = vsel %vm1143, %v1154, %v1155
        %v1157 = vrot.slane %v919, 2
        %v1158 = vsel %vm1143, %v1155, %v1157
        %v1159 = vrot.slane %v903, 2
        %v1160 = vrot.slane %v810, 2
        %v1161 = vsel %vm1143, %v1159, %v1160
        %v1162 = vrot.slane %v920, 2
        %v1163 = vsel %vm1143, %v1160, %v1162
        %v1164 = vrot.slane %v904, 2
        %v1165 = vrot.slane %v813, 2
        %v1166 = vsel %vm1143, %v1164, %v1165
        %v1167 = vrot.slane %v921, 2
        %v1168 = vsel %vm1143, %v1165, %v1167
        %v1169 = vrot.slane %v905, 2
        %v1170 = vrot.slane %v816, 2
        %v1171 = vsel %vm1143, %v1169, %v1170
        %v1172 = vrot.slane %v922, 2
        %v1173 = vsel %vm1143, %v1170, %v1172
        %v1174 = vrot.slane %v906, 2
        %v1175 = vrot.slane %v819, 2
        %v1176 = vsel %vm1143, %v1174, %v1175
        %v1177 = vrot.slane %v923, 2
        %v1178 = vsel %vm1143, %v1175, %v1177
        %v1179 = vrot.slane %v907, 2
        %v1180 = vrot.slane %v822, 2
        %v1181 = vsel %vm1143, %v1179, %v1180
        %v1182 = vrot.slane %v924, 2
        %v1183 = vsel %vm1143, %v1180, %v1182
        %v1184 = vrot.slane %v908, 2
        %v1185 = vrot.slane %v825, 2
        %v1186 = vsel %vm1143, %v1184, %v1185
        %v1187 = vrot.slane %v925, 2
        %v1188 = vsel %vm1143, %v1185, %v1187
        %v1189 = vrot.slane %v909, 2
        %v1190 = vrot.slane %v828, 2
        %v1191 = vsel %vm1143, %v1189, %v1190
        %v1192 = vrot.slane %v926, 2
        %v1193 = vsel %vm1143, %v1190, %v1192
        %v1194 = vrot.slane %v910, 2
        %v1195 = vrot.slane %v831, 2
        %v1196 = vsel %vm1143, %v1194, %v1195
        %v1197 = vrot.slane %v927, 2
        %v1198 = vsel %vm1143, %v1195, %v1197
        %v1199 = vrot.slane %v911, 2
        %v1200 = vrot.slane %v834, 2
        %v1201 = vsel %vm1143, %v1199, %v1200
        %v1202 = vrot.slane %v928, 2
        %v1203 = vsel %vm1143, %v1200, %v1202
        %v1204 = vrot.slane %v912, 2
        %v1205 = vrot.slane %v837, 2
        %v1206 = vsel %vm1143, %v1204, %v1205
        %v1207 = vrot.slane %v929, 2
        %v1208 = vsel %vm1143, %v1205, %v1207
        %v1209 = vrot.slane %v913, 2
        %v1210 = vrot.slane %v840, 2
        %v1211 = vsel %vm1143, %v1209, %v1210
        %v1212 = vrot.slane %v930, 2
        %v1213 = vsel %vm1143, %v1210, %v1212
        %v1214 = vrot.slane %v914, 2
        %v1215 = vrot.slane %v843, 2
        %v1216 = vsel %vm1143, %v1214, %v1215
        %v1217 = vrot.slane %v931, 2
        %v1218 = vsel %vm1143, %v1215, %v1217
        %v1219 = vrot.slane %v915, 2
        %v1220 = vrot.slane %v846, 2
        %v1221 = vsel %vm1143, %v1219, %v1220
        %v1222 = vrot.slane %v932, 2
        %v1223 = vsel %vm1143, %v1220, %v1222
        %1224 = vrot.lane.b32.xlu0 %v1146, 8
        %v1225 = vpop.permute.xlu0 %1224
        %1226 = vrot.lane.b32.xlu0 %v1148, 8
        %v1227 = vpop.permute.xlu0 %1226
        %1228 = vrot.lane.b32.xlu0 %v1151, 8
        %v1229 = vpop.permute.xlu0 %1228
        %1230 = vrot.lane.b32.xlu0 %v1153, 8
        %v1231 = vpop.permute.xlu0 %1230
        %1232 = vrot.lane.b32.xlu0 %v1156, 8
        %v1233 = vpop.permute.xlu0 %1232
        %1234 = vrot.lane.b32.xlu0 %v1158, 8
        %v1235 = vpop.permute.xlu0 %1234
        %1236 = vrot.lane.b32.xlu0 %v1161, 8
        %v1237 = vpop.permute.xlu0 %1236
        %1238 = vrot.lane.b32.xlu0 %v1163, 8
        %v1239 = vpop.permute.xlu0 %1238
        %1240 = vrot.lane.b32.xlu0 %v1166, 8
        %v1241 = vpop.permute.xlu0 %1240
        %1242 = vrot.lane.b32.xlu0 %v1168, 8
        %v1243 = vpop.permute.xlu0 %1242
        %1244 = vrot.lane.b32.xlu0 %v1171, 8
        %v1245 = vpop.permute.xlu0 %1244
        %1246 = vrot.lane.b32.xlu0 %v1173, 8
        %v1247 = vpop.permute.xlu0 %1246
        %1248 = vrot.lane.b32.xlu0 %v1176, 8
        %v1249 = vpop.permute.xlu0 %1248
        %1250 = vrot.lane.b32.xlu0 %v1178, 8
        %v1251 = vpop.permute.xlu0 %1250
        %1252 = vrot.lane.b32.xlu0 %v1181, 8
        %v1253 = vpop.permute.xlu0 %1252
        %1254 = vrot.lane.b32.xlu0 %v1183, 8
        %v1255 = vpop.permute.xlu0 %1254
        %1256 = vrot.lane.b32.xlu0 %v1186, 8
        %v1257 = vpop.permute.xlu0 %1256
        %1258 = vrot.lane.b32.xlu0 %v1188, 8
        %v1259 = vpop.permute.xlu0 %1258
        %1260 = vrot.lane.b32.xlu0 %v1191, 8
        %v1261 = vpop.permute.xlu0 %1260
        %1262 = vrot.lane.b32.xlu0 %v1193, 8
        %v1263 = vpop.permute.xlu0 %1262
        %1264 = vrot.lane.b32.xlu0 %v1196, 8
        %v1265 = vpop.permute.xlu0 %1264
        %1266 = vrot.lane.b32.xlu0 %v1198, 8
        %v1267 = vpop.permute.xlu0 %1266
        %1268 = vrot.lane.b32.xlu0 %v1201, 8
        %v1269 = vpop.permute.xlu0 %1268
        %1270 = vrot.lane.b32.xlu0 %v1203, 8
        %v1271 = vpop.permute.xlu0 %1270
        %1272 = vrot.lane.b32.xlu0 %v1206, 8
        %v1273 = vpop.permute.xlu0 %1272
        %1274 = vrot.lane.b32.xlu0 %v1208, 8
        %v1275 = vpop.permute.xlu0 %1274
        %1276 = vrot.lane.b32.xlu0 %v1211, 8
        %v1277 = vpop.permute.xlu0 %1276
        %1278 = vrot.lane.b32.xlu0 %v1213, 8
        %v1279 = vpop.permute.xlu0 %1278
        %1280 = vrot.lane.b32.xlu0 %v1216, 8
        %v1281 = vpop.permute.xlu0 %1280
        %1282 = vrot.lane.b32.xlu0 %v1218, 8
        %v1283 = vpop.permute.xlu0 %1282
        %1284 = vrot.lane.b32.xlu0 %v1221, 8
        %v1285 = vpop.permute.xlu0 %1284
        %1286 = vrot.lane.b32.xlu0 %v1223, 8
        %v1287 = vpop.permute.xlu0 %1286
        %vm1320 = vcmask 31744
        %v1321 = vsel %vm1320, %v900, %v1048
        %v1322 = vsel %vm1320, %v801, %v1050
        %v1323 = vsel %vm1320, %v901, %v1052
        %v1324 = vsel %vm1320, %v804, %v1054
        %v1325 = vsel %vm1320, %v902, %v1056
        %v1326 = vsel %vm1320, %v807, %v1058
        %v1327 = vsel %vm1320, %v903, %v1060
        %v1328 = vsel %vm1320, %v810, %v1062
        %v1329 = vsel %vm1320, %v904, %v1064
        %v1330 = vsel %vm1320, %v813, %v1066
        %v1331 = vsel %vm1320, %v905, %v1068
        %v1332 = vsel %vm1320, %v816, %v1070
        %v1333 = vsel %vm1320, %v906, %v1072
        %v1334 = vsel %vm1320, %v819, %v1074
        %v1335 = vsel %vm1320, %v907, %v1076
        %v1336 = vsel %vm1320, %v822, %v1078
        %v1337 = vsel %vm1320, %v908, %v1080
        %v1338 = vsel %vm1320, %v825, %v1082
        %v1339 = vsel %vm1320, %v909, %v1084
        %v1340 = vsel %vm1320, %v828, %v1086
        %v1341 = vsel %vm1320, %v910, %v1088
        %v1342 = vsel %vm1320, %v831, %v1090
        %v1343 = vsel %vm1320, %v911, %v1092
        %v1344 = vsel %vm1320, %v834, %v1094
        %v1345 = vsel %vm1320, %v912, %v1096
        %v1346 = vsel %vm1320, %v837, %v1098
        %v1347 = vsel %vm1320, %v913, %v1100
        %v1348 = vsel %vm1320, %v840, %v1102
        %v1349 = vsel %vm1320, %v914, %v1104
        %v1350 = vsel %vm1320, %v843, %v1106
        %v1351 = vsel %vm1320, %v915, %v1108
        %v1352 = vsel %vm1320, %v846, %v1110
        %vm1353 = vcmask 64512
        %v1354 = vsel %vm1353, %v1321, %v1225
        %v1355 = vsel %vm1353, %v1322, %v1227
        %v1356 = vsel %vm1353, %v1323, %v1229
        %v1357 = vsel %vm1353, %v1324, %v1231
        %v1358 = vsel %vm1353, %v1325, %v1233
        %v1359 = vsel %vm1353, %v1326, %v1235
        %v1360 = vsel %vm1353, %v1327, %v1237
        %v1361 = vsel %vm1353, %v1328, %v1239
        %v1362 = vsel %vm1353, %v1329, %v1241
        %v1363 = vsel %vm1353, %v1330, %v1243
        %v1364 = vsel %vm1353, %v1331, %v1245
        %v1365 = vsel %vm1353, %v1332, %v1247
        %v1366 = vsel %vm1353, %v1333, %v1249
        %v1367 = vsel %vm1353, %v1334, %v1251
        %v1368 = vsel %vm1353, %v1335, %v1253
        %v1369 = vsel %vm1353, %v1336, %v1255
        %v1370 = vsel %vm1353, %v1337, %v1257
        %v1371 = vsel %vm1353, %v1338, %v1259
        %v1372 = vsel %vm1353, %v1339, %v1261
        %v1373 = vsel %vm1353, %v1340, %v1263
        %v1374 = vsel %vm1353, %v1341, %v1265
        %v1375 = vsel %vm1353, %v1342, %v1267
        %v1376 = vsel %vm1353, %v1343, %v1269
        %v1377 = vsel %vm1353, %v1344, %v1271
        %v1378 = vsel %vm1353, %v1345, %v1273
        %v1379 = vsel %vm1353, %v1346, %v1275
        %v1380 = vsel %vm1353, %v1347, %v1277
        %v1381 = vsel %vm1353, %v1348, %v1279
        %v1382 = vsel %vm1353, %v1349, %v1281
        %v1383 = vsel %vm1353, %v1350, %v1283
        %v1384 = vsel %vm1353, %v1351, %v1285
        %v1385 = vsel %vm1353, %v1352, %v1287
        %v1386 = vld [vmem:[%s1] sm:$0xff]
        %v1387 = vld [vmem:[%s1 + $0x8] sm:$0xf]
        %v1390 = vrot.slane %v916, 1
        %v1391 = vrot.slane %v849, 1
        %v1392 = vsel %vm966, %v1390, %v1391
        %v1393 = vrot.slane %v933, 1
        %v1394 = vsel %vm966, %v1391, %v1393
        %1395 = vrot.lane.b32.xlu0 %v1392, 4
        %v1396 = vpop.permute.xlu0 %1395
        %1397 = vrot.lane.b32.xlu0 %v1394, 4
        %v1398 = vpop.permute.xlu0 %1397
        %v1401 = vrot.slane %v916, 2
        %v1402 = vrot.slane %v849, 2
        %v1403 = vsel %vm1143, %v1401, %v1402
        %v1404 = vrot.slane %v933, 2
        %v1405 = vsel %vm1143, %v1402, %v1404
        %1406 = vrot.lane.b32.xlu0 %v1403, 8
        %v1407 = vpop.permute.xlu0 %1406
        %1408 = vrot.lane.b32.xlu0 %v1405, 8
        %v1409 = vpop.permute.xlu0 %1408
        %v1412 = vsel %vm1320, %v916, %v1396
        %v1413 = vsel %vm1320, %v849, %v1398
        %v1414 = vsel %vm1353, %v1412, %v1407
        %v1415 = vsel %vm1353, %v1413, %v1409
        %s1416 = scalar_lea.vmem %s1, 16
        %v1417 = vld [vmem:[%s1416] sm:$0xff]
        %v1418 = vld [vmem:[%s1416 + $0x8] sm:$0xf]
        %vm1419 = vcmask 97280
        %v1421 = vsel %vm1419, %v1356, 0
        %v1424 = vsel %vm1419, %v1357, 0
        %v1427 = vsel %vm1419, %v1358, 0
        %v1430 = vsel %vm1419, %v1359, 0
        %v1433 = vsel %vm1419, %v1360, 0
        %v1436 = vsel %vm1419, %v1361, 0
        %v1439 = vsel %vm1419, %v1362, 0
        %v1442 = vsel %vm1419, %v1363, 0
        %v1445 = vsel %vm1419, %v1364, 0
        %v1448 = vsel %vm1419, %v1365, 0
        %v1451 = vsel %vm1419, %v1366, 0
        %v1454 = vsel %vm1419, %v1367, 0
        %v1457 = vsel %vm1419, %v1368, 0
        %v1460 = vsel %vm1419, %v1369, 0
        %v1463 = vsel %vm1419, %v1370, 0
        %v1466 = vsel %vm1419, %v1371, 0
        %v1469 = vsel %vm1419, %v1372, 0
        %v1472 = vsel %vm1419, %v1373, 0
        %v1475 = vsel %vm1419, %v1374, 0
        %v1478 = vsel %vm1419, %v1375, 0
        %v1481 = vsel %vm1419, %v1376, 0
        %v1484 = vsel %vm1419, %v1377, 0
        %v1487 = vsel %vm1419, %v1378, 0
        %v1490 = vsel %vm1419, %v1379, 0
        %v1493 = vsel %vm1419, %v1380, 0
        %v1496 = vsel %vm1419, %v1381, 0
        %v1499 = vsel %vm1419, %v1382, 0
        %v1502 = vsel %vm1419, %v1383, 0
        %v1505 = vsel %vm1419, %v1384, 0
        %v1508 = vsel %vm1419, %v1385, 0
        %v1511 = vsel %vm1419, %v1414, 0
        %v1514 = vsel %vm1419, %v1415, 0
        %vm1516 = vcmask 1043456
        %v1518 = vsel %vm1516, %v1418, 0
        %1520 = vmatpush.msra.mxu0 0.0
        %1521 = vmatpush.msra.mxu0 0.0
        %1522 = vmatpush.msra.mxu0 0.0
        %1523 = vmatpush.msra.mxu0 0.0
        %1524 = vmatpush.msra.mxu0 0.0
        %1525 = vmatpush.msra.mxu0 0.0
        %1526 = vmatpush.msra.mxu0 0.0
        %1527 = vmatpush.msra.mxu0 0.0
        %1528 = vmatpush.msra.mxu0 0.0
        %1529 = vmatpush.msra.mxu0 0.0
        %1530 = vmatpush.msra.mxu0 0.0
        %1531 = vmatpush.msra.mxu0 0.0
        %1532 = vmatpush.msra.mxu0 0.0
        %1533 = vmatpush.msra.mxu0 0.0
        %1534 = vmatpush.msra.mxu0 %v1518
        %1535 = vmatpush.msra.mxu0 %v1417
        %1536 = vmatmul.f32.gmra.mxu0 %v1421
        %v1537 = vpop.f32.mrf.mxu0
        %v1538 = vadd.f32 0.0, %v1537
        %1539 = vmatmul.f32.gmra.mxu0 %v1424
        %v1540 = vpop.f32.mrf.mxu0
        %v1541 = vadd.f32 0.0, %v1540
        %1542 = vmatmul.f32.gmra.mxu0 %v1427
        %v1543 = vpop.f32.mrf.mxu0
        %v1544 = vadd.f32 0.0, %v1543
        %1545 = vmatmul.f32.gmra.mxu0 %v1430
        %v1546 = vpop.f32.mrf.mxu0
        %v1547 = vadd.f32 0.0, %v1546
        %1548 = vmatmul.f32.gmra.mxu0 %v1433
        %v1549 = vpop.f32.mrf.mxu0
        %v1550 = vadd.f32 0.0, %v1549
        %1551 = vmatmul.f32.gmra.mxu0 %v1436
        %v1552 = vpop.f32.mrf.mxu0
        %v1553 = vadd.f32 0.0, %v1552
        %1554 = vmatmul.f32.gmra.mxu0 %v1439
        %v1555 = vpop.f32.mrf.mxu0
        %v1556 = vadd.f32 0.0, %v1555
        %1557 = vmatmul.f32.gmra.mxu0 %v1442
        %v1558 = vpop.f32.mrf.mxu0
        %v1559 = vadd.f32 0.0, %v1558
        %1560 = vmatmul.f32.gmra.mxu0 %v1445
        %v1561 = vpop.f32.mrf.mxu0
        %v1562 = vadd.f32 0.0, %v1561
        %1563 = vmatmul.f32.gmra.mxu0 %v1448
        %v1564 = vpop.f32.mrf.mxu0
        %v1565 = vadd.f32 0.0, %v1564
        %1566 = vmatmul.f32.gmra.mxu0 %v1451
        %v1567 = vpop.f32.mrf.mxu0
        %v1568 = vadd.f32 0.0, %v1567
        %1569 = vmatmul.f32.gmra.mxu0 %v1454
        %v1570 = vpop.f32.mrf.mxu0
        %v1571 = vadd.f32 0.0, %v1570
        %1572 = vmatmul.f32.gmra.mxu0 %v1457
        %v1573 = vpop.f32.mrf.mxu0
        %v1574 = vadd.f32 0.0, %v1573
        %1575 = vmatmul.f32.gmra.mxu0 %v1460
        %v1576 = vpop.f32.mrf.mxu0
        %v1577 = vadd.f32 0.0, %v1576
        %1578 = vmatmul.f32.gmra.mxu0 %v1463
        %v1579 = vpop.f32.mrf.mxu0
        %v1580 = vadd.f32 0.0, %v1579
        %1581 = vmatmul.f32.gmra.mxu0 %v1466
        %v1582 = vpop.f32.mrf.mxu0
        %v1583 = vadd.f32 0.0, %v1582
        %1584 = vmatmul.f32.gmra.mxu0 %v1469
        %v1585 = vpop.f32.mrf.mxu0
        %v1586 = vadd.f32 0.0, %v1585
        %1587 = vmatmul.f32.gmra.mxu0 %v1472
        %v1588 = vpop.f32.mrf.mxu0
        %v1589 = vadd.f32 0.0, %v1588
        %1590 = vmatmul.f32.gmra.mxu0 %v1475
        %v1591 = vpop.f32.mrf.mxu0
        %v1592 = vadd.f32 0.0, %v1591
        %1593 = vmatmul.f32.gmra.mxu0 %v1478
        %v1594 = vpop.f32.mrf.mxu0
        %v1595 = vadd.f32 0.0, %v1594
        %1596 = vmatmul.f32.gmra.mxu0 %v1481
        %v1597 = vpop.f32.mrf.mxu0
        %v1598 = vadd.f32 0.0, %v1597
        %1599 = vmatmul.f32.gmra.mxu0 %v1484
        %v1600 = vpop.f32.mrf.mxu0
        %v1601 = vadd.f32 0.0, %v1600
        %1602 = vmatmul.f32.gmra.mxu0 %v1487
        %v1603 = vpop.f32.mrf.mxu0
        %v1604 = vadd.f32 0.0, %v1603
        %1605 = vmatmul.f32.gmra.mxu0 %v1490
        %v1606 = vpop.f32.mrf.mxu0
        %v1607 = vadd.f32 0.0, %v1606
        %1608 = vmatmul.f32.gmra.mxu0 %v1493
        %v1609 = vpop.f32.mrf.mxu0
        %v1610 = vadd.f32 0.0, %v1609
        %1611 = vmatmul.f32.gmra.mxu0 %v1496
        %v1612 = vpop.f32.mrf.mxu0
        %v1613 = vadd.f32 0.0, %v1612
        %1614 = vmatmul.f32.gmra.mxu0 %v1499
        %v1615 = vpop.f32.mrf.mxu0
        %v1616 = vadd.f32 0.0, %v1615
        %1617 = vmatmul.f32.gmra.mxu0 %v1502
        %v1618 = vpop.f32.mrf.mxu0
        %v1619 = vadd.f32 0.0, %v1618
        %1620 = vmatmul.f32.gmra.mxu0 %v1505
        %v1621 = vpop.f32.mrf.mxu0
        %v1622 = vadd.f32 0.0, %v1621
        %1623 = vmatmul.f32.gmra.mxu0 %v1508
        %v1624 = vpop.f32.mrf.mxu0
        %v1625 = vadd.f32 0.0, %v1624
        %1626 = vmatmul.f32.gmra.mxu0 %v1511
        %v1627 = vpop.f32.mrf.mxu0
        %v1628 = vadd.f32 0.0, %v1627
        %1629 = vmatmul.f32.gmra.mxu0 %v1514
        %v1630 = vpop.f32.mrf.mxu0
        %v1631 = vadd.f32 0.0, %v1630
        %1632 = vdwg.mxu0
        %v1634 = vsel %vm1419, %v1354, 0
        %v1637 = vsel %vm1419, %v1355, 0
        %v1640 = vsel %vm1516, %v1387, 0
        %1642 = vmatpush.msra.mxu0 0.0
        %1643 = vmatpush.msra.mxu0 0.0
        %1644 = vmatpush.msra.mxu0 0.0
        %1645 = vmatpush.msra.mxu0 0.0
        %1646 = vmatpush.msra.mxu0 0.0
        %1647 = vmatpush.msra.mxu0 0.0
        %1648 = vmatpush.msra.mxu0 0.0
        %1649 = vmatpush.msra.mxu0 0.0
        %1650 = vmatpush.msra.mxu0 0.0
        %1651 = vmatpush.msra.mxu0 0.0
        %1652 = vmatpush.msra.mxu0 0.0
        %1653 = vmatpush.msra.mxu0 0.0
        %1654 = vmatpush.msra.mxu0 0.0
        %1655 = vmatpush.msra.mxu0 0.0
        %1656 = vmatpush.msra.mxu0 %v1640
        %1657 = vmatpush.msra.mxu0 %v1386
        %1658 = vmatmul.f32.gmra.mxu0 %v1634
        %v1659 = vpop.f32.mrf.mxu0
        %v1660 = vadd.f32 %v1538, %v1659
        %1661 = vmatmul.f32.gmra.mxu0 %v1637
        %v1662 = vpop.f32.mrf.mxu0
        %v1663 = vadd.f32 %v1541, %v1662
        %1664 = vmatmul.f32.gmra.mxu0 %v1421
        %v1665 = vpop.f32.mrf.mxu0
        %v1666 = vadd.f32 %v1544, %v1665
        %1667 = vmatmul.f32.gmra.mxu0 %v1424
        %v1668 = vpop.f32.mrf.mxu0
        %v1669 = vadd.f32 %v1547, %v1668
        %1670 = vmatmul.f32.gmra.mxu0 %v1427
        %v1671 = vpop.f32.mrf.mxu0
        %v1672 = vadd.f32 %v1550, %v1671
        %1673 = vmatmul.f32.gmra.mxu0 %v1430
        %v1674 = vpop.f32.mrf.mxu0
        %v1675 = vadd.f32 %v1553, %v1674
        %1676 = vmatmul.f32.gmra.mxu0 %v1433
        %v1677 = vpop.f32.mrf.mxu0
        %v1678 = vadd.f32 %v1556, %v1677
        %1679 = vmatmul.f32.gmra.mxu0 %v1436
        %v1680 = vpop.f32.mrf.mxu0
        %v1681 = vadd.f32 %v1559, %v1680
        %1682 = vmatmul.f32.gmra.mxu0 %v1439
        %v1683 = vpop.f32.mrf.mxu0
        %v1684 = vadd.f32 %v1562, %v1683
        %1685 = vmatmul.f32.gmra.mxu0 %v1442
        %v1686 = vpop.f32.mrf.mxu0
        %v1687 = vadd.f32 %v1565, %v1686
        %1688 = vmatmul.f32.gmra.mxu0 %v1445
        %v1689 = vpop.f32.mrf.mxu0
        %v1690 = vadd.f32 %v1568, %v1689
        %1691 = vmatmul.f32.gmra.mxu0 %v1448
        %v1692 = vpop.f32.mrf.mxu0
        %v1693 = vadd.f32 %v1571, %v1692
        %1694 = vmatmul.f32.gmra.mxu0 %v1451
        %v1695 = vpop.f32.mrf.mxu0
        %v1696 = vadd.f32 %v1574, %v1695
        %1697 = vmatmul.f32.gmra.mxu0 %v1454
        %v1698 = vpop.f32.mrf.mxu0
        %v1699 = vadd.f32 %v1577, %v1698
        %1700 = vmatmul.f32.gmra.mxu0 %v1457
        %v1701 = vpop.f32.mrf.mxu0
        %v1702 = vadd.f32 %v1580, %v1701
        %1703 = vmatmul.f32.gmra.mxu0 %v1460
        %v1704 = vpop.f32.mrf.mxu0
        %v1705 = vadd.f32 %v1583, %v1704
        %1706 = vmatmul.f32.gmra.mxu0 %v1463
        %v1707 = vpop.f32.mrf.mxu0
        %v1708 = vadd.f32 %v1586, %v1707
        %1709 = vmatmul.f32.gmra.mxu0 %v1466
        %v1710 = vpop.f32.mrf.mxu0
        %v1711 = vadd.f32 %v1589, %v1710
        %1712 = vmatmul.f32.gmra.mxu0 %v1469
        %v1713 = vpop.f32.mrf.mxu0
        %v1714 = vadd.f32 %v1592, %v1713
        %1715 = vmatmul.f32.gmra.mxu0 %v1472
        %v1716 = vpop.f32.mrf.mxu0
        %v1717 = vadd.f32 %v1595, %v1716
        %1718 = vmatmul.f32.gmra.mxu0 %v1475
        %v1719 = vpop.f32.mrf.mxu0
        %v1720 = vadd.f32 %v1598, %v1719
        %1721 = vmatmul.f32.gmra.mxu0 %v1478
        %v1722 = vpop.f32.mrf.mxu0
        %v1723 = vadd.f32 %v1601, %v1722
        %1724 = vmatmul.f32.gmra.mxu0 %v1481
        %v1725 = vpop.f32.mrf.mxu0
        %v1726 = vadd.f32 %v1604, %v1725
        %1727 = vmatmul.f32.gmra.mxu0 %v1484
        %v1728 = vpop.f32.mrf.mxu0
        %v1729 = vadd.f32 %v1607, %v1728
        %1730 = vmatmul.f32.gmra.mxu0 %v1487
        %v1731 = vpop.f32.mrf.mxu0
        %v1732 = vadd.f32 %v1610, %v1731
        %1733 = vmatmul.f32.gmra.mxu0 %v1490
        %v1734 = vpop.f32.mrf.mxu0
        %v1735 = vadd.f32 %v1613, %v1734
        %1736 = vmatmul.f32.gmra.mxu0 %v1493
        %v1737 = vpop.f32.mrf.mxu0
        %v1738 = vadd.f32 %v1616, %v1737
        %1739 = vmatmul.f32.gmra.mxu0 %v1496
        %v1740 = vpop.f32.mrf.mxu0
        %v1741 = vadd.f32 %v1619, %v1740
        %1742 = vmatmul.f32.gmra.mxu0 %v1499
        %v1743 = vpop.f32.mrf.mxu0
        %v1744 = vadd.f32 %v1622, %v1743
        %1745 = vmatmul.f32.gmra.mxu0 %v1502
        %v1746 = vpop.f32.mrf.mxu0
        %v1747 = vadd.f32 %v1625, %v1746
        %1748 = vmatmul.f32.gmra.mxu0 %v1505
        %v1749 = vpop.f32.mrf.mxu0
        %v1750 = vadd.f32 %v1628, %v1749
        %1751 = vmatmul.f32.gmra.mxu0 %v1508
        %v1752 = vpop.f32.mrf.mxu0
        %v1753 = vadd.f32 %v1631, %v1752
        %1754 = vdwg.mxu0
        %s1755 = scalar_lea.vmem %s1, 32
        %v1756 = vld [vmem:[%s1755] sm:$0xff]
        %v1757 = vld [vmem:[%s1755 + $0x8] sm:$0xf]
        %v1759 = vsel %vm1516, %v1757, 0
        %1761 = vmatpush.msra.mxu0 0.0
        %1762 = vmatpush.msra.mxu0 0.0
        %1763 = vmatpush.msra.mxu0 0.0
        %1764 = vmatpush.msra.mxu0 0.0
        %1765 = vmatpush.msra.mxu0 0.0
        %1766 = vmatpush.msra.mxu0 0.0
        %1767 = vmatpush.msra.mxu0 0.0
        %1768 = vmatpush.msra.mxu0 0.0
        %1769 = vmatpush.msra.mxu0 0.0
        %1770 = vmatpush.msra.mxu0 0.0
        %1771 = vmatpush.msra.mxu0 0.0
        %1772 = vmatpush.msra.mxu0 0.0
        %1773 = vmatpush.msra.mxu0 0.0
        %1774 = vmatpush.msra.mxu0 0.0
        %1775 = vmatpush.msra.mxu0 %v1759
        %1776 = vmatpush.msra.mxu0 %v1756
        %1777 = vmatmul.f32.gmra.mxu0 %v1427
        %v1778 = vpop.f32.mrf.mxu0
        %v1779 = vadd.f32 0.0, %v1778
        %1780 = vmatmul.f32.gmra.mxu0 %v1430
        %v1781 = vpop.f32.mrf.mxu0
        %v1782 = vadd.f32 0.0, %v1781
        %1783 = vmatmul.f32.gmra.mxu0 %v1433
        %v1784 = vpop.f32.mrf.mxu0
        %v1785 = vadd.f32 0.0, %v1784
        %1786 = vmatmul.f32.gmra.mxu0 %v1436
        %v1787 = vpop.f32.mrf.mxu0
        %v1788 = vadd.f32 0.0, %v1787
        %1789 = vmatmul.f32.gmra.mxu0 %v1439
        %v1790 = vpop.f32.mrf.mxu0
        %v1791 = vadd.f32 0.0, %v1790
        %1792 = vmatmul.f32.gmra.mxu0 %v1442
        %v1793 = vpop.f32.mrf.mxu0
        %v1794 = vadd.f32 0.0, %v1793
        %1795 = vmatmul.f32.gmra.mxu0 %v1445
        %v1796 = vpop.f32.mrf.mxu0
        %v1797 = vadd.f32 0.0, %v1796
        %1798 = vmatmul.f32.gmra.mxu0 %v1448
        %v1799 = vpop.f32.mrf.mxu0
        %v1800 = vadd.f32 0.0, %v1799
        %1801 = vmatmul.f32.gmra.mxu0 %v1451
        %v1802 = vpop.f32.mrf.mxu0
        %v1803 = vadd.f32 0.0, %v1802
        %1804 = vmatmul.f32.gmra.mxu0 %v1454
        %v1805 = vpop.f32.mrf.mxu0
        %v1806 = vadd.f32 0.0, %v1805
        %1807 = vmatmul.f32.gmra.mxu0 %v1457
        %v1808 = vpop.f32.mrf.mxu0
        %v1809 = vadd.f32 0.0, %v1808
        %1810 = vmatmul.f32.gmra.mxu0 %v1460
        %v1811 = vpop.f32.mrf.mxu0
        %v1812 = vadd.f32 0.0, %v1811
        %1813 = vmatmul.f32.gmra.mxu0 %v1463
        %v1814 = vpop.f32.mrf.mxu0
        %v1815 = vadd.f32 0.0, %v1814
        %1816 = vmatmul.f32.gmra.mxu0 %v1466
        %v1817 = vpop.f32.mrf.mxu0
        %v1818 = vadd.f32 0.0, %v1817
        %1819 = vmatmul.f32.gmra.mxu0 %v1469
        %v1820 = vpop.f32.mrf.mxu0
        %v1821 = vadd.f32 0.0, %v1820
        %1822 = vmatmul.f32.gmra.mxu0 %v1472
        %v1823 = vpop.f32.mrf.mxu0
        %v1824 = vadd.f32 0.0, %v1823
        %1825 = vmatmul.f32.gmra.mxu0 %v1475
        %v1826 = vpop.f32.mrf.mxu0
        %v1827 = vadd.f32 0.0, %v1826
        %1828 = vmatmul.f32.gmra.mxu0 %v1478
        %v1829 = vpop.f32.mrf.mxu0
        %v1830 = vadd.f32 0.0, %v1829
        %1831 = vmatmul.f32.gmra.mxu0 %v1481
        %v1832 = vpop.f32.mrf.mxu0
        %v1833 = vadd.f32 0.0, %v1832
        %1834 = vmatmul.f32.gmra.mxu0 %v1484
        %v1835 = vpop.f32.mrf.mxu0
        %v1836 = vadd.f32 0.0, %v1835
        %1837 = vmatmul.f32.gmra.mxu0 %v1487
        %v1838 = vpop.f32.mrf.mxu0
        %v1839 = vadd.f32 0.0, %v1838
        %1840 = vmatmul.f32.gmra.mxu0 %v1490
        %v1841 = vpop.f32.mrf.mxu0
        %v1842 = vadd.f32 0.0, %v1841
        %1843 = vmatmul.f32.gmra.mxu0 %v1493
        %v1844 = vpop.f32.mrf.mxu0
        %v1845 = vadd.f32 0.0, %v1844
        %1846 = vmatmul.f32.gmra.mxu0 %v1496
        %v1847 = vpop.f32.mrf.mxu0
        %v1848 = vadd.f32 0.0, %v1847
        %1849 = vmatmul.f32.gmra.mxu0 %v1499
        %v1850 = vpop.f32.mrf.mxu0
        %v1851 = vadd.f32 0.0, %v1850
        %1852 = vmatmul.f32.gmra.mxu0 %v1502
        %v1853 = vpop.f32.mrf.mxu0
        %v1854 = vadd.f32 0.0, %v1853
        %1855 = vmatmul.f32.gmra.mxu0 %v1505
        %v1856 = vpop.f32.mrf.mxu0
        %v1857 = vadd.f32 0.0, %v1856
        %1858 = vmatmul.f32.gmra.mxu0 %v1508
        %v1859 = vpop.f32.mrf.mxu0
        %v1860 = vadd.f32 0.0, %v1859
        %1861 = vmatmul.f32.gmra.mxu0 %v1511
        %v1862 = vpop.f32.mrf.mxu0
        %v1863 = vadd.f32 0.0, %v1862
        %1864 = vmatmul.f32.gmra.mxu0 %v1514
        %v1865 = vpop.f32.mrf.mxu0
        %v1866 = vadd.f32 0.0, %v1865
        %1867 = vmatmul.f32.gmra.mxu0 %v1634
        %v1868 = vpop.f32.mrf.mxu0
        %v1869 = vadd.f32 0.0, %v1868
        %1870 = vmatmul.f32.gmra.mxu0 %v1637
        %v1871 = vpop.f32.mrf.mxu0
        %v1872 = vadd.f32 0.0, %v1871
        %1873 = vdwg.mxu0
        %v1874 = vadd.f32 %v1660, %v1779
        %v1875 = vadd.f32 %v1663, %v1782
        %v1876 = vadd.f32 %v1666, %v1785
        %v1877 = vadd.f32 %v1669, %v1788
        %v1878 = vadd.f32 %v1672, %v1791
        %v1879 = vadd.f32 %v1675, %v1794
        %v1880 = vadd.f32 %v1678, %v1797
        %v1881 = vadd.f32 %v1681, %v1800
        %v1882 = vadd.f32 %v1684, %v1803
        %v1883 = vadd.f32 %v1687, %v1806
        %v1884 = vadd.f32 %v1690, %v1809
        %v1885 = vadd.f32 %v1693, %v1812
        %v1886 = vadd.f32 %v1696, %v1815
        %v1887 = vadd.f32 %v1699, %v1818
        %v1888 = vadd.f32 %v1702, %v1821
        %v1889 = vadd.f32 %v1705, %v1824
        %v1890 = vadd.f32 %v1708, %v1827
        %v1891 = vadd.f32 %v1711, %v1830
        %v1892 = vadd.f32 %v1714, %v1833
        %v1893 = vadd.f32 %v1717, %v1836
        %v1894 = vadd.f32 %v1720, %v1839
        %v1895 = vadd.f32 %v1723, %v1842
        %v1896 = vadd.f32 %v1726, %v1845
        %v1897 = vadd.f32 %v1729, %v1848
        %v1898 = vadd.f32 %v1732, %v1851
        %v1899 = vadd.f32 %v1735, %v1854
        %v1900 = vadd.f32 %v1738, %v1857
        %v1901 = vadd.f32 %v1741, %v1860
        %v1902 = vadd.f32 %v1744, %v1863
        %v1903 = vadd.f32 %v1747, %v1866
        %v1904 = vadd.f32 %v1750, %v1869
        %v1905 = vadd.f32 %v1753, %v1872
        %v1906 = vld [vmem:[%s2] sm:$0x1]
        %v1908 = vperm.slane %v1906, 0
        %v1910 = vadd.f32 %v1874, %v1908
        %v1911 = vadd.f32 %v1875, %v1908
        %v1912 = vadd.f32 %v1876, %v1908
        %v1913 = vadd.f32 %v1877, %v1908
        %v1914 = vadd.f32 %v1878, %v1908
        %v1915 = vadd.f32 %v1879, %v1908
        %v1916 = vadd.f32 %v1880, %v1908
        %v1917 = vadd.f32 %v1881, %v1908
        %v1918 = vadd.f32 %v1882, %v1908
        %v1919 = vadd.f32 %v1883, %v1908
        %v1920 = vadd.f32 %v1884, %v1908
        %v1921 = vadd.f32 %v1885, %v1908
        %v1922 = vadd.f32 %v1886, %v1908
        %v1923 = vadd.f32 %v1887, %v1908
        %v1924 = vadd.f32 %v1888, %v1908
        %v1925 = vadd.f32 %v1889, %v1908
        %v1926 = vadd.f32 %v1890, %v1908
        %v1927 = vadd.f32 %v1891, %v1908
        %v1928 = vadd.f32 %v1892, %v1908
        %v1929 = vadd.f32 %v1893, %v1908
        %v1930 = vadd.f32 %v1894, %v1908
        %v1931 = vadd.f32 %v1895, %v1908
        %v1932 = vadd.f32 %v1896, %v1908
        %v1933 = vadd.f32 %v1897, %v1908
        %v1934 = vadd.f32 %v1898, %v1908
        %v1935 = vadd.f32 %v1899, %v1908
        %v1936 = vadd.f32 %v1900, %v1908
        %v1937 = vadd.f32 %v1901, %v1908
        %v1938 = vadd.f32 %v1902, %v1908
        %v1939 = vadd.f32 %v1903, %v1908
        %v1940 = vadd.f32 %v1904, %v1908
        %v1941 = vadd.f32 %v1905, %v1908
        %vm1942 = vcmp.gt.f32.partialorder %v1910, 0.0
        %vm1943 = vcmp.gt.f32.partialorder %v1911, 0.0
        %vm1944 = vcmp.gt.f32.partialorder %v1912, 0.0
        %vm1945 = vcmp.gt.f32.partialorder %v1913, 0.0
        %vm1946 = vcmp.gt.f32.partialorder %v1914, 0.0
        %vm1947 = vcmp.gt.f32.partialorder %v1915, 0.0
        %vm1948 = vcmp.gt.f32.partialorder %v1916, 0.0
        %vm1949 = vcmp.gt.f32.partialorder %v1917, 0.0
        %vm1950 = vcmp.gt.f32.partialorder %v1918, 0.0
        %vm1951 = vcmp.gt.f32.partialorder %v1919, 0.0
        %vm1952 = vcmp.gt.f32.partialorder %v1920, 0.0
        %vm1953 = vcmp.gt.f32.partialorder %v1921, 0.0
        %vm1954 = vcmp.gt.f32.partialorder %v1922, 0.0
        %vm1955 = vcmp.gt.f32.partialorder %v1923, 0.0
        %vm1956 = vcmp.gt.f32.partialorder %v1924, 0.0
        %vm1957 = vcmp.gt.f32.partialorder %v1925, 0.0
        %vm1958 = vcmp.gt.f32.partialorder %v1926, 0.0
        %vm1959 = vcmp.gt.f32.partialorder %v1927, 0.0
        %vm1960 = vcmp.gt.f32.partialorder %v1928, 0.0
        %vm1961 = vcmp.gt.f32.partialorder %v1929, 0.0
        %vm1962 = vcmp.gt.f32.partialorder %v1930, 0.0
        %vm1963 = vcmp.gt.f32.partialorder %v1931, 0.0
        %vm1964 = vcmp.gt.f32.partialorder %v1932, 0.0
        %vm1965 = vcmp.gt.f32.partialorder %v1933, 0.0
        %vm1966 = vcmp.gt.f32.partialorder %v1934, 0.0
        %vm1967 = vcmp.gt.f32.partialorder %v1935, 0.0
        %vm1968 = vcmp.gt.f32.partialorder %v1936, 0.0
        %vm1969 = vcmp.gt.f32.partialorder %v1937, 0.0
        %vm1970 = vcmp.gt.f32.partialorder %v1938, 0.0
        %vm1971 = vcmp.gt.f32.partialorder %v1939, 0.0
        %vm1972 = vcmp.gt.f32.partialorder %v1940, 0.0
        %vm1973 = vcmp.gt.f32.partialorder %v1941, 0.0
        %v1974 = vmul.f32 %v1910, 0.2
        %v1975 = vmul.f32 %v1911, 0.2
        %v1976 = vmul.f32 %v1912, 0.2
        %v1977 = vmul.f32 %v1913, 0.2
        %v1978 = vmul.f32 %v1914, 0.2
        %v1979 = vmul.f32 %v1915, 0.2
        %v1980 = vmul.f32 %v1916, 0.2
        %v1981 = vmul.f32 %v1917, 0.2
        %v1982 = vmul.f32 %v1918, 0.2
        %v1983 = vmul.f32 %v1919, 0.2
        %v1984 = vmul.f32 %v1920, 0.2
        %v1985 = vmul.f32 %v1921, 0.2
        %v1986 = vmul.f32 %v1922, 0.2
        %v1987 = vmul.f32 %v1923, 0.2
        %v1988 = vmul.f32 %v1924, 0.2
        %v1989 = vmul.f32 %v1925, 0.2
        %v1990 = vmul.f32 %v1926, 0.2
        %v1991 = vmul.f32 %v1927, 0.2
        %v1992 = vmul.f32 %v1928, 0.2
        %v1993 = vmul.f32 %v1929, 0.2
        %v1994 = vmul.f32 %v1930, 0.2
        %v1995 = vmul.f32 %v1931, 0.2
        %v1996 = vmul.f32 %v1932, 0.2
        %v1997 = vmul.f32 %v1933, 0.2
        %v1998 = vmul.f32 %v1934, 0.2
        %v1999 = vmul.f32 %v1935, 0.2
        %v2000 = vmul.f32 %v1936, 0.2
        %v2001 = vmul.f32 %v1937, 0.2
        %v2002 = vmul.f32 %v1938, 0.2
        %v2003 = vmul.f32 %v1939, 0.2
        %v2004 = vmul.f32 %v1940, 0.2
        %v2005 = vmul.f32 %v1941, 0.2
        %v2006 = vsel %vm1942, %v1910, %v1974
        %v2007 = vsel %vm1943, %v1911, %v1975
        %v2008 = vsel %vm1944, %v1912, %v1976
        %v2009 = vsel %vm1945, %v1913, %v1977
        %v2010 = vsel %vm1946, %v1914, %v1978
        %v2011 = vsel %vm1947, %v1915, %v1979
        %v2012 = vsel %vm1948, %v1916, %v1980
        %v2013 = vsel %vm1949, %v1917, %v1981
        %v2014 = vsel %vm1950, %v1918, %v1982
        %v2015 = vsel %vm1951, %v1919, %v1983
        %v2016 = vsel %vm1952, %v1920, %v1984
        %v2017 = vsel %vm1953, %v1921, %v1985
        %v2018 = vsel %vm1954, %v1922, %v1986
        %v2019 = vsel %vm1955, %v1923, %v1987
        %v2020 = vsel %vm1956, %v1924, %v1988
        %v2021 = vsel %vm1957, %v1925, %v1989
        %v2022 = vsel %vm1958, %v1926, %v1990
        %v2023 = vsel %vm1959, %v1927, %v1991
        %v2024 = vsel %vm1960, %v1928, %v1992
        %v2025 = vsel %vm1961, %v1929, %v1993
        %v2026 = vsel %vm1962, %v1930, %v1994
        %v2027 = vsel %vm1963, %v1931, %v1995
        %v2028 = vsel %vm1964, %v1932, %v1996
        %v2029 = vsel %vm1965, %v1933, %v1997
        %v2030 = vsel %vm1966, %v1934, %v1998
        %v2031 = vsel %vm1967, %v1935, %v1999
        %v2032 = vsel %vm1968, %v1936, %v2000
        %v2033 = vsel %vm1969, %v1937, %v2001
        %v2034 = vsel %vm1970, %v1938, %v2002
        %v2035 = vsel %vm1971, %v1939, %v2003
        %v2036 = vsel %vm1972, %v1940, %v2004
        %v2037 = vsel %vm1973, %v1941, %v2005
        %v2070 = vrot.slane %v2006, 7
        %v2071 = vrot.slane %v2007, 7
        %v2072 = vsel %vm799, %v2070, %v2071
        %v2073 = vrot.slane %v2008, 7
        %v2074 = vrot.slane %v2009, 7
        %v2075 = vsel %vm799, %v2073, %v2074
        %v2076 = vrot.slane %v2010, 7
        %v2077 = vrot.slane %v2011, 7
        %v2078 = vsel %vm799, %v2076, %v2077
        %v2079 = vrot.slane %v2012, 7
        %v2080 = vrot.slane %v2013, 7
        %v2081 = vsel %vm799, %v2079, %v2080
        %v2082 = vrot.slane %v2014, 7
        %v2083 = vrot.slane %v2015, 7
        %v2084 = vsel %vm799, %v2082, %v2083
        %v2085 = vrot.slane %v2016, 7
        %v2086 = vrot.slane %v2017, 7
        %v2087 = vsel %vm799, %v2085, %v2086
        %v2088 = vrot.slane %v2018, 7
        %v2089 = vrot.slane %v2019, 7
        %v2090 = vsel %vm799, %v2088, %v2089
        %v2091 = vrot.slane %v2020, 7
        %v2092 = vrot.slane %v2021, 7
        %v2093 = vsel %vm799, %v2091, %v2092
        %v2094 = vrot.slane %v2022, 7
        %v2095 = vrot.slane %v2023, 7
        %v2096 = vsel %vm799, %v2094, %v2095
        %v2097 = vrot.slane %v2024, 7
        %v2098 = vrot.slane %v2025, 7
        %v2099 = vsel %vm799, %v2097, %v2098
        %v2100 = vrot.slane %v2026, 7
        %v2101 = vrot.slane %v2027, 7
        %v2102 = vsel %vm799, %v2100, %v2101
        %v2103 = vrot.slane %v2028, 7
        %v2104 = vrot.slane %v2029, 7
        %v2105 = vsel %vm799, %v2103, %v2104
        %v2106 = vrot.slane %v2030, 7
        %v2107 = vrot.slane %v2031, 7
        %v2108 = vsel %vm799, %v2106, %v2107
        %v2109 = vrot.slane %v2032, 7
        %v2110 = vrot.slane %v2033, 7
        %v2111 = vsel %vm799, %v2109, %v2110
        %v2112 = vrot.slane %v2034, 7
        %v2113 = vrot.slane %v2035, 7
        %v2114 = vsel %vm799, %v2112, %v2113
        %v2115 = vrot.slane %v2036, 7
        %v2116 = vrot.slane %v2037, 7
        %v2117 = vsel %vm799, %v2115, %v2116
        %v2166 = vsel %vm799, 0.0, %v2070
        %v2167 = vsel %vm799, 0.0, %v2073
        %v2168 = vsel %vm799, 0.0, %v2076
        %v2169 = vsel %vm799, 0.0, %v2079
        %v2170 = vsel %vm799, 0.0, %v2082
        %v2171 = vsel %vm799, 0.0, %v2085
        %v2172 = vsel %vm799, 0.0, %v2088
        %v2173 = vsel %vm799, 0.0, %v2091
        %v2174 = vsel %vm799, 0.0, %v2094
        %v2175 = vsel %vm799, 0.0, %v2097
        %v2176 = vsel %vm799, 0.0, %v2100
        %v2177 = vsel %vm799, 0.0, %v2103
        %v2178 = vsel %vm799, 0.0, %v2106
        %v2179 = vsel %vm799, 0.0, %v2109
        %v2180 = vsel %vm799, 0.0, %v2112
        %v2181 = vsel %vm799, 0.0, %v2115
        %v2182 = vsel %vm799, %v2071, 0.0
        %v2183 = vsel %vm799, %v2074, 0.0
        %v2184 = vsel %vm799, %v2077, 0.0
        %v2185 = vsel %vm799, %v2080, 0.0
        %v2186 = vsel %vm799, %v2083, 0.0
        %v2187 = vsel %vm799, %v2086, 0.0
        %v2188 = vsel %vm799, %v2089, 0.0
        %v2189 = vsel %vm799, %v2092, 0.0
        %v2190 = vsel %vm799, %v2095, 0.0
        %v2191 = vsel %vm799, %v2098, 0.0
        %v2192 = vsel %vm799, %v2101, 0.0
        %v2193 = vsel %vm799, %v2104, 0.0
        %v2194 = vsel %vm799, %v2107, 0.0
        %v2195 = vsel %vm799, %v2110, 0.0
        %v2196 = vsel %vm799, %v2113, 0.0
        %v2197 = vsel %vm799, %v2116, 0.0
        %v2228 = vrot.slane %v2166, 1
        %v2229 = vrot.slane %v2072, 1
        %v2230 = vsel %vm966, %v2228, %v2229
        %v2231 = vrot.slane %v2182, 1
        %v2232 = vsel %vm966, %v2229, %v2231
        %v2233 = vrot.slane %v2167, 1
        %v2234 = vrot.slane %v2075, 1
        %v2235 = vsel %vm966, %v2233, %v2234
        %v2236 = vrot.slane %v2183, 1
        %v2237 = vsel %vm966, %v2234, %v2236
        %v2238 = vrot.slane %v2168, 1
        %v2239 = vrot.slane %v2078, 1
        %v2240 = vsel %vm966, %v2238, %v2239
        %v2241 = vrot.slane %v2184, 1
        %v2242 = vsel %vm966, %v2239, %v2241
        %v2243 = vrot.slane %v2169, 1
        %v2244 = vrot.slane %v2081, 1
        %v2245 = vsel %vm966, %v2243, %v2244
        %v2246 = vrot.slane %v2185, 1
        %v2247 = vsel %vm966, %v2244, %v2246
        %v2248 = vrot.slane %v2170, 1
        %v2249 = vrot.slane %v2084, 1
        %v2250 = vsel %vm966, %v2248, %v2249
        %v2251 = vrot.slane %v2186, 1
        %v2252 = vsel %vm966, %v2249, %v2251
        %v2253 = vrot.slane %v2171, 1
        %v2254 = vrot.slane %v2087, 1
        %v2255 = vsel %vm966, %v2253, %v2254
        %v2256 = vrot.slane %v2187, 1
        %v2257 = vsel %vm966, %v2254, %v2256
        %v2258 = vrot.slane %v2172, 1
        %v2259 = vrot.slane %v2090, 1
        %v2260 = vsel %vm966, %v2258, %v2259
        %v2261 = vrot.slane %v2188, 1
        %v2262 = vsel %vm966, %v2259, %v2261
        %v2263 = vrot.slane %v2173, 1
        %v2264 = vrot.slane %v2093, 1
        %v2265 = vsel %vm966, %v2263, %v2264
        %v2266 = vrot.slane %v2189, 1
        %v2267 = vsel %vm966, %v2264, %v2266
        %v2268 = vrot.slane %v2174, 1
        %v2269 = vrot.slane %v2096, 1
        %v2270 = vsel %vm966, %v2268, %v2269
        %v2271 = vrot.slane %v2190, 1
        %v2272 = vsel %vm966, %v2269, %v2271
        %v2273 = vrot.slane %v2175, 1
        %v2274 = vrot.slane %v2099, 1
        %v2275 = vsel %vm966, %v2273, %v2274
        %v2276 = vrot.slane %v2191, 1
        %v2277 = vsel %vm966, %v2274, %v2276
        %v2278 = vrot.slane %v2176, 1
        %v2279 = vrot.slane %v2102, 1
        %v2280 = vsel %vm966, %v2278, %v2279
        %v2281 = vrot.slane %v2192, 1
        %v2282 = vsel %vm966, %v2279, %v2281
        %v2283 = vrot.slane %v2177, 1
        %v2284 = vrot.slane %v2105, 1
        %v2285 = vsel %vm966, %v2283, %v2284
        %v2286 = vrot.slane %v2193, 1
        %v2287 = vsel %vm966, %v2284, %v2286
        %v2288 = vrot.slane %v2178, 1
        %v2289 = vrot.slane %v2108, 1
        %v2290 = vsel %vm966, %v2288, %v2289
        %v2291 = vrot.slane %v2194, 1
        %v2292 = vsel %vm966, %v2289, %v2291
        %v2293 = vrot.slane %v2179, 1
        %v2294 = vrot.slane %v2111, 1
        %v2295 = vsel %vm966, %v2293, %v2294
        %v2296 = vrot.slane %v2195, 1
        %v2297 = vsel %vm966, %v2294, %v2296
        %v2298 = vrot.slane %v2180, 1
        %v2299 = vrot.slane %v2114, 1
        %v2300 = vsel %vm966, %v2298, %v2299
        %v2301 = vrot.slane %v2196, 1
        %v2302 = vsel %vm966, %v2299, %v2301
        %2303 = vrot.lane.b32.xlu0 %v969, 8
        %v2304 = vpop.permute.xlu0 %2303
        %2305 = vrot.lane.b32.xlu0 %v971, 8
        %v2306 = vpop.permute.xlu0 %2305
        %2307 = vrot.lane.b32.xlu0 %v2230, 8
        %v2308 = vpop.permute.xlu0 %2307
        %2309 = vrot.lane.b32.xlu0 %v2232, 8
        %v2310 = vpop.permute.xlu0 %2309
        %2311 = vrot.lane.b32.xlu0 %v2235, 8
        %v2312 = vpop.permute.xlu0 %2311
        %2313 = vrot.lane.b32.xlu0 %v2237, 8
        %v2314 = vpop.permute.xlu0 %2313
        %2315 = vrot.lane.b32.xlu0 %v2240, 8
        %v2316 = vpop.permute.xlu0 %2315
        %2317 = vrot.lane.b32.xlu0 %v2242, 8
        %v2318 = vpop.permute.xlu0 %2317
        %2319 = vrot.lane.b32.xlu0 %v2245, 8
        %v2320 = vpop.permute.xlu0 %2319
        %2321 = vrot.lane.b32.xlu0 %v2247, 8
        %v2322 = vpop.permute.xlu0 %2321
        %2323 = vrot.lane.b32.xlu0 %v2250, 8
        %v2324 = vpop.permute.xlu0 %2323
        %2325 = vrot.lane.b32.xlu0 %v2252, 8
        %v2326 = vpop.permute.xlu0 %2325
        %2327 = vrot.lane.b32.xlu0 %v2255, 8
        %v2328 = vpop.permute.xlu0 %2327
        %2329 = vrot.lane.b32.xlu0 %v2257, 8
        %v2330 = vpop.permute.xlu0 %2329
        %2331 = vrot.lane.b32.xlu0 %v2260, 8
        %v2332 = vpop.permute.xlu0 %2331
        %2333 = vrot.lane.b32.xlu0 %v2262, 8
        %v2334 = vpop.permute.xlu0 %2333
        %2335 = vrot.lane.b32.xlu0 %v2265, 8
        %v2336 = vpop.permute.xlu0 %2335
        %2337 = vrot.lane.b32.xlu0 %v2267, 8
        %v2338 = vpop.permute.xlu0 %2337
        %2339 = vrot.lane.b32.xlu0 %v2270, 8
        %v2340 = vpop.permute.xlu0 %2339
        %2341 = vrot.lane.b32.xlu0 %v2272, 8
        %v2342 = vpop.permute.xlu0 %2341
        %2343 = vrot.lane.b32.xlu0 %v2275, 8
        %v2344 = vpop.permute.xlu0 %2343
        %2345 = vrot.lane.b32.xlu0 %v2277, 8
        %v2346 = vpop.permute.xlu0 %2345
        %2347 = vrot.lane.b32.xlu0 %v2280, 8
        %v2348 = vpop.permute.xlu0 %2347
        %2349 = vrot.lane.b32.xlu0 %v2282, 8
        %v2350 = vpop.permute.xlu0 %2349
        %2351 = vrot.lane.b32.xlu0 %v2285, 8
        %v2352 = vpop.permute.xlu0 %2351
        %2353 = vrot.lane.b32.xlu0 %v2287, 8
        %v2354 = vpop.permute.xlu0 %2353
        %2355 = vrot.lane.b32.xlu0 %v2290, 8
        %v2356 = vpop.permute.xlu0 %2355
        %2357 = vrot.lane.b32.xlu0 %v2292, 8
        %v2358 = vpop.permute.xlu0 %2357
        %2359 = vrot.lane.b32.xlu0 %v2295, 8
        %v2360 = vpop.permute.xlu0 %2359
        %2361 = vrot.lane.b32.xlu0 %v2297, 8
        %v2362 = vpop.permute.xlu0 %2361
        %2363 = vrot.lane.b32.xlu0 %v2300, 8
        %v2364 = vpop.permute.xlu0 %2363
        %2365 = vrot.lane.b32.xlu0 %v2302, 8
        %v2366 = vpop.permute.xlu0 %2365
        %v2399 = vrot.slane %v2166, 2
        %v2400 = vrot.slane %v2072, 2
        %v2401 = vsel %vm1143, %v2399, %v2400
        %v2402 = vrot.slane %v2182, 2
        %v2403 = vsel %vm1143, %v2400, %v2402
        %v2404 = vrot.slane %v2167, 2
        %v2405 = vrot.slane %v2075, 2
        %v2406 = vsel %vm1143, %v2404, %v2405
        %v2407 = vrot.slane %v2183, 2
        %v2408 = vsel %vm1143, %v2405, %v2407
        %v2409 = vrot.slane %v2168, 2
        %v2410 = vrot.slane %v2078, 2
        %v2411 = vsel %vm1143, %v2409, %v2410
        %v2412 = vrot.slane %v2184, 2
        %v2413 = vsel %vm1143, %v2410, %v2412
        %v2414 = vrot.slane %v2169, 2
        %v2415 = vrot.slane %v2081, 2
        %v2416 = vsel %vm1143, %v2414, %v2415
        %v2417 = vrot.slane %v2185, 2
        %v2418 = vsel %vm1143, %v2415, %v2417
        %v2419 = vrot.slane %v2170, 2
        %v2420 = vrot.slane %v2084, 2
        %v2421 = vsel %vm1143, %v2419, %v2420
        %v2422 = vrot.slane %v2186, 2
        %v2423 = vsel %vm1143, %v2420, %v2422
        %v2424 = vrot.slane %v2171, 2
        %v2425 = vrot.slane %v2087, 2
        %v2426 = vsel %vm1143, %v2424, %v2425
        %v2427 = vrot.slane %v2187, 2
        %v2428 = vsel %vm1143, %v2425, %v2427
        %v2429 = vrot.slane %v2172, 2
        %v2430 = vrot.slane %v2090, 2
        %v2431 = vsel %vm1143, %v2429, %v2430
        %v2432 = vrot.slane %v2188, 2
        %v2433 = vsel %vm1143, %v2430, %v2432
        %v2434 = vrot.slane %v2173, 2
        %v2435 = vrot.slane %v2093, 2
        %v2436 = vsel %vm1143, %v2434, %v2435
        %v2437 = vrot.slane %v2189, 2
        %v2438 = vsel %vm1143, %v2435, %v2437
        %v2439 = vrot.slane %v2174, 2
        %v2440 = vrot.slane %v2096, 2
        %v2441 = vsel %vm1143, %v2439, %v2440
        %v2442 = vrot.slane %v2190, 2
        %v2443 = vsel %vm1143, %v2440, %v2442
        %v2444 = vrot.slane %v2175, 2
        %v2445 = vrot.slane %v2099, 2
        %v2446 = vsel %vm1143, %v2444, %v2445
        %v2447 = vrot.slane %v2191, 2
        %v2448 = vsel %vm1143, %v2445, %v2447
        %v2449 = vrot.slane %v2176, 2
        %v2450 = vrot.slane %v2102, 2
        %v2451 = vsel %vm1143, %v2449, %v2450
        %v2452 = vrot.slane %v2192, 2
        %v2453 = vsel %vm1143, %v2450, %v2452
        %v2454 = vrot.slane %v2177, 2
        %v2455 = vrot.slane %v2105, 2
        %v2456 = vsel %vm1143, %v2454, %v2455
        %v2457 = vrot.slane %v2193, 2
        %v2458 = vsel %vm1143, %v2455, %v2457
        %v2459 = vrot.slane %v2178, 2
        %v2460 = vrot.slane %v2108, 2
        %v2461 = vsel %vm1143, %v2459, %v2460
        %v2462 = vrot.slane %v2194, 2
        %v2463 = vsel %vm1143, %v2460, %v2462
        %v2464 = vrot.slane %v2179, 2
        %v2465 = vrot.slane %v2111, 2
        %v2466 = vsel %vm1143, %v2464, %v2465
        %v2467 = vrot.slane %v2195, 2
        %v2468 = vsel %vm1143, %v2465, %v2467
        %v2469 = vrot.slane %v2180, 2
        %v2470 = vrot.slane %v2114, 2
        %v2471 = vsel %vm1143, %v2469, %v2470
        %v2472 = vrot.slane %v2196, 2
        %v2473 = vsel %vm1143, %v2470, %v2472
        %2474 = vrot.lane.b32.xlu0 %v1146, 16
        %v2475 = vpop.permute.xlu0 %2474
        %2476 = vrot.lane.b32.xlu0 %v1148, 16
        %v2477 = vpop.permute.xlu0 %2476
        %2478 = vrot.lane.b32.xlu0 %v2401, 16
        %v2479 = vpop.permute.xlu0 %2478
        %2480 = vrot.lane.b32.xlu0 %v2403, 16
        %v2481 = vpop.permute.xlu0 %2480
        %2482 = vrot.lane.b32.xlu0 %v2406, 16
        %v2483 = vpop.permute.xlu0 %2482
        %2484 = vrot.lane.b32.xlu0 %v2408, 16
        %v2485 = vpop.permute.xlu0 %2484
        %2486 = vrot.lane.b32.xlu0 %v2411, 16
        %v2487 = vpop.permute.xlu0 %2486
        %2488 = vrot.lane.b32.xlu0 %v2413, 16
        %v2489 = vpop.permute.xlu0 %2488
        %2490 = vrot.lane.b32.xlu0 %v2416, 16
        %v2491 = vpop.permute.xlu0 %2490
        %2492 = vrot.lane.b32.xlu0 %v2418, 16
        %v2493 = vpop.permute.xlu0 %2492
        %2494 = vrot.lane.b32.xlu0 %v2421, 16
        %v2495 = vpop.permute.xlu0 %2494
        %2496 = vrot.lane.b32.xlu0 %v2423, 16
        %v2497 = vpop.permute.xlu0 %2496
        %2498 = vrot.lane.b32.xlu0 %v2426, 16
        %v2499 = vpop.permute.xlu0 %2498
        %2500 = vrot.lane.b32.xlu0 %v2428, 16
        %v2501 = vpop.permute.xlu0 %2500
        %2502 = vrot.lane.b32.xlu0 %v2431, 16
        %v2503 = vpop.permute.xlu0 %2502
        %2504 = vrot.lane.b32.xlu0 %v2433, 16
        %v2505 = vpop.permute.xlu0 %2504
        %2506 = vrot.lane.b32.xlu0 %v2436, 16
        %v2507 = vpop.permute.xlu0 %2506
        %2508 = vrot.lane.b32.xlu0 %v2438, 16
        %v2509 = vpop.permute.xlu0 %2508
        %2510 = vrot.lane.b32.xlu0 %v2441, 16
        %v2511 = vpop.permute.xlu0 %2510
        %2512 = vrot.lane.b32.xlu0 %v2443, 16
        %v2513 = vpop.permute.xlu0 %2512
        %2514 = vrot.lane.b32.xlu0 %v2446, 16
        %v2515 = vpop.permute.xlu0 %2514
        %2516 = vrot.lane.b32.xlu0 %v2448, 16
        %v2517 = vpop.permute.xlu0 %2516
        %2518 = vrot.lane.b32.xlu0 %v2451, 16
        %v2519 = vpop.permute.xlu0 %2518
        %2520 = vrot.lane.b32.xlu0 %v2453, 16
        %v2521 = vpop.permute.xlu0 %2520
        %2522 = vrot.lane.b32.xlu0 %v2456, 16
        %v2523 = vpop.permute.xlu0 %2522
        %2524 = vrot.lane.b32.xlu0 %v2458, 16
        %v2525 = vpop.permute.xlu0 %2524
        %2526 = vrot.lane.b32.xlu0 %v2461, 16
        %v2527 = vpop.permute.xlu0 %2526
        %2528 = vrot.lane.b32.xlu0 %v2463, 16
        %v2529 = vpop.permute.xlu0 %2528
        %2530 = vrot.lane.b32.xlu0 %v2466, 16
        %v2531 = vpop.permute.xlu0 %2530
        %2532 = vrot.lane.b32.xlu0 %v2468, 16
        %v2533 = vpop.permute.xlu0 %2532
        %2534 = vrot.lane.b32.xlu0 %v2471, 16
        %v2535 = vpop.permute.xlu0 %2534
        %2536 = vrot.lane.b32.xlu0 %v2473, 16
        %v2537 = vpop.permute.xlu0 %2536
        %v2570 = vsel %vm1353, %v900, %v2304
        %v2571 = vsel %vm1353, %v801, %v2306
        %v2572 = vsel %vm1353, %v2166, %v2308
        %v2573 = vsel %vm1353, %v2072, %v2310
        %v2574 = vsel %vm1353, %v2167, %v2312
        %v2575 = vsel %vm1353, %v2075, %v2314
        %v2576 = vsel %vm1353, %v2168, %v2316
        %v2577 = vsel %vm1353, %v2078, %v2318
        %v2578 = vsel %vm1353, %v2169, %v2320
        %v2579 = vsel %vm1353, %v2081, %v2322
        %v2580 = vsel %vm1353, %v2170, %v2324
        %v2581 = vsel %vm1353, %v2084, %v2326
        %v2582 = vsel %vm1353, %v2171, %v2328
        %v2583 = vsel %vm1353, %v2087, %v2330
        %v2584 = vsel %vm1353, %v2172, %v2332
        %v2585 = vsel %vm1353, %v2090, %v2334
        %v2586 = vsel %vm1353, %v2173, %v2336
        %v2587 = vsel %vm1353, %v2093, %v2338
        %v2588 = vsel %vm1353, %v2174, %v2340
        %v2589 = vsel %vm1353, %v2096, %v2342
        %v2590 = vsel %vm1353, %v2175, %v2344
        %v2591 = vsel %vm1353, %v2099, %v2346
        %v2592 = vsel %vm1353, %v2176, %v2348
        %v2593 = vsel %vm1353, %v2102, %v2350
        %v2594 = vsel %vm1353, %v2177, %v2352
        %v2595 = vsel %vm1353, %v2105, %v2354
        %v2596 = vsel %vm1353, %v2178, %v2356
        %v2597 = vsel %vm1353, %v2108, %v2358
        %v2598 = vsel %vm1353, %v2179, %v2360
        %v2599 = vsel %vm1353, %v2111, %v2362
        %v2600 = vsel %vm1353, %v2180, %v2364
        %v2601 = vsel %vm1353, %v2114, %v2366
        %vm2602 = vcmask 130048
        %v2603 = vsel %vm2602, %v2570, %v2475
        %v2604 = vsel %vm2602, %v2571, %v2477
        %v2605 = vsel %vm2602, %v2572, %v2479
        %v2606 = vsel %vm2602, %v2573, %v2481
        %v2607 = vsel %vm2602, %v2574, %v2483
        %v2608 = vsel %vm2602, %v2575, %v2485
        %v2609 = vsel %vm2602, %v2576, %v2487
        %v2610 = vsel %vm2602, %v2577, %v2489
        %v2611 = vsel %vm2602, %v2578, %v2491
        %v2612 = vsel %vm2602, %v2579, %v2493
        %v2613 = vsel %vm2602, %v2580, %v2495
        %v2614 = vsel %vm2602, %v2581, %v2497
        %v2615 = vsel %vm2602, %v2582, %v2499
        %v2616 = vsel %vm2602, %v2583, %v2501
        %v2617 = vsel %vm2602, %v2584, %v2503
        %v2618 = vsel %vm2602, %v2585, %v2505
        %v2619 = vsel %vm2602, %v2586, %v2507
        %v2620 = vsel %vm2602, %v2587, %v2509
        %v2621 = vsel %vm2602, %v2588, %v2511
        %v2622 = vsel %vm2602, %v2589, %v2513
        %v2623 = vsel %vm2602, %v2590, %v2515
        %v2624 = vsel %vm2602, %v2591, %v2517
        %v2625 = vsel %vm2602, %v2592, %v2519
        %v2626 = vsel %vm2602, %v2593, %v2521
        %v2627 = vsel %vm2602, %v2594, %v2523
        %v2628 = vsel %vm2602, %v2595, %v2525
        %v2629 = vsel %vm2602, %v2596, %v2527
        %v2630 = vsel %vm2602, %v2597, %v2529
        %v2631 = vsel %vm2602, %v2598, %v2531
        %v2632 = vsel %vm2602, %v2599, %v2533
        %v2633 = vsel %vm2602, %v2600, %v2535
        %v2634 = vsel %vm2602, %v2601, %v2537
        %v2635 = vld [vmem:[%s3] sm:$0xff]
        %v2636 = vld [vmem:[%s3 + $0x8] sm:$0xff]
        %v2637 = vld [vmem:[%s3 + $0x10] sm:$0xff]
        %v2640 = vrot.slane %v2181, 1
        %v2641 = vrot.slane %v2117, 1
        %v2642 = vsel %vm966, %v2640, %v2641
        %v2643 = vrot.slane %v2197, 1
        %v2644 = vsel %vm966, %v2641, %v2643
        %2645 = vrot.lane.b32.xlu0 %v2642, 8
        %v2646 = vpop.permute.xlu0 %2645
        %2647 = vrot.lane.b32.xlu0 %v2644, 8
        %v2648 = vpop.permute.xlu0 %2647
        %v2651 = vrot.slane %v2181, 2
        %v2652 = vrot.slane %v2117, 2
        %v2653 = vsel %vm1143, %v2651, %v2652
        %v2654 = vrot.slane %v2197, 2
        %v2655 = vsel %vm1143, %v2652, %v2654
        %2656 = vrot.lane.b32.xlu0 %v2653, 16
        %v2657 = vpop.permute.xlu0 %2656
        %2658 = vrot.lane.b32.xlu0 %v2655, 16
        %v2659 = vpop.permute.xlu0 %2658
        %v2662 = vsel %vm1353, %v2181, %v2646
        %v2663 = vsel %vm1353, %v2117, %v2648
        %v2664 = vsel %vm2602, %v2662, %v2657
        %v2665 = vsel %vm2602, %v2663, %v2659
        %s2666 = scalar_lea.vmem %s3, 24
        %v2667 = vld [vmem:[%s2666] sm:$0xff]
        %v2668 = vld [vmem:[%s2666 + $0x8] sm:$0xff]
        %v2669 = vld [vmem:[%s2666 + $0x10] sm:$0xff]
        %vm2670 = vcmask 195584
        %v2672 = vsel %vm2670, %v2605, 0
        %v2675 = vsel %vm2670, %v2606, 0
        %v2678 = vsel %vm2670, %v2607, 0
        %v2681 = vsel %vm2670, %v2608, 0
        %v2684 = vsel %vm2670, %v2609, 0
        %v2687 = vsel %vm2670, %v2610, 0
        %v2690 = vsel %vm2670, %v2611, 0
        %v2693 = vsel %vm2670, %v2612, 0
        %v2696 = vsel %vm2670, %v2613, 0
        %v2699 = vsel %vm2670, %v2614, 0
        %v2702 = vsel %vm2670, %v2615, 0
        %v2705 = vsel %vm2670, %v2616, 0
        %v2708 = vsel %vm2670, %v2617, 0
        %v2711 = vsel %vm2670, %v2618, 0
        %v2714 = vsel %vm2670, %v2619, 0
        %v2717 = vsel %vm2670, %v2620, 0
        %v2720 = vsel %vm2670, %v2621, 0
        %v2723 = vsel %vm2670, %v2622, 0
        %v2726 = vsel %vm2670, %v2623, 0
        %v2729 = vsel %vm2670, %v2624, 0
        %v2732 = vsel %vm2670, %v2625, 0
        %v2735 = vsel %vm2670, %v2626, 0
        %v2738 = vsel %vm2670, %v2627, 0
        %v2741 = vsel %vm2670, %v2628, 0
        %v2744 = vsel %vm2670, %v2629, 0
        %v2747 = vsel %vm2670, %v2630, 0
        %v2750 = vsel %vm2670, %v2631, 0
        %v2753 = vsel %vm2670, %v2632, 0
        %v2756 = vsel %vm2670, %v2633, 0
        %v2759 = vsel %vm2670, %v2634, 0
        %v2762 = vsel %vm2670, %v2664, 0
        %v2765 = vsel %vm2670, %v2665, 0
        %2767 = vmatpush.msra.mxu0 0.0
        %2768 = vmatpush.msra.mxu0 0.0
        %2769 = vmatpush.msra.mxu0 0.0
        %2770 = vmatpush.msra.mxu0 0.0
        %2771 = vmatpush.msra.mxu0 0.0
        %2772 = vmatpush.msra.mxu0 0.0
        %2773 = vmatpush.msra.mxu0 0.0
        %2774 = vmatpush.msra.mxu0 0.0
        %2775 = vmatpush.msra.mxu0 0.0
        %2776 = vmatpush.msra.mxu0 0.0
        %2777 = vmatpush.msra.mxu0 0.0
        %2778 = vmatpush.msra.mxu0 0.0
        %2779 = vmatpush.msra.mxu0 0.0
        %2780 = vmatpush.msra.mxu0 %v2669
        %2781 = vmatpush.msra.mxu0 %v2668
        %2782 = vmatpush.msra.mxu0 %v2667
        %2783 = vmatmul.f32.gmra.mxu0 %v2672
        %v2784 = vpop.f32.mrf.mxu0
        %v2785 = vadd.f32 0.0, %v2784
        %2786 = vmatmul.f32.gmra.mxu0 %v2675
        %v2787 = vpop.f32.mrf.mxu0
        %v2788 = vadd.f32 0.0, %v2787
        %2789 = vmatmul.f32.gmra.mxu0 %v2678
        %v2790 = vpop.f32.mrf.mxu0
        %v2791 = vadd.f32 0.0, %v2790
        %2792 = vmatmul.f32.gmra.mxu0 %v2681
        %v2793 = vpop.f32.mrf.mxu0
        %v2794 = vadd.f32 0.0, %v2793
        %2795 = vmatmul.f32.gmra.mxu0 %v2684
        %v2796 = vpop.f32.mrf.mxu0
        %v2797 = vadd.f32 0.0, %v2796
        %2798 = vmatmul.f32.gmra.mxu0 %v2687
        %v2799 = vpop.f32.mrf.mxu0
        %v2800 = vadd.f32 0.0, %v2799
        %2801 = vmatmul.f32.gmra.mxu0 %v2690
        %v2802 = vpop.f32.mrf.mxu0
        %v2803 = vadd.f32 0.0, %v2802
        %2804 = vmatmul.f32.gmra.mxu0 %v2693
        %v2805 = vpop.f32.mrf.mxu0
        %v2806 = vadd.f32 0.0, %v2805
        %2807 = vmatmul.f32.gmra.mxu0 %v2696
        %v2808 = vpop.f32.mrf.mxu0
        %v2809 = vadd.f32 0.0, %v2808
        %2810 = vmatmul.f32.gmra.mxu0 %v2699
        %v2811 = vpop.f32.mrf.mxu0
        %v2812 = vadd.f32 0.0, %v2811
        %2813 = vmatmul.f32.gmra.mxu0 %v2702
        %v2814 = vpop.f32.mrf.mxu0
        %v2815 = vadd.f32 0.0, %v2814
        %2816 = vmatmul.f32.gmra.mxu0 %v2705
        %v2817 = vpop.f32.mrf.mxu0
        %v2818 = vadd.f32 0.0, %v2817
        %2819 = vmatmul.f32.gmra.mxu0 %v2708
        %v2820 = vpop.f32.mrf.mxu0
        %v2821 = vadd.f32 0.0, %v2820
        %2822 = vmatmul.f32.gmra.mxu0 %v2711
        %v2823 = vpop.f32.mrf.mxu0
        %v2824 = vadd.f32 0.0, %v2823
        %2825 = vmatmul.f32.gmra.mxu0 %v2714
        %v2826 = vpop.f32.mrf.mxu0
        %v2827 = vadd.f32 0.0, %v2826
        %2828 = vmatmul.f32.gmra.mxu0 %v2717
        %v2829 = vpop.f32.mrf.mxu0
        %v2830 = vadd.f32 0.0, %v2829
        %2831 = vmatmul.f32.gmra.mxu0 %v2720
        %v2832 = vpop.f32.mrf.mxu0
        %v2833 = vadd.f32 0.0, %v2832
        %2834 = vmatmul.f32.gmra.mxu0 %v2723
        %v2835 = vpop.f32.mrf.mxu0
        %v2836 = vadd.f32 0.0, %v2835
        %2837 = vmatmul.f32.gmra.mxu0 %v2726
        %v2838 = vpop.f32.mrf.mxu0
        %v2839 = vadd.f32 0.0, %v2838
        %2840 = vmatmul.f32.gmra.mxu0 %v2729
        %v2841 = vpop.f32.mrf.mxu0
        %v2842 = vadd.f32 0.0, %v2841
        %2843 = vmatmul.f32.gmra.mxu0 %v2732
        %v2844 = vpop.f32.mrf.mxu0
        %v2845 = vadd.f32 0.0, %v2844
        %2846 = vmatmul.f32.gmra.mxu0 %v2735
        %v2847 = vpop.f32.mrf.mxu0
        %v2848 = vadd.f32 0.0, %v2847
        %2849 = vmatmul.f32.gmra.mxu0 %v2738
        %v2850 = vpop.f32.mrf.mxu0
        %v2851 = vadd.f32 0.0, %v2850
        %2852 = vmatmul.f32.gmra.mxu0 %v2741
        %v2853 = vpop.f32.mrf.mxu0
        %v2854 = vadd.f32 0.0, %v2853
        %2855 = vmatmul.f32.gmra.mxu0 %v2744
        %v2856 = vpop.f32.mrf.mxu0
        %v2857 = vadd.f32 0.0, %v2856
        %2858 = vmatmul.f32.gmra.mxu0 %v2747
        %v2859 = vpop.f32.mrf.mxu0
        %v2860 = vadd.f32 0.0, %v2859
        %2861 = vmatmul.f32.gmra.mxu0 %v2750
        %v2862 = vpop.f32.mrf.mxu0
        %v2863 = vadd.f32 0.0, %v2862
        %2864 = vmatmul.f32.gmra.mxu0 %v2753
        %v2865 = vpop.f32.mrf.mxu0
        %v2866 = vadd.f32 0.0, %v2865
        %2867 = vmatmul.f32.gmra.mxu0 %v2756
        %v2868 = vpop.f32.mrf.mxu0
        %v2869 = vadd.f32 0.0, %v2868
        %2870 = vmatmul.f32.gmra.mxu0 %v2759
        %v2871 = vpop.f32.mrf.mxu0
        %v2872 = vadd.f32 0.0, %v2871
        %2873 = vmatmul.f32.gmra.mxu0 %v2762
        %v2874 = vpop.f32.mrf.mxu0
        %v2875 = vadd.f32 0.0, %v2874
        %2876 = vmatmul.f32.gmra.mxu0 %v2765
        %v2877 = vpop.f32.mrf.mxu0
        %v2878 = vadd.f32 0.0, %v2877
        %2879 = vdwg.mxu0
        %v2881 = vsel %vm2670, %v2603, 0
        %v2884 = vsel %vm2670, %v2604, 0
        %2886 = vmatpush.msra.mxu0 0.0
        %2887 = vmatpush.msra.mxu0 0.0
        %2888 = vmatpush.msra.mxu0 0.0
        %2889 = vmatpush.msra.mxu0 0.0
        %2890 = vmatpush.msra.mxu0 0.0
        %2891 = vmatpush.msra.mxu0 0.0
        %2892 = vmatpush.msra.mxu0 0.0
        %2893 = vmatpush.msra.mxu0 0.0
        %2894 = vmatpush.msra.mxu0 0.0
        %2895 = vmatpush.msra.mxu0 0.0
        %2896 = vmatpush.msra.mxu0 0.0
        %2897 = vmatpush.msra.mxu0 0.0
        %2898 = vmatpush.msra.mxu0 0.0
        %2899 = vmatpush.msra.mxu0 %v2637
        %2900 = vmatpush.msra.mxu0 %v2636
        %2901 = vmatpush.msra.mxu0 %v2635
        %2902 = vmatmul.f32.gmra.mxu0 %v2881
        %v2903 = vpop.f32.mrf.mxu0
        %v2904 = vadd.f32 %v2785, %v2903
        %2905 = vmatmul.f32.gmra.mxu0 %v2884
        %v2906 = vpop.f32.mrf.mxu0
        %v2907 = vadd.f32 %v2788, %v2906
        %2908 = vmatmul.f32.gmra.mxu0 %v2672
        %v2909 = vpop.f32.mrf.mxu0
        %v2910 = vadd.f32 %v2791, %v2909
        %2911 = vmatmul.f32.gmra.mxu0 %v2675
        %v2912 = vpop.f32.mrf.mxu0
        %v2913 = vadd.f32 %v2794, %v2912
        %2914 = vmatmul.f32.gmra.mxu0 %v2678
        %v2915 = vpop.f32.mrf.mxu0
        %v2916 = vadd.f32 %v2797, %v2915
        %2917 = vmatmul.f32.gmra.mxu0 %v2681
        %v2918 = vpop.f32.mrf.mxu0
        %v2919 = vadd.f32 %v2800, %v2918
        %2920 = vmatmul.f32.gmra.mxu0 %v2684
        %v2921 = vpop.f32.mrf.mxu0
        %v2922 = vadd.f32 %v2803, %v2921
        %2923 = vmatmul.f32.gmra.mxu0 %v2687
        %v2924 = vpop.f32.mrf.mxu0
        %v2925 = vadd.f32 %v2806, %v2924
        %2926 = vmatmul.f32.gmra.mxu0 %v2690
        %v2927 = vpop.f32.mrf.mxu0
        %v2928 = vadd.f32 %v2809, %v2927
        %2929 = vmatmul.f32.gmra.mxu0 %v2693
        %v2930 = vpop.f32.mrf.mxu0
        %v2931 = vadd.f32 %v2812, %v2930
        %2932 = vmatmul.f32.gmra.mxu0 %v2696
        %v2933 = vpop.f32.mrf.mxu0
        %v2934 = vadd.f32 %v2815, %v2933
        %2935 = vmatmul.f32.gmra.mxu0 %v2699
        %v2936 = vpop.f32.mrf.mxu0
        %v2937 = vadd.f32 %v2818, %v2936
        %2938 = vmatmul.f32.gmra.mxu0 %v2702
        %v2939 = vpop.f32.mrf.mxu0
        %v2940 = vadd.f32 %v2821, %v2939
        %2941 = vmatmul.f32.gmra.mxu0 %v2705
        %v2942 = vpop.f32.mrf.mxu0
        %v2943 = vadd.f32 %v2824, %v2942
        %2944 = vmatmul.f32.gmra.mxu0 %v2708
        %v2945 = vpop.f32.mrf.mxu0
        %v2946 = vadd.f32 %v2827, %v2945
        %2947 = vmatmul.f32.gmra.mxu0 %v2711
        %v2948 = vpop.f32.mrf.mxu0
        %v2949 = vadd.f32 %v2830, %v2948
        %2950 = vmatmul.f32.gmra.mxu0 %v2714
        %v2951 = vpop.f32.mrf.mxu0
        %v2952 = vadd.f32 %v2833, %v2951
        %2953 = vmatmul.f32.gmra.mxu0 %v2717
        %v2954 = vpop.f32.mrf.mxu0
        %v2955 = vadd.f32 %v2836, %v2954
        %2956 = vmatmul.f32.gmra.mxu0 %v2720
        %v2957 = vpop.f32.mrf.mxu0
        %v2958 = vadd.f32 %v2839, %v2957
        %2959 = vmatmul.f32.gmra.mxu0 %v2723
        %v2960 = vpop.f32.mrf.mxu0
        %v2961 = vadd.f32 %v2842, %v2960
        %2962 = vmatmul.f32.gmra.mxu0 %v2726
        %v2963 = vpop.f32.mrf.mxu0
        %v2964 = vadd.f32 %v2845, %v2963
        %2965 = vmatmul.f32.gmra.mxu0 %v2729
        %v2966 = vpop.f32.mrf.mxu0
        %v2967 = vadd.f32 %v2848, %v2966
        %2968 = vmatmul.f32.gmra.mxu0 %v2732
        %v2969 = vpop.f32.mrf.mxu0
        %v2970 = vadd.f32 %v2851, %v2969
        %2971 = vmatmul.f32.gmra.mxu0 %v2735
        %v2972 = vpop.f32.mrf.mxu0
        %v2973 = vadd.f32 %v2854, %v2972
        %2974 = vmatmul.f32.gmra.mxu0 %v2738
        %v2975 = vpop.f32.mrf.mxu0
        %v2976 = vadd.f32 %v2857, %v2975
        %2977 = vmatmul.f32.gmra.mxu0 %v2741
        %v2978 = vpop.f32.mrf.mxu0
        %v2979 = vadd.f32 %v2860, %v2978
        %2980 = vmatmul.f32.gmra.mxu0 %v2744
        %v2981 = vpop.f32.mrf.mxu0
        %v2982 = vadd.f32 %v2863, %v2981
        %2983 = vmatmul.f32.gmra.mxu0 %v2747
        %v2984 = vpop.f32.mrf.mxu0
        %v2985 = vadd.f32 %v2866, %v2984
        %2986 = vmatmul.f32.gmra.mxu0 %v2750
        %v2987 = vpop.f32.mrf.mxu0
        %v2988 = vadd.f32 %v2869, %v2987
        %2989 = vmatmul.f32.gmra.mxu0 %v2753
        %v2990 = vpop.f32.mrf.mxu0
        %v2991 = vadd.f32 %v2872, %v2990
        %2992 = vmatmul.f32.gmra.mxu0 %v2756
        %v2993 = vpop.f32.mrf.mxu0
        %v2994 = vadd.f32 %v2875, %v2993
        %2995 = vmatmul.f32.gmra.mxu0 %v2759
        %v2996 = vpop.f32.mrf.mxu0
        %v2997 = vadd.f32 %v2878, %v2996
        %2998 = vdwg.mxu0
        %s2999 = scalar_lea.vmem %s3, 48
        %v3000 = vld [vmem:[%s2999] sm:$0xff]
        %v3001 = vld [vmem:[%s2999 + $0x8] sm:$0xff]
        %v3002 = vld [vmem:[%s2999 + $0x10] sm:$0xff]
        %3003 = vmatpush.msra.mxu0 0.0
        %3004 = vmatpush.msra.mxu0 0.0
        %3005 = vmatpush.msra.mxu0 0.0
        %3006 = vmatpush.msra.mxu0 0.0
        %3007 = vmatpush.msra.mxu0 0.0
        %3008 = vmatpush.msra.mxu0 0.0
        %3009 = vmatpush.msra.mxu0 0.0
        %3010 = vmatpush.msra.mxu0 0.0
        %3011 = vmatpush.msra.mxu0 0.0
        %3012 = vmatpush.msra.mxu0 0.0
        %3013 = vmatpush.msra.mxu0 0.0
        %3014 = vmatpush.msra.mxu0 0.0
        %3015 = vmatpush.msra.mxu0 0.0
        %3016 = vmatpush.msra.mxu0 %v3002
        %3017 = vmatpush.msra.mxu0 %v3001
        %3018 = vmatpush.msra.mxu0 %v3000
        %3019 = vmatmul.f32.gmra.mxu0 %v2678
        %v3020 = vpop.f32.mrf.mxu0
        %v3021 = vadd.f32 0.0, %v3020
        %3022 = vmatmul.f32.gmra.mxu0 %v2681
        %v3023 = vpop.f32.mrf.mxu0
        %v3024 = vadd.f32 0.0, %v3023
        %3025 = vmatmul.f32.gmra.mxu0 %v2684
        %v3026 = vpop.f32.mrf.mxu0
        %v3027 = vadd.f32 0.0, %v3026
        %3028 = vmatmul.f32.gmra.mxu0 %v2687
        %v3029 = vpop.f32.mrf.mxu0
        %v3030 = vadd.f32 0.0, %v3029
        %3031 = vmatmul.f32.gmra.mxu0 %v2690
        %v3032 = vpop.f32.mrf.mxu0
        %v3033 = vadd.f32 0.0, %v3032
        %3034 = vmatmul.f32.gmra.mxu0 %v2693
        %v3035 = vpop.f32.mrf.mxu0
        %v3036 = vadd.f32 0.0, %v3035
        %3037 = vmatmul.f32.gmra.mxu0 %v2696
        %v3038 = vpop.f32.mrf.mxu0
        %v3039 = vadd.f32 0.0, %v3038
        %3040 = vmatmul.f32.gmra.mxu0 %v2699
        %v3041 = vpop.f32.mrf.mxu0
        %v3042 = vadd.f32 0.0, %v3041
        %3043 = vmatmul.f32.gmra.mxu0 %v2702
        %v3044 = vpop.f32.mrf.mxu0
        %v3045 = vadd.f32 0.0, %v3044
        %3046 = vmatmul.f32.gmra.mxu0 %v2705
        %v3047 = vpop.f32.mrf.mxu0
        %v3048 = vadd.f32 0.0, %v3047
        %3049 = vmatmul.f32.gmra.mxu0 %v2708
        %v3050 = vpop.f32.mrf.mxu0
        %v3051 = vadd.f32 0.0, %v3050
        %3052 = vmatmul.f32.gmra.mxu0 %v2711
        %v3053 = vpop.f32.mrf.mxu0
        %v3054 = vadd.f32 0.0, %v3053
        %3055 = vmatmul.f32.gmra.mxu0 %v2714
        %v3056 = vpop.f32.mrf.mxu0
        %v3057 = vadd.f32 0.0, %v3056
        %3058 = vmatmul.f32.gmra.mxu0 %v2717
        %v3059 = vpop.f32.mrf.mxu0
        %v3060 = vadd.f32 0.0, %v3059
        %3061 = vmatmul.f32.gmra.mxu0 %v2720
        %v3062 = vpop.f32.mrf.mxu0
        %v3063 = vadd.f32 0.0, %v3062
        %3064 = vmatmul.f32.gmra.mxu0 %v2723
        %v3065 = vpop.f32.mrf.mxu0
        %v3066 = vadd.f32 0.0, %v3065
        %3067 = vmatmul.f32.gmra.mxu0 %v2726
        %v3068 = vpop.f32.mrf.mxu0
        %v3069 = vadd.f32 0.0, %v3068
        %3070 = vmatmul.f32.gmra.mxu0 %v2729
        %v3071 = vpop.f32.mrf.mxu0
        %v3072 = vadd.f32 0.0, %v3071
        %3073 = vmatmul.f32.gmra.mxu0 %v2732
        %v3074 = vpop.f32.mrf.mxu0
        %v3075 = vadd.f32 0.0, %v3074
        %3076 = vmatmul.f32.gmra.mxu0 %v2735
        %v3077 = vpop.f32.mrf.mxu0
        %v3078 = vadd.f32 0.0, %v3077
        %3079 = vmatmul.f32.gmra.mxu0 %v2738
        %v3080 = vpop.f32.mrf.mxu0
        %v3081 = vadd.f32 0.0, %v3080
        %3082 = vmatmul.f32.gmra.mxu0 %v2741
        %v3083 = vpop.f32.mrf.mxu0
        %v3084 = vadd.f32 0.0, %v3083
        %3085 = vmatmul.f32.gmra.mxu0 %v2744
        %v3086 = vpop.f32.mrf.mxu0
        %v3087 = vadd.f32 0.0, %v3086
        %3088 = vmatmul.f32.gmra.mxu0 %v2747
        %v3089 = vpop.f32.mrf.mxu0
        %v3090 = vadd.f32 0.0, %v3089
        %3091 = vmatmul.f32.gmra.mxu0 %v2750
        %v3092 = vpop.f32.mrf.mxu0
        %v3093 = vadd.f32 0.0, %v3092
        %3094 = vmatmul.f32.gmra.mxu0 %v2753
        %v3095 = vpop.f32.mrf.mxu0
        %v3096 = vadd.f32 0.0, %v3095
        %3097 = vmatmul.f32.gmra.mxu0 %v2756
        %v3098 = vpop.f32.mrf.mxu0
        %v3099 = vadd.f32 0.0, %v3098
        %3100 = vmatmul.f32.gmra.mxu0 %v2759
        %v3101 = vpop.f32.mrf.mxu0
        %v3102 = vadd.f32 0.0, %v3101
        %3103 = vmatmul.f32.gmra.mxu0 %v2762
        %v3104 = vpop.f32.mrf.mxu0
        %v3105 = vadd.f32 0.0, %v3104
        %3106 = vmatmul.f32.gmra.mxu0 %v2765
        %v3107 = vpop.f32.mrf.mxu0
        %v3108 = vadd.f32 0.0, %v3107
        %3109 = vmatmul.f32.gmra.mxu0 %v2881
        %v3110 = vpop.f32.mrf.mxu0
        %v3111 = vadd.f32 0.0, %v3110
        %3112 = vmatmul.f32.gmra.mxu0 %v2884
        %v3113 = vpop.f32.mrf.mxu0
        %v3114 = vadd.f32 0.0, %v3113
        %3115 = vdwg.mxu0
        %v3116 = vadd.f32 %v2904, %v3021
        %v3117 = vadd.f32 %v2907, %v3024
        %v3118 = vadd.f32 %v2910, %v3027
        %v3119 = vadd.f32 %v2913, %v3030
        %v3120 = vadd.f32 %v2916, %v3033
        %v3121 = vadd.f32 %v2919, %v3036
        %v3122 = vadd.f32 %v2922, %v3039
        %v3123 = vadd.f32 %v2925, %v3042
        %v3124 = vadd.f32 %v2928, %v3045
        %v3125 = vadd.f32 %v2931, %v3048
        %v3126 = vadd.f32 %v2934, %v3051
        %v3127 = vadd.f32 %v2937, %v3054
        %v3128 = vadd.f32 %v2940, %v3057
        %v3129 = vadd.f32 %v2943, %v3060
        %v3130 = vadd.f32 %v2946, %v3063
        %v3131 = vadd.f32 %v2949, %v3066
        %v3132 = vadd.f32 %v2952, %v3069
        %v3133 = vadd.f32 %v2955, %v3072
        %v3134 = vadd.f32 %v2958, %v3075
        %v3135 = vadd.f32 %v2961, %v3078
        %v3136 = vadd.f32 %v2964, %v3081
        %v3137 = vadd.f32 %v2967, %v3084
        %v3138 = vadd.f32 %v2970, %v3087
        %v3139 = vadd.f32 %v2973, %v3090
        %v3140 = vadd.f32 %v2976, %v3093
        %v3141 = vadd.f32 %v2979, %v3096
        %v3142 = vadd.f32 %v2982, %v3099
        %v3143 = vadd.f32 %v2985, %v3102
        %v3144 = vadd.f32 %v2988, %v3105
        %v3145 = vadd.f32 %v2991, %v3108
        %v3146 = vadd.f32 %v2994, %v3111
        %v3147 = vadd.f32 %v2997, %v3114
        %v3148 = vld [vmem:[%s4] sm:$0x1]
        %v3150 = vperm.slane %v3148, 0
        %v3152 = vadd.f32 %v3116, %v3150
        %v3153 = vadd.f32 %v3117, %v3150
        %v3154 = vadd.f32 %v3118, %v3150
        %v3155 = vadd.f32 %v3119, %v3150
        %v3156 = vadd.f32 %v3120, %v3150
        %v3157 = vadd.f32 %v3121, %v3150
        %v3158 = vadd.f32 %v3122, %v3150
        %v3159 = vadd.f32 %v3123, %v3150
        %v3160 = vadd.f32 %v3124, %v3150
        %v3161 = vadd.f32 %v3125, %v3150
        %v3162 = vadd.f32 %v3126, %v3150
        %v3163 = vadd.f32 %v3127, %v3150
        %v3164 = vadd.f32 %v3128, %v3150
        %v3165 = vadd.f32 %v3129, %v3150
        %v3166 = vadd.f32 %v3130, %v3150
        %v3167 = vadd.f32 %v3131, %v3150
        %v3168 = vadd.f32 %v3132, %v3150
        %v3169 = vadd.f32 %v3133, %v3150
        %v3170 = vadd.f32 %v3134, %v3150
        %v3171 = vadd.f32 %v3135, %v3150
        %v3172 = vadd.f32 %v3136, %v3150
        %v3173 = vadd.f32 %v3137, %v3150
        %v3174 = vadd.f32 %v3138, %v3150
        %v3175 = vadd.f32 %v3139, %v3150
        %v3176 = vadd.f32 %v3140, %v3150
        %v3177 = vadd.f32 %v3141, %v3150
        %v3178 = vadd.f32 %v3142, %v3150
        %v3179 = vadd.f32 %v3143, %v3150
        %v3180 = vadd.f32 %v3144, %v3150
        %v3181 = vadd.f32 %v3145, %v3150
        %v3182 = vadd.f32 %v3146, %v3150
        %v3183 = vadd.f32 %v3147, %v3150
        %vm3184 = vcmp.gt.f32.partialorder %v3152, 0.0
        %vm3185 = vcmp.gt.f32.partialorder %v3153, 0.0
        %vm3186 = vcmp.gt.f32.partialorder %v3154, 0.0
        %vm3187 = vcmp.gt.f32.partialorder %v3155, 0.0
        %vm3188 = vcmp.gt.f32.partialorder %v3156, 0.0
        %vm3189 = vcmp.gt.f32.partialorder %v3157, 0.0
        %vm3190 = vcmp.gt.f32.partialorder %v3158, 0.0
        %vm3191 = vcmp.gt.f32.partialorder %v3159, 0.0
        %vm3192 = vcmp.gt.f32.partialorder %v3160, 0.0
        %vm3193 = vcmp.gt.f32.partialorder %v3161, 0.0
        %vm3194 = vcmp.gt.f32.partialorder %v3162, 0.0
        %vm3195 = vcmp.gt.f32.partialorder %v3163, 0.0
        %vm3196 = vcmp.gt.f32.partialorder %v3164, 0.0
        %vm3197 = vcmp.gt.f32.partialorder %v3165, 0.0
        %vm3198 = vcmp.gt.f32.partialorder %v3166, 0.0
        %vm3199 = vcmp.gt.f32.partialorder %v3167, 0.0
        %vm3200 = vcmp.gt.f32.partialorder %v3168, 0.0
        %vm3201 = vcmp.gt.f32.partialorder %v3169, 0.0
        %vm3202 = vcmp.gt.f32.partialorder %v3170, 0.0
        %vm3203 = vcmp.gt.f32.partialorder %v3171, 0.0
        %vm3204 = vcmp.gt.f32.partialorder %v3172, 0.0
        %vm3205 = vcmp.gt.f32.partialorder %v3173, 0.0
        %vm3206 = vcmp.gt.f32.partialorder %v3174, 0.0
        %vm3207 = vcmp.gt.f32.partialorder %v3175, 0.0
        %vm3208 = vcmp.gt.f32.partialorder %v3176, 0.0
        %vm3209 = vcmp.gt.f32.partialorder %v3177, 0.0
        %vm3210 = vcmp.gt.f32.partialorder %v3178, 0.0
        %vm3211 = vcmp.gt.f32.partialorder %v3179, 0.0
        %vm3212 = vcmp.gt.f32.partialorder %v3180, 0.0
        %vm3213 = vcmp.gt.f32.partialorder %v3181, 0.0
        %vm3214 = vcmp.gt.f32.partialorder %v3182, 0.0
        %vm3215 = vcmp.gt.f32.partialorder %v3183, 0.0
        %v3216 = vmul.f32 %v3152, 0.2
        %v3217 = vmul.f32 %v3153, 0.2
        %v3218 = vmul.f32 %v3154, 0.2
        %v3219 = vmul.f32 %v3155, 0.2
        %v3220 = vmul.f32 %v3156, 0.2
        %v3221 = vmul.f32 %v3157, 0.2
        %v3222 = vmul.f32 %v3158, 0.2
        %v3223 = vmul.f32 %v3159, 0.2
        %v3224 = vmul.f32 %v3160, 0.2
        %v3225 = vmul.f32 %v3161, 0.2
        %v3226 = vmul.f32 %v3162, 0.2
        %v3227 = vmul.f32 %v3163, 0.2
        %v3228 = vmul.f32 %v3164, 0.2
        %v3229 = vmul.f32 %v3165, 0.2
        %v3230 = vmul.f32 %v3166, 0.2
        %v3231 = vmul.f32 %v3167, 0.2
        %v3232 = vmul.f32 %v3168, 0.2
        %v3233 = vmul.f32 %v3169, 0.2
        %v3234 = vmul.f32 %v3170, 0.2
        %v3235 = vmul.f32 %v3171, 0.2
        %v3236 = vmul.f32 %v3172, 0.2
        %v3237 = vmul.f32 %v3173, 0.2
        %v3238 = vmul.f32 %v3174, 0.2
        %v3239 = vmul.f32 %v3175, 0.2
        %v3240 = vmul.f32 %v3176, 0.2
        %v3241 = vmul.f32 %v3177, 0.2
        %v3242 = vmul.f32 %v3178, 0.2
        %v3243 = vmul.f32 %v3179, 0.2
        %v3244 = vmul.f32 %v3180, 0.2
        %v3245 = vmul.f32 %v3181, 0.2
        %v3246 = vmul.f32 %v3182, 0.2
        %v3247 = vmul.f32 %v3183, 0.2
        %v3248 = vsel %vm3184, %v3152, %v3216
        %v3249 = vsel %vm3185, %v3153, %v3217
        %v3250 = vsel %vm3186, %v3154, %v3218
        %v3251 = vsel %vm3187, %v3155, %v3219
        %v3252 = vsel %vm3188, %v3156, %v3220
        %v3253 = vsel %vm3189, %v3157, %v3221
        %v3254 = vsel %vm3190, %v3158, %v3222
        %v3255 = vsel %vm3191, %v3159, %v3223
        %v3256 = vsel %vm3192, %v3160, %v3224
        %v3257 = vsel %vm3193, %v3161, %v3225
        %v3258 = vsel %vm3194, %v3162, %v3226
        %v3259 = vsel %vm3195, %v3163, %v3227
        %v3260 = vsel %vm3196, %v3164, %v3228
        %v3261 = vsel %vm3197, %v3165, %v3229
        %v3262 = vsel %vm3198, %v3166, %v3230
        %v3263 = vsel %vm3199, %v3167, %v3231
        %v3264 = vsel %vm3200, %v3168, %v3232
        %v3265 = vsel %vm3201, %v3169, %v3233
        %v3266 = vsel %vm3202, %v3170, %v3234
        %v3267 = vsel %vm3203, %v3171, %v3235
        %v3268 = vsel %vm3204, %v3172, %v3236
        %v3269 = vsel %vm3205, %v3173, %v3237
        %v3270 = vsel %vm3206, %v3174, %v3238
        %v3271 = vsel %vm3207, %v3175, %v3239
        %v3272 = vsel %vm3208, %v3176, %v3240
        %v3273 = vsel %vm3209, %v3177, %v3241
        %v3274 = vsel %vm3210, %v3178, %v3242
        %v3275 = vsel %vm3211, %v3179, %v3243
        %v3276 = vsel %vm3212, %v3180, %v3244
        %v3277 = vsel %vm3213, %v3181, %v3245
        %v3278 = vsel %vm3214, %v3182, %v3246
        %v3279 = vsel %vm3215, %v3183, %v3247
        %v3312 = vrot.slane %v3248, 2
        %v3313 = vrot.slane %v3248, 4
        %v3314 = vrot.slane %v3248, 6
        %v3315 = vrot.slane %v3249, 2
        %v3316 = vrot.slane %v3249, 4
        %v3317 = vrot.slane %v3249, 6
        %v3318 = vrot.slane %v3250, 2
        %v3319 = vrot.slane %v3250, 4
        %v3320 = vrot.slane %v3250, 6
        %v3321 = vrot.slane %v3251, 2
        %v3322 = vrot.slane %v3251, 4
        %v3323 = vrot.slane %v3251, 6
        %v3324 = vrot.slane %v3252, 2
        %v3325 = vrot.slane %v3252, 4
        %v3326 = vrot.slane %v3252, 6
        %v3327 = vrot.slane %v3253, 2
        %v3328 = vrot.slane %v3253, 4
        %v3329 = vrot.slane %v3253, 6
        %v3330 = vrot.slane %v3254, 2
        %v3331 = vrot.slane %v3254, 4
        %v3332 = vrot.slane %v3254, 6
        %v3333 = vrot.slane %v3255, 2
        %v3334 = vrot.slane %v3255, 4
        %v3335 = vrot.slane %v3255, 6
        %v3336 = vrot.slane %v3256, 2
        %v3337 = vrot.slane %v3256, 4
        %v3338 = vrot.slane %v3256, 6
        %v3339 = vrot.slane %v3257, 2
        %v3340 = vrot.slane %v3257, 4
        %v3341 = vrot.slane %v3257, 6
        %v3342 = vrot.slane %v3258, 2
        %v3343 = vrot.slane %v3258, 4
        %v3344 = vrot.slane %v3258, 6
        %v3345 = vrot.slane %v3259, 2
        %v3346 = vrot.slane %v3259, 4
        %v3347 = vrot.slane %v3259, 6
        %v3348 = vrot.slane %v3260, 2
        %v3349 = vrot.slane %v3260, 4
        %v3350 = vrot.slane %v3260, 6
        %v3351 = vrot.slane %v3261, 2
        %v3352 = vrot.slane %v3261, 4
        %v3353 = vrot.slane %v3261, 6
        %v3354 = vrot.slane %v3262, 2
        %v3355 = vrot.slane %v3262, 4
        %v3356 = vrot.slane %v3262, 6
        %v3357 = vrot.slane %v3263, 2
        %v3358 = vrot.slane %v3263, 4
        %v3359 = vrot.slane %v3263, 6
        %v3360 = vrot.slane %v3264, 2
        %v3361 = vrot.slane %v3264, 4
        %v3362 = vrot.slane %v3264, 6
        %v3363 = vrot.slane %v3265, 2
        %v3364 = vrot.slane %v3265, 4
        %v3365 = vrot.slane %v3265, 6
        %v3366 = vrot.slane %v3266, 2
        %v3367 = vrot.slane %v3266, 4
        %v3368 = vrot.slane %v3266, 6
        %v3369 = vrot.slane %v3267, 2
        %v3370 = vrot.slane %v3267, 4
        %v3371 = vrot.slane %v3267, 6
        %v3372 = vrot.slane %v3268, 2
        %v3373 = vrot.slane %v3268, 4
        %v3374 = vrot.slane %v3268, 6
        %v3375 = vrot.slane %v3269, 2
        %v3376 = vrot.slane %v3269, 4
        %v3377 = vrot.slane %v3269, 6
        %v3378 = vrot.slane %v3270, 2
        %v3379 = vrot.slane %v3270, 4
        %v3380 = vrot.slane %v3270, 6
        %v3381 = vrot.slane %v3271, 2
        %v3382 = vrot.slane %v3271, 4
        %v3383 = vrot.slane %v3271, 6
        %v3384 = vrot.slane %v3272, 2
        %v3385 = vrot.slane %v3272, 4
        %v3386 = vrot.slane %v3272, 6
        %v3387 = vrot.slane %v3273, 2
        %v3388 = vrot.slane %v3273, 4
        %v3389 = vrot.slane %v3273, 6
        %v3390 = vrot.slane %v3274, 2
        %v3391 = vrot.slane %v3274, 4
        %v3392 = vrot.slane %v3274, 6
        %v3393 = vrot.slane %v3275, 2
        %v3394 = vrot.slane %v3275, 4
        %v3395 = vrot.slane %v3275, 6
        %v3396 = vrot.slane %v3276, 2
        %v3397 = vrot.slane %v3276, 4
        %v3398 = vrot.slane %v3276, 6
        %v3399 = vrot.slane %v3277, 2
        %v3400 = vrot.slane %v3277, 4
        %v3401 = vrot.slane %v3277, 6
        %v3402 = vrot.slane %v3278, 2
        %v3403 = vrot.slane %v3278, 4
        %v3404 = vrot.slane %v3278, 6
        %v3405 = vrot.slane %v3279, 2
        %v3406 = vrot.slane %v3279, 4
        %v3407 = vrot.slane %v3279, 6
        %vm3504 = vcmask 58368
        %v3505 = vsel %vm3504, %v3248, -inf
        %v3506 = vrot.slane %v3505, 4
        %v3507 = vmax.f32 %v3505, %v3506
        %v3508 = vrot.slane %v3507, 2
        %v3509 = vmax.f32 %v3507, %v3508
        %v3510 = vrot.slane %v3509, 1
        %v3511 = vmax.f32 %v3509, %v3510
        %v3512 = vsel %vm3504, %v3312, -inf
        %v3513 = vrot.slane %v3512, 4
        %v3514 = vmax.f32 %v3512, %v3513
        %v3515 = vrot.slane %v3514, 2
        %v3516 = vmax.f32 %v3514, %v3515
        %v3517 = vrot.slane %v3516, 1
        %v3518 = vmax.f32 %v3516, %v3517
        %v3519 = vsel %vm3504, %v3313, -inf
        %v3520 = vrot.slane %v3519, 4
        %v3521 = vmax.f32 %v3519, %v3520
        %v3522 = vrot.slane %v3521, 2
        %v3523 = vmax.f32 %v3521, %v3522
        %v3524 = vrot.slane %v3523, 1
        %v3525 = vmax.f32 %v3523, %v3524
        %v3526 = vsel %vm3504, %v3314, -inf
        %v3527 = vrot.slane %v3526, 4
        %v3528 = vmax.f32 %v3526, %v3527
        %v3529 = vrot.slane %v3528, 2
        %v3530 = vmax.f32 %v3528, %v3529
        %v3531 = vrot.slane %v3530, 1
        %v3532 = vmax.f32 %v3530, %v3531
        %v3533 = vsel %vm3504, %v3249, -inf
        %v3534 = vrot.slane %v3533, 4
        %v3535 = vmax.f32 %v3533, %v3534
        %v3536 = vrot.slane %v3535, 2
        %v3537 = vmax.f32 %v3535, %v3536
        %v3538 = vrot.slane %v3537, 1
        %v3539 = vmax.f32 %v3537, %v3538
        %v3540 = vsel %vm3504, %v3315, -inf
        %v3541 = vrot.slane %v3540, 4
        %v3542 = vmax.f32 %v3540, %v3541
        %v3543 = vrot.slane %v3542, 2
        %v3544 = vmax.f32 %v3542, %v3543
        %v3545 = vrot.slane %v3544, 1
        %v3546 = vmax.f32 %v3544, %v3545
        %v3547 = vsel %vm3504, %v3316, -inf
        %v3548 = vrot.slane %v3547, 4
        %v3549 = vmax.f32 %v3547, %v3548
        %v3550 = vrot.slane %v3549, 2
        %v3551 = vmax.f32 %v3549, %v3550
        %v3552 = vrot.slane %v3551, 1
        %v3553 = vmax.f32 %v3551, %v3552
        %v3554 = vsel %vm3504, %v3317, -inf
        %v3555 = vrot.slane %v3554, 4
        %v3556 = vmax.f32 %v3554, %v3555
        %v3557 = vrot.slane %v3556, 2
        %v3558 = vmax.f32 %v3556, %v3557
        %v3559 = vrot.slane %v3558, 1
        %v3560 = vmax.f32 %v3558, %v3559
        %v3561 = vsel %vm3504, %v3250, -inf
        %v3562 = vrot.slane %v3561, 4
        %v3563 = vmax.f32 %v3561, %v3562
        %v3564 = vrot.slane %v3563, 2
        %v3565 = vmax.f32 %v3563, %v3564
        %v3566 = vrot.slane %v3565, 1
        %v3567 = vmax.f32 %v3565, %v3566
        %v3568 = vsel %vm3504, %v3318, -inf
        %v3569 = vrot.slane %v3568, 4
        %v3570 = vmax.f32 %v3568, %v3569
        %v3571 = vrot.slane %v3570, 2
        %v3572 = vmax.f32 %v3570, %v3571
        %v3573 = vrot.slane %v3572, 1
        %v3574 = vmax.f32 %v3572, %v3573
        %v3575 = vsel %vm3504, %v3319, -inf
        %v3576 = vrot.slane %v3575, 4
        %v3577 = vmax.f32 %v3575, %v3576
        %v3578 = vrot.slane %v3577, 2
        %v3579 = vmax.f32 %v3577, %v3578
        %v3580 = vrot.slane %v3579, 1
        %v3581 = vmax.f32 %v3579, %v3580
        %v3582 = vsel %vm3504, %v3320, -inf
        %v3583 = vrot.slane %v3582, 4
        %v3584 = vmax.f32 %v3582, %v3583
        %v3585 = vrot.slane %v3584, 2
        %v3586 = vmax.f32 %v3584, %v3585
        %v3587 = vrot.slane %v3586, 1
        %v3588 = vmax.f32 %v3586, %v3587
        %v3589 = vsel %vm3504, %v3251, -inf
        %v3590 = vrot.slane %v3589, 4
        %v3591 = vmax.f32 %v3589, %v3590
        %v3592 = vrot.slane %v3591, 2
        %v3593 = vmax.f32 %v3591, %v3592
        %v3594 = vrot.slane %v3593, 1
        %v3595 = vmax.f32 %v3593, %v3594
        %v3596 = vsel %vm3504, %v3321, -inf
        %v3597 = vrot.slane %v3596, 4
        %v3598 = vmax.f32 %v3596, %v3597
        %v3599 = vrot.slane %v3598, 2
        %v3600 = vmax.f32 %v3598, %v3599
        %v3601 = vrot.slane %v3600, 1
        %v3602 = vmax.f32 %v3600, %v3601
        %v3603 = vsel %vm3504, %v3322, -inf
        %v3604 = vrot.slane %v3603, 4
        %v3605 = vmax.f32 %v3603, %v3604
        %v3606 = vrot.slane %v3605, 2
        %v3607 = vmax.f32 %v3605, %v3606
        %v3608 = vrot.slane %v3607, 1
        %v3609 = vmax.f32 %v3607, %v3608
        %v3610 = vsel %vm3504, %v3323, -inf
        %v3611 = vrot.slane %v3610, 4
        %v3612 = vmax.f32 %v3610, %v3611
        %v3613 = vrot.slane %v3612, 2
        %v3614 = vmax.f32 %v3612, %v3613
        %v3615 = vrot.slane %v3614, 1
        %v3616 = vmax.f32 %v3614, %v3615
        %v3617 = vsel %vm3504, %v3252, -inf
        %v3618 = vrot.slane %v3617, 4
        %v3619 = vmax.f32 %v3617, %v3618
        %v3620 = vrot.slane %v3619, 2
        %v3621 = vmax.f32 %v3619, %v3620
        %v3622 = vrot.slane %v3621, 1
        %v3623 = vmax.f32 %v3621, %v3622
        %v3624 = vsel %vm3504, %v3324, -inf
        %v3625 = vrot.slane %v3624, 4
        %v3626 = vmax.f32 %v3624, %v3625
        %v3627 = vrot.slane %v3626, 2
        %v3628 = vmax.f32 %v3626, %v3627
        %v3629 = vrot.slane %v3628, 1
        %v3630 = vmax.f32 %v3628, %v3629
        %v3631 = vsel %vm3504, %v3325, -inf
        %v3632 = vrot.slane %v3631, 4
        %v3633 = vmax.f32 %v3631, %v3632
        %v3634 = vrot.slane %v3633, 2
        %v3635 = vmax.f32 %v3633, %v3634
        %v3636 = vrot.slane %v3635, 1
        %v3637 = vmax.f32 %v3635, %v3636
        %v3638 = vsel %vm3504, %v3326, -inf
        %v3639 = vrot.slane %v3638, 4
        %v3640 = vmax.f32 %v3638, %v3639
        %v3641 = vrot.slane %v3640, 2
        %v3642 = vmax.f32 %v3640, %v3641
        %v3643 = vrot.slane %v3642, 1
        %v3644 = vmax.f32 %v3642, %v3643
        %v3645 = vsel %vm3504, %v3253, -inf
        %v3646 = vrot.slane %v3645, 4
        %v3647 = vmax.f32 %v3645, %v3646
        %v3648 = vrot.slane %v3647, 2
        %v3649 = vmax.f32 %v3647, %v3648
        %v3650 = vrot.slane %v3649, 1
        %v3651 = vmax.f32 %v3649, %v3650
        %v3652 = vsel %vm3504, %v3327, -inf
        %v3653 = vrot.slane %v3652, 4
        %v3654 = vmax.f32 %v3652, %v3653
        %v3655 = vrot.slane %v3654, 2
        %v3656 = vmax.f32 %v3654, %v3655
        %v3657 = vrot.slane %v3656, 1
        %v3658 = vmax.f32 %v3656, %v3657
        %v3659 = vsel %vm3504, %v3328, -inf
        %v3660 = vrot.slane %v3659, 4
        %v3661 = vmax.f32 %v3659, %v3660
        %v3662 = vrot.slane %v3661, 2
        %v3663 = vmax.f32 %v3661, %v3662
        %v3664 = vrot.slane %v3663, 1
        %v3665 = vmax.f32 %v3663, %v3664
        %v3666 = vsel %vm3504, %v3329, -inf
        %v3667 = vrot.slane %v3666, 4
        %v3668 = vmax.f32 %v3666, %v3667
        %v3669 = vrot.slane %v3668, 2
        %v3670 = vmax.f32 %v3668, %v3669
        %v3671 = vrot.slane %v3670, 1
        %v3672 = vmax.f32 %v3670, %v3671
        %v3673 = vsel %vm3504, %v3254, -inf
        %v3674 = vrot.slane %v3673, 4
        %v3675 = vmax.f32 %v3673, %v3674
        %v3676 = vrot.slane %v3675, 2
        %v3677 = vmax.f32 %v3675, %v3676
        %v3678 = vrot.slane %v3677, 1
        %v3679 = vmax.f32 %v3677, %v3678
        %v3680 = vsel %vm3504, %v3330, -inf
        %v3681 = vrot.slane %v3680, 4
        %v3682 = vmax.f32 %v3680, %v3681
        %v3683 = vrot.slane %v3682, 2
        %v3684 = vmax.f32 %v3682, %v3683
        %v3685 = vrot.slane %v3684, 1
        %v3686 = vmax.f32 %v3684, %v3685
        %v3687 = vsel %vm3504, %v3331, -inf
        %v3688 = vrot.slane %v3687, 4
        %v3689 = vmax.f32 %v3687, %v3688
        %v3690 = vrot.slane %v3689, 2
        %v3691 = vmax.f32 %v3689, %v3690
        %v3692 = vrot.slane %v3691, 1
        %v3693 = vmax.f32 %v3691, %v3692
        %v3694 = vsel %vm3504, %v3332, -inf
        %v3695 = vrot.slane %v3694, 4
        %v3696 = vmax.f32 %v3694, %v3695
        %v3697 = vrot.slane %v3696, 2
        %v3698 = vmax.f32 %v3696, %v3697
        %v3699 = vrot.slane %v3698, 1
        %v3700 = vmax.f32 %v3698, %v3699
        %v3701 = vsel %vm3504, %v3255, -inf
        %v3702 = vrot.slane %v3701, 4
        %v3703 = vmax.f32 %v3701, %v3702
        %v3704 = vrot.slane %v3703, 2
        %v3705 = vmax.f32 %v3703, %v3704
        %v3706 = vrot.slane %v3705, 1
        %v3707 = vmax.f32 %v3705, %v3706
        %v3708 = vsel %vm3504, %v3333, -inf
        %v3709 = vrot.slane %v3708, 4
        %v3710 = vmax.f32 %v3708, %v3709
        %v3711 = vrot.slane %v3710, 2
        %v3712 = vmax.f32 %v3710, %v3711
        %v3713 = vrot.slane %v3712, 1
        %v3714 = vmax.f32 %v3712, %v3713
        %v3715 = vsel %vm3504, %v3334, -inf
        %v3716 = vrot.slane %v3715, 4
        %v3717 = vmax.f32 %v3715, %v3716
        %v3718 = vrot.slane %v3717, 2
        %v3719 = vmax.f32 %v3717, %v3718
        %v3720 = vrot.slane %v3719, 1
        %v3721 = vmax.f32 %v3719, %v3720
        %v3722 = vsel %vm3504, %v3335, -inf
        %v3723 = vrot.slane %v3722, 4
        %v3724 = vmax.f32 %v3722, %v3723
        %v3725 = vrot.slane %v3724, 2
        %v3726 = vmax.f32 %v3724, %v3725
        %v3727 = vrot.slane %v3726, 1
        %v3728 = vmax.f32 %v3726, %v3727
        %v3729 = vsel %vm3504, %v3256, -inf
        %v3730 = vrot.slane %v3729, 4
        %v3731 = vmax.f32 %v3729, %v3730
        %v3732 = vrot.slane %v3731, 2
        %v3733 = vmax.f32 %v3731, %v3732
        %v3734 = vrot.slane %v3733, 1
        %v3735 = vmax.f32 %v3733, %v3734
        %v3736 = vsel %vm3504, %v3336, -inf
        %v3737 = vrot.slane %v3736, 4
        %v3738 = vmax.f32 %v3736, %v3737
        %v3739 = vrot.slane %v3738, 2
        %v3740 = vmax.f32 %v3738, %v3739
        %v3741 = vrot.slane %v3740, 1
        %v3742 = vmax.f32 %v3740, %v3741
        %v3743 = vsel %vm3504, %v3337, -inf
        %v3744 = vrot.slane %v3743, 4
        %v3745 = vmax.f32 %v3743, %v3744
        %v3746 = vrot.slane %v3745, 2
        %v3747 = vmax.f32 %v3745, %v3746
        %v3748 = vrot.slane %v3747, 1
        %v3749 = vmax.f32 %v3747, %v3748
        %v3750 = vsel %vm3504, %v3338, -inf
        %v3751 = vrot.slane %v3750, 4
        %v3752 = vmax.f32 %v3750, %v3751
        %v3753 = vrot.slane %v3752, 2
        %v3754 = vmax.f32 %v3752, %v3753
        %v3755 = vrot.slane %v3754, 1
        %v3756 = vmax.f32 %v3754, %v3755
        %v3757 = vsel %vm3504, %v3257, -inf
        %v3758 = vrot.slane %v3757, 4
        %v3759 = vmax.f32 %v3757, %v3758
        %v3760 = vrot.slane %v3759, 2
        %v3761 = vmax.f32 %v3759, %v3760
        %v3762 = vrot.slane %v3761, 1
        %v3763 = vmax.f32 %v3761, %v3762
        %v3764 = vsel %vm3504, %v3339, -inf
        %v3765 = vrot.slane %v3764, 4
        %v3766 = vmax.f32 %v3764, %v3765
        %v3767 = vrot.slane %v3766, 2
        %v3768 = vmax.f32 %v3766, %v3767
        %v3769 = vrot.slane %v3768, 1
        %v3770 = vmax.f32 %v3768, %v3769
        %v3771 = vsel %vm3504, %v3340, -inf
        %v3772 = vrot.slane %v3771, 4
        %v3773 = vmax.f32 %v3771, %v3772
        %v3774 = vrot.slane %v3773, 2
        %v3775 = vmax.f32 %v3773, %v3774
        %v3776 = vrot.slane %v3775, 1
        %v3777 = vmax.f32 %v3775, %v3776
        %v3778 = vsel %vm3504, %v3341, -inf
        %v3779 = vrot.slane %v3778, 4
        %v3780 = vmax.f32 %v3778, %v3779
        %v3781 = vrot.slane %v3780, 2
        %v3782 = vmax.f32 %v3780, %v3781
        %v3783 = vrot.slane %v3782, 1
        %v3784 = vmax.f32 %v3782, %v3783
        %v3785 = vsel %vm3504, %v3258, -inf
        %v3786 = vrot.slane %v3785, 4
        %v3787 = vmax.f32 %v3785, %v3786
        %v3788 = vrot.slane %v3787, 2
        %v3789 = vmax.f32 %v3787, %v3788
        %v3790 = vrot.slane %v3789, 1
        %v3791 = vmax.f32 %v3789, %v3790
        %v3792 = vsel %vm3504, %v3342, -inf
        %v3793 = vrot.slane %v3792, 4
        %v3794 = vmax.f32 %v3792, %v3793
        %v3795 = vrot.slane %v3794, 2
        %v3796 = vmax.f32 %v3794, %v3795
        %v3797 = vrot.slane %v3796, 1
        %v3798 = vmax.f32 %v3796, %v3797
        %v3799 = vsel %vm3504, %v3343, -inf
        %v3800 = vrot.slane %v3799, 4
        %v3801 = vmax.f32 %v3799, %v3800
        %v3802 = vrot.slane %v3801, 2
        %v3803 = vmax.f32 %v3801, %v3802
        %v3804 = vrot.slane %v3803, 1
        %v3805 = vmax.f32 %v3803, %v3804
        %v3806 = vsel %vm3504, %v3344, -inf
        %v3807 = vrot.slane %v3806, 4
        %v3808 = vmax.f32 %v3806, %v3807
        %v3809 = vrot.slane %v3808, 2
        %v3810 = vmax.f32 %v3808, %v3809
        %v3811 = vrot.slane %v3810, 1
        %v3812 = vmax.f32 %v3810, %v3811
        %v3813 = vsel %vm3504, %v3259, -inf
        %v3814 = vrot.slane %v3813, 4
        %v3815 = vmax.f32 %v3813, %v3814
        %v3816 = vrot.slane %v3815, 2
        %v3817 = vmax.f32 %v3815, %v3816
        %v3818 = vrot.slane %v3817, 1
        %v3819 = vmax.f32 %v3817, %v3818
        %v3820 = vsel %vm3504, %v3345, -inf
        %v3821 = vrot.slane %v3820, 4
        %v3822 = vmax.f32 %v3820, %v3821
        %v3823 = vrot.slane %v3822, 2
        %v3824 = vmax.f32 %v3822, %v3823
        %v3825 = vrot.slane %v3824, 1
        %v3826 = vmax.f32 %v3824, %v3825
        %v3827 = vsel %vm3504, %v3346, -inf
        %v3828 = vrot.slane %v3827, 4
        %v3829 = vmax.f32 %v3827, %v3828
        %v3830 = vrot.slane %v3829, 2
        %v3831 = vmax.f32 %v3829, %v3830
        %v3832 = vrot.slane %v3831, 1
        %v3833 = vmax.f32 %v3831, %v3832
        %v3834 = vsel %vm3504, %v3347, -inf
        %v3835 = vrot.slane %v3834, 4
        %v3836 = vmax.f32 %v3834, %v3835
        %v3837 = vrot.slane %v3836, 2
        %v3838 = vmax.f32 %v3836, %v3837
        %v3839 = vrot.slane %v3838, 1
        %v3840 = vmax.f32 %v3838, %v3839
        %v3841 = vsel %vm3504, %v3260, -inf
        %v3842 = vrot.slane %v3841, 4
        %v3843 = vmax.f32 %v3841, %v3842
        %v3844 = vrot.slane %v3843, 2
        %v3845 = vmax.f32 %v3843, %v3844
        %v3846 = vrot.slane %v3845, 1
        %v3847 = vmax.f32 %v3845, %v3846
        %v3848 = vsel %vm3504, %v3348, -inf
        %v3849 = vrot.slane %v3848, 4
        %v3850 = vmax.f32 %v3848, %v3849
        %v3851 = vrot.slane %v3850, 2
        %v3852 = vmax.f32 %v3850, %v3851
        %v3853 = vrot.slane %v3852, 1
        %v3854 = vmax.f32 %v3852, %v3853
        %v3855 = vsel %vm3504, %v3349, -inf
        %v3856 = vrot.slane %v3855, 4
        %v3857 = vmax.f32 %v3855, %v3856
        %v3858 = vrot.slane %v3857, 2
        %v3859 = vmax.f32 %v3857, %v3858
        %v3860 = vrot.slane %v3859, 1
        %v3861 = vmax.f32 %v3859, %v3860
        %v3862 = vsel %vm3504, %v3350, -inf
        %v3863 = vrot.slane %v3862, 4
        %v3864 = vmax.f32 %v3862, %v3863
        %v3865 = vrot.slane %v3864, 2
        %v3866 = vmax.f32 %v3864, %v3865
        %v3867 = vrot.slane %v3866, 1
        %v3868 = vmax.f32 %v3866, %v3867
        %v3869 = vsel %vm3504, %v3261, -inf
        %v3870 = vrot.slane %v3869, 4
        %v3871 = vmax.f32 %v3869, %v3870
        %v3872 = vrot.slane %v3871, 2
        %v3873 = vmax.f32 %v3871, %v3872
        %v3874 = vrot.slane %v3873, 1
        %v3875 = vmax.f32 %v3873, %v3874
        %v3876 = vsel %vm3504, %v3351, -inf
        %v3877 = vrot.slane %v3876, 4
        %v3878 = vmax.f32 %v3876, %v3877
        %v3879 = vrot.slane %v3878, 2
        %v3880 = vmax.f32 %v3878, %v3879
        %v3881 = vrot.slane %v3880, 1
        %v3882 = vmax.f32 %v3880, %v3881
        %v3883 = vsel %vm3504, %v3352, -inf
        %v3884 = vrot.slane %v3883, 4
        %v3885 = vmax.f32 %v3883, %v3884
        %v3886 = vrot.slane %v3885, 2
        %v3887 = vmax.f32 %v3885, %v3886
        %v3888 = vrot.slane %v3887, 1
        %v3889 = vmax.f32 %v3887, %v3888
        %v3890 = vsel %vm3504, %v3353, -inf
        %v3891 = vrot.slane %v3890, 4
        %v3892 = vmax.f32 %v3890, %v3891
        %v3893 = vrot.slane %v3892, 2
        %v3894 = vmax.f32 %v3892, %v3893
        %v3895 = vrot.slane %v3894, 1
        %v3896 = vmax.f32 %v3894, %v3895
        %v3897 = vsel %vm3504, %v3262, -inf
        %v3898 = vrot.slane %v3897, 4
        %v3899 = vmax.f32 %v3897, %v3898
        %v3900 = vrot.slane %v3899, 2
        %v3901 = vmax.f32 %v3899, %v3900
        %v3902 = vrot.slane %v3901, 1
        %v3903 = vmax.f32 %v3901, %v3902
        %v3904 = vsel %vm3504, %v3354, -inf
        %v3905 = vrot.slane %v3904, 4
        %v3906 = vmax.f32 %v3904, %v3905
        %v3907 = vrot.slane %v3906, 2
        %v3908 = vmax.f32 %v3906, %v3907
        %v3909 = vrot.slane %v3908, 1
        %v3910 = vmax.f32 %v3908, %v3909
        %v3911 = vsel %vm3504, %v3355, -inf
        %v3912 = vrot.slane %v3911, 4
        %v3913 = vmax.f32 %v3911, %v3912
        %v3914 = vrot.slane %v3913, 2
        %v3915 = vmax.f32 %v3913, %v3914
        %v3916 = vrot.slane %v3915, 1
        %v3917 = vmax.f32 %v3915, %v3916
        %v3918 = vsel %vm3504, %v3356, -inf
        %v3919 = vrot.slane %v3918, 4
        %v3920 = vmax.f32 %v3918, %v3919
        %v3921 = vrot.slane %v3920, 2
        %v3922 = vmax.f32 %v3920, %v3921
        %v3923 = vrot.slane %v3922, 1
        %v3924 = vmax.f32 %v3922, %v3923
        %v3925 = vsel %vm3504, %v3263, -inf
        %v3926 = vrot.slane %v3925, 4
        %v3927 = vmax.f32 %v3925, %v3926
        %v3928 = vrot.slane %v3927, 2
        %v3929 = vmax.f32 %v3927, %v3928
        %v3930 = vrot.slane %v3929, 1
        %v3931 = vmax.f32 %v3929, %v3930
        %v3932 = vsel %vm3504, %v3357, -inf
        %v3933 = vrot.slane %v3932, 4
        %v3934 = vmax.f32 %v3932, %v3933
        %v3935 = vrot.slane %v3934, 2
        %v3936 = vmax.f32 %v3934, %v3935
        %v3937 = vrot.slane %v3936, 1
        %v3938 = vmax.f32 %v3936, %v3937
        %v3939 = vsel %vm3504, %v3358, -inf
        %v3940 = vrot.slane %v3939, 4
        %v3941 = vmax.f32 %v3939, %v3940
        %v3942 = vrot.slane %v3941, 2
        %v3943 = vmax.f32 %v3941, %v3942
        %v3944 = vrot.slane %v3943, 1
        %v3945 = vmax.f32 %v3943, %v3944
        %v3946 = vsel %vm3504, %v3359, -inf
        %v3947 = vrot.slane %v3946, 4
        %v3948 = vmax.f32 %v3946, %v3947
        %v3949 = vrot.slane %v3948, 2
        %v3950 = vmax.f32 %v3948, %v3949
        %v3951 = vrot.slane %v3950, 1
        %v3952 = vmax.f32 %v3950, %v3951
        %v3953 = vsel %vm3504, %v3264, -inf
        %v3954 = vrot.slane %v3953, 4
        %v3955 = vmax.f32 %v3953, %v3954
        %v3956 = vrot.slane %v3955, 2
        %v3957 = vmax.f32 %v3955, %v3956
        %v3958 = vrot.slane %v3957, 1
        %v3959 = vmax.f32 %v3957, %v3958
        %v3960 = vsel %vm3504, %v3360, -inf
        %v3961 = vrot.slane %v3960, 4
        %v3962 = vmax.f32 %v3960, %v3961
        %v3963 = vrot.slane %v3962, 2
        %v3964 = vmax.f32 %v3962, %v3963
        %v3965 = vrot.slane %v3964, 1
        %v3966 = vmax.f32 %v3964, %v3965
        %v3967 = vsel %vm3504, %v3361, -inf
        %v3968 = vrot.slane %v3967, 4
        %v3969 = vmax.f32 %v3967, %v3968
        %v3970 = vrot.slane %v3969, 2
        %v3971 = vmax.f32 %v3969, %v3970
        %v3972 = vrot.slane %v3971, 1
        %v3973 = vmax.f32 %v3971, %v3972
        %v3974 = vsel %vm3504, %v3362, -inf
        %v3975 = vrot.slane %v3974, 4
        %v3976 = vmax.f32 %v3974, %v3975
        %v3977 = vrot.slane %v3976, 2
        %v3978 = vmax.f32 %v3976, %v3977
        %v3979 = vrot.slane %v3978, 1
        %v3980 = vmax.f32 %v3978, %v3979
        %v3981 = vsel %vm3504, %v3265, -inf
        %v3982 = vrot.slane %v3981, 4
        %v3983 = vmax.f32 %v3981, %v3982
        %v3984 = vrot.slane %v3983, 2
        %v3985 = vmax.f32 %v3983, %v3984
        %v3986 = vrot.slane %v3985, 1
        %v3987 = vmax.f32 %v3985, %v3986
        %v3988 = vsel %vm3504, %v3363, -inf
        %v3989 = vrot.slane %v3988, 4
        %v3990 = vmax.f32 %v3988, %v3989
        %v3991 = vrot.slane %v3990, 2
        %v3992 = vmax.f32 %v3990, %v3991
        %v3993 = vrot.slane %v3992, 1
        %v3994 = vmax.f32 %v3992, %v3993
        %v3995 = vsel %vm3504, %v3364, -inf
        %v3996 = vrot.slane %v3995, 4
        %v3997 = vmax.f32 %v3995, %v3996
        %v3998 = vrot.slane %v3997, 2
        %v3999 = vmax.f32 %v3997, %v3998
        %v4000 = vrot.slane %v3999, 1
        %v4001 = vmax.f32 %v3999, %v4000
        %v4002 = vsel %vm3504, %v3365, -inf
        %v4003 = vrot.slane %v4002, 4
        %v4004 = vmax.f32 %v4002, %v4003
        %v4005 = vrot.slane %v4004, 2
        %v4006 = vmax.f32 %v4004, %v4005
        %v4007 = vrot.slane %v4006, 1
        %v4008 = vmax.f32 %v4006, %v4007
        %v4009 = vsel %vm3504, %v3266, -inf
        %v4010 = vrot.slane %v4009, 4
        %v4011 = vmax.f32 %v4009, %v4010
        %v4012 = vrot.slane %v4011, 2
        %v4013 = vmax.f32 %v4011, %v4012
        %v4014 = vrot.slane %v4013, 1
        %v4015 = vmax.f32 %v4013, %v4014
        %v4016 = vsel %vm3504, %v3366, -inf
        %v4017 = vrot.slane %v4016, 4
        %v4018 = vmax.f32 %v4016, %v4017
        %v4019 = vrot.slane %v4018, 2
        %v4020 = vmax.f32 %v4018, %v4019
        %v4021 = vrot.slane %v4020, 1
        %v4022 = vmax.f32 %v4020, %v4021
        %v4023 = vsel %vm3504, %v3367, -inf
        %v4024 = vrot.slane %v4023, 4
        %v4025 = vmax.f32 %v4023, %v4024
        %v4026 = vrot.slane %v4025, 2
        %v4027 = vmax.f32 %v4025, %v4026
        %v4028 = vrot.slane %v4027, 1
        %v4029 = vmax.f32 %v4027, %v4028
        %v4030 = vsel %vm3504, %v3368, -inf
        %v4031 = vrot.slane %v4030, 4
        %v4032 = vmax.f32 %v4030, %v4031
        %v4033 = vrot.slane %v4032, 2
        %v4034 = vmax.f32 %v4032, %v4033
        %v4035 = vrot.slane %v4034, 1
        %v4036 = vmax.f32 %v4034, %v4035
        %v4037 = vsel %vm3504, %v3267, -inf
        %v4038 = vrot.slane %v4037, 4
        %v4039 = vmax.f32 %v4037, %v4038
        %v4040 = vrot.slane %v4039, 2
        %v4041 = vmax.f32 %v4039, %v4040
        %v4042 = vrot.slane %v4041, 1
        %v4043 = vmax.f32 %v4041, %v4042
        %v4044 = vsel %vm3504, %v3369, -inf
        %v4045 = vrot.slane %v4044, 4
        %v4046 = vmax.f32 %v4044, %v4045
        %v4047 = vrot.slane %v4046, 2
        %v4048 = vmax.f32 %v4046, %v4047
        %v4049 = vrot.slane %v4048, 1
        %v4050 = vmax.f32 %v4048, %v4049
        %v4051 = vsel %vm3504, %v3370, -inf
        %v4052 = vrot.slane %v4051, 4
        %v4053 = vmax.f32 %v4051, %v4052
        %v4054 = vrot.slane %v4053, 2
        %v4055 = vmax.f32 %v4053, %v4054
        %v4056 = vrot.slane %v4055, 1
        %v4057 = vmax.f32 %v4055, %v4056
        %v4058 = vsel %vm3504, %v3371, -inf
        %v4059 = vrot.slane %v4058, 4
        %v4060 = vmax.f32 %v4058, %v4059
        %v4061 = vrot.slane %v4060, 2
        %v4062 = vmax.f32 %v4060, %v4061
        %v4063 = vrot.slane %v4062, 1
        %v4064 = vmax.f32 %v4062, %v4063
        %v4065 = vsel %vm3504, %v3268, -inf
        %v4066 = vrot.slane %v4065, 4
        %v4067 = vmax.f32 %v4065, %v4066
        %v4068 = vrot.slane %v4067, 2
        %v4069 = vmax.f32 %v4067, %v4068
        %v4070 = vrot.slane %v4069, 1
        %v4071 = vmax.f32 %v4069, %v4070
        %v4072 = vsel %vm3504, %v3372, -inf
        %v4073 = vrot.slane %v4072, 4
        %v4074 = vmax.f32 %v4072, %v4073
        %v4075 = vrot.slane %v4074, 2
        %v4076 = vmax.f32 %v4074, %v4075
        %v4077 = vrot.slane %v4076, 1
        %v4078 = vmax.f32 %v4076, %v4077
        %v4079 = vsel %vm3504, %v3373, -inf
        %v4080 = vrot.slane %v4079, 4
        %v4081 = vmax.f32 %v4079, %v4080
        %v4082 = vrot.slane %v4081, 2
        %v4083 = vmax.f32 %v4081, %v4082
        %v4084 = vrot.slane %v4083, 1
        %v4085 = vmax.f32 %v4083, %v4084
        %v4086 = vsel %vm3504, %v3374, -inf
        %v4087 = vrot.slane %v4086, 4
        %v4088 = vmax.f32 %v4086, %v4087
        %v4089 = vrot.slane %v4088, 2
        %v4090 = vmax.f32 %v4088, %v4089
        %v4091 = vrot.slane %v4090, 1
        %v4092 = vmax.f32 %v4090, %v4091
        %v4093 = vsel %vm3504, %v3269, -inf
        %v4094 = vrot.slane %v4093, 4
        %v4095 = vmax.f32 %v4093, %v4094
        %v4096 = vrot.slane %v4095, 2
        %v4097 = vmax.f32 %v4095, %v4096
        %v4098 = vrot.slane %v4097, 1
        %v4099 = vmax.f32 %v4097, %v4098
        %v4100 = vsel %vm3504, %v3375, -inf
        %v4101 = vrot.slane %v4100, 4
        %v4102 = vmax.f32 %v4100, %v4101
        %v4103 = vrot.slane %v4102, 2
        %v4104 = vmax.f32 %v4102, %v4103
        %v4105 = vrot.slane %v4104, 1
        %v4106 = vmax.f32 %v4104, %v4105
        %v4107 = vsel %vm3504, %v3376, -inf
        %v4108 = vrot.slane %v4107, 4
        %v4109 = vmax.f32 %v4107, %v4108
        %v4110 = vrot.slane %v4109, 2
        %v4111 = vmax.f32 %v4109, %v4110
        %v4112 = vrot.slane %v4111, 1
        %v4113 = vmax.f32 %v4111, %v4112
        %v4114 = vsel %vm3504, %v3377, -inf
        %v4115 = vrot.slane %v4114, 4
        %v4116 = vmax.f32 %v4114, %v4115
        %v4117 = vrot.slane %v4116, 2
        %v4118 = vmax.f32 %v4116, %v4117
        %v4119 = vrot.slane %v4118, 1
        %v4120 = vmax.f32 %v4118, %v4119
        %v4121 = vsel %vm3504, %v3270, -inf
        %v4122 = vrot.slane %v4121, 4
        %v4123 = vmax.f32 %v4121, %v4122
        %v4124 = vrot.slane %v4123, 2
        %v4125 = vmax.f32 %v4123, %v4124
        %v4126 = vrot.slane %v4125, 1
        %v4127 = vmax.f32 %v4125, %v4126
        %v4128 = vsel %vm3504, %v3378, -inf
        %v4129 = vrot.slane %v4128, 4
        %v4130 = vmax.f32 %v4128, %v4129
        %v4131 = vrot.slane %v4130, 2
        %v4132 = vmax.f32 %v4130, %v4131
        %v4133 = vrot.slane %v4132, 1
        %v4134 = vmax.f32 %v4132, %v4133
        %v4135 = vsel %vm3504, %v3379, -inf
        %v4136 = vrot.slane %v4135, 4
        %v4137 = vmax.f32 %v4135, %v4136
        %v4138 = vrot.slane %v4137, 2
        %v4139 = vmax.f32 %v4137, %v4138
        %v4140 = vrot.slane %v4139, 1
        %v4141 = vmax.f32 %v4139, %v4140
        %v4142 = vsel %vm3504, %v3380, -inf
        %v4143 = vrot.slane %v4142, 4
        %v4144 = vmax.f32 %v4142, %v4143
        %v4145 = vrot.slane %v4144, 2
        %v4146 = vmax.f32 %v4144, %v4145
        %v4147 = vrot.slane %v4146, 1
        %v4148 = vmax.f32 %v4146, %v4147
        %v4149 = vsel %vm3504, %v3271, -inf
        %v4150 = vrot.slane %v4149, 4
        %v4151 = vmax.f32 %v4149, %v4150
        %v4152 = vrot.slane %v4151, 2
        %v4153 = vmax.f32 %v4151, %v4152
        %v4154 = vrot.slane %v4153, 1
        %v4155 = vmax.f32 %v4153, %v4154
        %v4156 = vsel %vm3504, %v3381, -inf
        %v4157 = vrot.slane %v4156, 4
        %v4158 = vmax.f32 %v4156, %v4157
        %v4159 = vrot.slane %v4158, 2
        %v4160 = vmax.f32 %v4158, %v4159
        %v4161 = vrot.slane %v4160, 1
        %v4162 = vmax.f32 %v4160, %v4161
        %v4163 = vsel %vm3504, %v3382, -inf
        %v4164 = vrot.slane %v4163, 4
        %v4165 = vmax.f32 %v4163, %v4164
        %v4166 = vrot.slane %v4165, 2
        %v4167 = vmax.f32 %v4165, %v4166
        %v4168 = vrot.slane %v4167, 1
        %v4169 = vmax.f32 %v4167, %v4168
        %v4170 = vsel %vm3504, %v3383, -inf
        %v4171 = vrot.slane %v4170, 4
        %v4172 = vmax.f32 %v4170, %v4171
        %v4173 = vrot.slane %v4172, 2
        %v4174 = vmax.f32 %v4172, %v4173
        %v4175 = vrot.slane %v4174, 1
        %v4176 = vmax.f32 %v4174, %v4175
        %v4177 = vsel %vm3504, %v3272, -inf
        %v4178 = vrot.slane %v4177, 4
        %v4179 = vmax.f32 %v4177, %v4178
        %v4180 = vrot.slane %v4179, 2
        %v4181 = vmax.f32 %v4179, %v4180
        %v4182 = vrot.slane %v4181, 1
        %v4183 = vmax.f32 %v4181, %v4182
        %v4184 = vsel %vm3504, %v3384, -inf
        %v4185 = vrot.slane %v4184, 4
        %v4186 = vmax.f32 %v4184, %v4185
        %v4187 = vrot.slane %v4186, 2
        %v4188 = vmax.f32 %v4186, %v4187
        %v4189 = vrot.slane %v4188, 1
        %v4190 = vmax.f32 %v4188, %v4189
        %v4191 = vsel %vm3504, %v3385, -inf
        %v4192 = vrot.slane %v4191, 4
        %v4193 = vmax.f32 %v4191, %v4192
        %v4194 = vrot.slane %v4193, 2
        %v4195 = vmax.f32 %v4193, %v4194
        %v4196 = vrot.slane %v4195, 1
        %v4197 = vmax.f32 %v4195, %v4196
        %v4198 = vsel %vm3504, %v3386, -inf
        %v4199 = vrot.slane %v4198, 4
        %v4200 = vmax.f32 %v4198, %v4199
        %v4201 = vrot.slane %v4200, 2
        %v4202 = vmax.f32 %v4200, %v4201
        %v4203 = vrot.slane %v4202, 1
        %v4204 = vmax.f32 %v4202, %v4203
        %v4205 = vsel %vm3504, %v3273, -inf
        %v4206 = vrot.slane %v4205, 4
        %v4207 = vmax.f32 %v4205, %v4206
        %v4208 = vrot.slane %v4207, 2
        %v4209 = vmax.f32 %v4207, %v4208
        %v4210 = vrot.slane %v4209, 1
        %v4211 = vmax.f32 %v4209, %v4210
        %v4212 = vsel %vm3504, %v3387, -inf
        %v4213 = vrot.slane %v4212, 4
        %v4214 = vmax.f32 %v4212, %v4213
        %v4215 = vrot.slane %v4214, 2
        %v4216 = vmax.f32 %v4214, %v4215
        %v4217 = vrot.slane %v4216, 1
        %v4218 = vmax.f32 %v4216, %v4217
        %v4219 = vsel %vm3504, %v3388, -inf
        %v4220 = vrot.slane %v4219, 4
        %v4221 = vmax.f32 %v4219, %v4220
        %v4222 = vrot.slane %v4221, 2
        %v4223 = vmax.f32 %v4221, %v4222
        %v4224 = vrot.slane %v4223, 1
        %v4225 = vmax.f32 %v4223, %v4224
        %v4226 = vsel %vm3504, %v3389, -inf
        %v4227 = vrot.slane %v4226, 4
        %v4228 = vmax.f32 %v4226, %v4227
        %v4229 = vrot.slane %v4228, 2
        %v4230 = vmax.f32 %v4228, %v4229
        %v4231 = vrot.slane %v4230, 1
        %v4232 = vmax.f32 %v4230, %v4231
        %v4233 = vsel %vm3504, %v3274, -inf
        %v4234 = vrot.slane %v4233, 4
        %v4235 = vmax.f32 %v4233, %v4234
        %v4236 = vrot.slane %v4235, 2
        %v4237 = vmax.f32 %v4235, %v4236
        %v4238 = vrot.slane %v4237, 1
        %v4239 = vmax.f32 %v4237, %v4238
        %v4240 = vsel %vm3504, %v3390, -inf
        %v4241 = vrot.slane %v4240, 4
        %v4242 = vmax.f32 %v4240, %v4241
        %v4243 = vrot.slane %v4242, 2
        %v4244 = vmax.f32 %v4242, %v4243
        %v4245 = vrot.slane %v4244, 1
        %v4246 = vmax.f32 %v4244, %v4245
        %v4247 = vsel %vm3504, %v3391, -inf
        %v4248 = vrot.slane %v4247, 4
        %v4249 = vmax.f32 %v4247, %v4248
        %v4250 = vrot.slane %v4249, 2
        %v4251 = vmax.f32 %v4249, %v4250
        %v4252 = vrot.slane %v4251, 1
        %v4253 = vmax.f32 %v4251, %v4252
        %v4254 = vsel %vm3504, %v3392, -inf
        %v4255 = vrot.slane %v4254, 4
        %v4256 = vmax.f32 %v4254, %v4255
        %v4257 = vrot.slane %v4256, 2
        %v4258 = vmax.f32 %v4256, %v4257
        %v4259 = vrot.slane %v4258, 1
        %v4260 = vmax.f32 %v4258, %v4259
        %v4261 = vsel %vm3504, %v3275, -inf
        %v4262 = vrot.slane %v4261, 4
        %v4263 = vmax.f32 %v4261, %v4262
        %v4264 = vrot.slane %v4263, 2
        %v4265 = vmax.f32 %v4263, %v4264
        %v4266 = vrot.slane %v4265, 1
        %v4267 = vmax.f32 %v4265, %v4266
        %v4268 = vsel %vm3504, %v3393, -inf
        %v4269 = vrot.slane %v4268, 4
        %v4270 = vmax.f32 %v4268, %v4269
        %v4271 = vrot.slane %v4270, 2
        %v4272 = vmax.f32 %v4270, %v4271
        %v4273 = vrot.slane %v4272, 1
        %v4274 = vmax.f32 %v4272, %v4273
        %v4275 = vsel %vm3504, %v3394, -inf
        %v4276 = vrot.slane %v4275, 4
        %v4277 = vmax.f32 %v4275, %v4276
        %v4278 = vrot.slane %v4277, 2
        %v4279 = vmax.f32 %v4277, %v4278
        %v4280 = vrot.slane %v4279, 1
        %v4281 = vmax.f32 %v4279, %v4280
        %v4282 = vsel %vm3504, %v3395, -inf
        %v4283 = vrot.slane %v4282, 4
        %v4284 = vmax.f32 %v4282, %v4283
        %v4285 = vrot.slane %v4284, 2
        %v4286 = vmax.f32 %v4284, %v4285
        %v4287 = vrot.slane %v4286, 1
        %v4288 = vmax.f32 %v4286, %v4287
        %v4289 = vsel %vm3504, %v3276, -inf
        %v4290 = vrot.slane %v4289, 4
        %v4291 = vmax.f32 %v4289, %v4290
        %v4292 = vrot.slane %v4291, 2
        %v4293 = vmax.f32 %v4291, %v4292
        %v4294 = vrot.slane %v4293, 1
        %v4295 = vmax.f32 %v4293, %v4294
        %v4296 = vsel %vm3504, %v3396, -inf
        %v4297 = vrot.slane %v4296, 4
        %v4298 = vmax.f32 %v4296, %v4297
        %v4299 = vrot.slane %v4298, 2
        %v4300 = vmax.f32 %v4298, %v4299
        %v4301 = vrot.slane %v4300, 1
        %v4302 = vmax.f32 %v4300, %v4301
        %v4303 = vsel %vm3504, %v3397, -inf
        %v4304 = vrot.slane %v4303, 4
        %v4305 = vmax.f32 %v4303, %v4304
        %v4306 = vrot.slane %v4305, 2
        %v4307 = vmax.f32 %v4305, %v4306
        %v4308 = vrot.slane %v4307, 1
        %v4309 = vmax.f32 %v4307, %v4308
        %v4310 = vsel %vm3504, %v3398, -inf
        %v4311 = vrot.slane %v4310, 4
        %v4312 = vmax.f32 %v4310, %v4311
        %v4313 = vrot.slane %v4312, 2
        %v4314 = vmax.f32 %v4312, %v4313
        %v4315 = vrot.slane %v4314, 1
        %v4316 = vmax.f32 %v4314, %v4315
        %v4317 = vsel %vm3504, %v3277, -inf
        %v4318 = vrot.slane %v4317, 4
        %v4319 = vmax.f32 %v4317, %v4318
        %v4320 = vrot.slane %v4319, 2
        %v4321 = vmax.f32 %v4319, %v4320
        %v4322 = vrot.slane %v4321, 1
        %v4323 = vmax.f32 %v4321, %v4322
        %v4324 = vsel %vm3504, %v3399, -inf
        %v4325 = vrot.slane %v4324, 4
        %v4326 = vmax.f32 %v4324, %v4325
        %v4327 = vrot.slane %v4326, 2
        %v4328 = vmax.f32 %v4326, %v4327
        %v4329 = vrot.slane %v4328, 1
        %v4330 = vmax.f32 %v4328, %v4329
        %v4331 = vsel %vm3504, %v3400, -inf
        %v4332 = vrot.slane %v4331, 4
        %v4333 = vmax.f32 %v4331, %v4332
        %v4334 = vrot.slane %v4333, 2
        %v4335 = vmax.f32 %v4333, %v4334
        %v4336 = vrot.slane %v4335, 1
        %v4337 = vmax.f32 %v4335, %v4336
        %v4338 = vsel %vm3504, %v3401, -inf
        %v4339 = vrot.slane %v4338, 4
        %v4340 = vmax.f32 %v4338, %v4339
        %v4341 = vrot.slane %v4340, 2
        %v4342 = vmax.f32 %v4340, %v4341
        %v4343 = vrot.slane %v4342, 1
        %v4344 = vmax.f32 %v4342, %v4343
        %v4345 = vsel %vm3504, %v3278, -inf
        %v4346 = vrot.slane %v4345, 4
        %v4347 = vmax.f32 %v4345, %v4346
        %v4348 = vrot.slane %v4347, 2
        %v4349 = vmax.f32 %v4347, %v4348
        %v4350 = vrot.slane %v4349, 1
        %v4351 = vmax.f32 %v4349, %v4350
        %v4352 = vsel %vm3504, %v3402, -inf
        %v4353 = vrot.slane %v4352, 4
        %v4354 = vmax.f32 %v4352, %v4353
        %v4355 = vrot.slane %v4354, 2
        %v4356 = vmax.f32 %v4354, %v4355
        %v4357 = vrot.slane %v4356, 1
        %v4358 = vmax.f32 %v4356, %v4357
        %v4359 = vsel %vm3504, %v3403, -inf
        %v4360 = vrot.slane %v4359, 4
        %v4361 = vmax.f32 %v4359, %v4360
        %v4362 = vrot.slane %v4361, 2
        %v4363 = vmax.f32 %v4361, %v4362
        %v4364 = vrot.slane %v4363, 1
        %v4365 = vmax.f32 %v4363, %v4364
        %v4366 = vsel %vm3504, %v3404, -inf
        %v4367 = vrot.slane %v4366, 4
        %v4368 = vmax.f32 %v4366, %v4367
        %v4369 = vrot.slane %v4368, 2
        %v4370 = vmax.f32 %v4368, %v4369
        %v4371 = vrot.slane %v4370, 1
        %v4372 = vmax.f32 %v4370, %v4371
        %v4373 = vsel %vm3504, %v3279, -inf
        %v4374 = vrot.slane %v4373, 4
        %v4375 = vmax.f32 %v4373, %v4374
        %v4376 = vrot.slane %v4375, 2
        %v4377 = vmax.f32 %v4375, %v4376
        %v4378 = vrot.slane %v4377, 1
        %v4379 = vmax.f32 %v4377, %v4378
        %v4380 = vsel %vm3504, %v3405, -inf
        %v4381 = vrot.slane %v4380, 4
        %v4382 = vmax.f32 %v4380, %v4381
        %v4383 = vrot.slane %v4382, 2
        %v4384 = vmax.f32 %v4382, %v4383
        %v4385 = vrot.slane %v4384, 1
        %v4386 = vmax.f32 %v4384, %v4385
        %v4387 = vsel %vm3504, %v3406, -inf
        %v4388 = vrot.slane %v4387, 4
        %v4389 = vmax.f32 %v4387, %v4388
        %v4390 = vrot.slane %v4389, 2
        %v4391 = vmax.f32 %v4389, %v4390
        %v4392 = vrot.slane %v4391, 1
        %v4393 = vmax.f32 %v4391, %v4392
        %v4394 = vsel %vm3504, %v3407, -inf
        %v4395 = vrot.slane %v4394, 4
        %v4396 = vmax.f32 %v4394, %v4395
        %v4397 = vrot.slane %v4396, 2
        %v4398 = vmax.f32 %v4396, %v4397
        %v4399 = vrot.slane %v4398, 1
        %v4400 = vmax.f32 %v4398, %v4399
        %v4401 = vsel %vm1353, %v3511, -inf
        %v4402 = vsel %vm1353, %v3567, -inf
        %v4403 = vmax.f32 %v4401, %v4402
        %v4404 = vsel %vm1353, %v3518, -inf
        %v4405 = vsel %vm1353, %v3574, -inf
        %v4406 = vmax.f32 %v4404, %v4405
        %v4407 = vsel %vm1353, %v3525, -inf
        %v4408 = vsel %vm1353, %v3581, -inf
        %v4409 = vmax.f32 %v4407, %v4408
        %v4410 = vsel %vm1353, %v3532, -inf
        %v4411 = vsel %vm1353, %v3588, -inf
        %v4412 = vmax.f32 %v4410, %v4411
        %v4413 = vsel %vm1353, %v3539, -inf
        %v4414 = vsel %vm1353, %v3595, -inf
        %v4415 = vmax.f32 %v4413, %v4414
        %v4416 = vsel %vm1353, %v3546, -inf
        %v4417 = vsel %vm1353, %v3602, -inf
        %v4418 = vmax.f32 %v4416, %v4417
        %v4419 = vsel %vm1353, %v3553, -inf
        %v4420 = vsel %vm1353, %v3609, -inf
        %v4421 = vmax.f32 %v4419, %v4420
        %v4422 = vsel %vm1353, %v3560, -inf
        %v4423 = vsel %vm1353, %v3616, -inf
        %v4424 = vmax.f32 %v4422, %v4423
        %v4425 = vsel %vm1353, %v3623, -inf
        %v4426 = vsel %vm1353, %v3679, -inf
        %v4427 = vmax.f32 %v4425, %v4426
        %v4428 = vsel %vm1353, %v3630, -inf
        %v4429 = vsel %vm1353, %v3686, -inf
        %v4430 = vmax.f32 %v4428, %v4429
        %v4431 = vsel %vm1353, %v3637, -inf
        %v4432 = vsel %vm1353, %v3693, -inf
        %v4433 = vmax.f32 %v4431, %v4432
        %v4434 = vsel %vm1353, %v3644, -inf
        %v4435 = vsel %vm1353, %v3700, -inf
        %v4436 = vmax.f32 %v4434, %v4435
        %v4437 = vsel %vm1353, %v3651, -inf
        %v4438 = vsel %vm1353, %v3707, -inf
        %v4439 = vmax.f32 %v4437, %v4438
        %v4440 = vsel %vm1353, %v3658, -inf
        %v4441 = vsel %vm1353, %v3714, -inf
        %v4442 = vmax.f32 %v4440, %v4441
        %v4443 = vsel %vm1353, %v3665, -inf
        %v4444 = vsel %vm1353, %v3721, -inf
        %v4445 = vmax.f32 %v4443, %v4444
        %v4446 = vsel %vm1353, %v3672, -inf
        %v4447 = vsel %vm1353, %v3728, -inf
        %v4448 = vmax.f32 %v4446, %v4447
        %v4449 = vsel %vm1353, %v3735, -inf
        %v4450 = vsel %vm1353, %v3791, -inf
        %v4451 = vmax.f32 %v4449, %v4450
        %v4452 = vsel %vm1353, %v3742, -inf
        %v4453 = vsel %vm1353, %v3798, -inf
        %v4454 = vmax.f32 %v4452, %v4453
        %v4455 = vsel %vm1353, %v3749, -inf
        %v4456 = vsel %vm1353, %v3805, -inf
        %v4457 = vmax.f32 %v4455, %v4456
        %v4458 = vsel %vm1353, %v3756, -inf
        %v4459 = vsel %vm1353, %v3812, -inf
        %v4460 = vmax.f32 %v4458, %v4459
        %v4461 = vsel %vm1353, %v3763, -inf
        %v4462 = vsel %vm1353, %v3819, -inf
        %v4463 = vmax.f32 %v4461, %v4462
        %v4464 = vsel %vm1353, %v3770, -inf
        %v4465 = vsel %vm1353, %v3826, -inf
        %v4466 = vmax.f32 %v4464, %v4465
        %v4467 = vsel %vm1353, %v3777, -inf
        %v4468 = vsel %vm1353, %v3833, -inf
        %v4469 = vmax.f32 %v4467, %v4468
        %v4470 = vsel %vm1353, %v3784, -inf
        %v4471 = vsel %vm1353, %v3840, -inf
        %v4472 = vmax.f32 %v4470, %v4471
        %v4473 = vsel %vm1353, %v3847, -inf
        %v4474 = vsel %vm1353, %v3903, -inf
        %v4475 = vmax.f32 %v4473, %v4474
        %v4476 = vsel %vm1353, %v3854, -inf
        %v4477 = vsel %vm1353, %v3910, -inf
        %v4478 = vmax.f32 %v4476, %v4477
        %v4479 = vsel %vm1353, %v3861, -inf
        %v4480 = vsel %vm1353, %v3917, -inf
        %v4481 = vmax.f32 %v4479, %v4480
        %v4482 = vsel %vm1353, %v3868, -inf
        %v4483 = vsel %vm1353, %v3924, -inf
        %v4484 = vmax.f32 %v4482, %v4483
        %v4485 = vsel %vm1353, %v3875, -inf
        %v4486 = vsel %vm1353, %v3931, -inf
        %v4487 = vmax.f32 %v4485, %v4486
        %v4488 = vsel %vm1353, %v3882, -inf
        %v4489 = vsel %vm1353, %v3938, -inf
        %v4490 = vmax.f32 %v4488, %v4489
        %v4491 = vsel %vm1353, %v3889, -inf
        %v4492 = vsel %vm1353, %v3945, -inf
        %v4493 = vmax.f32 %v4491, %v4492
        %v4494 = vsel %vm1353, %v3896, -inf
        %v4495 = vsel %vm1353, %v3952, -inf
        %v4496 = vmax.f32 %v4494, %v4495
        %v4497 = vsel %vm1353, %v3959, -inf
        %v4498 = vsel %vm1353, %v4015, -inf
        %v4499 = vmax.f32 %v4497, %v4498
        %v4500 = vsel %vm1353, %v3966, -inf
        %v4501 = vsel %vm1353, %v4022, -inf
        %v4502 = vmax.f32 %v4500, %v4501
        %v4503 = vsel %vm1353, %v3973, -inf
        %v4504 = vsel %vm1353, %v4029, -inf
        %v4505 = vmax.f32 %v4503, %v4504
        %v4506 = vsel %vm1353, %v3980, -inf
        %v4507 = vsel %vm1353, %v4036, -inf
        %v4508 = vmax.f32 %v4506, %v4507
        %v4509 = vsel %vm1353, %v3987, -inf
        %v4510 = vsel %vm1353, %v4043, -inf
        %v4511 = vmax.f32 %v4509, %v4510
        %v4512 = vsel %vm1353, %v3994, -inf
        %v4513 = vsel %vm1353, %v4050, -inf
        %v4514 = vmax.f32 %v4512, %v4513
        %v4515 = vsel %vm1353, %v4001, -inf
        %v4516 = vsel %vm1353, %v4057, -inf
        %v4517 = vmax.f32 %v4515, %v4516
        %v4518 = vsel %vm1353, %v4008, -inf
        %v4519 = vsel %vm1353, %v4064, -inf
        %v4520 = vmax.f32 %v4518, %v4519
        %v4521 = vsel %vm1353, %v4071, -inf
        %v4522 = vsel %vm1353, %v4127, -inf
        %v4523 = vmax.f32 %v4521, %v4522
        %v4524 = vsel %vm1353, %v4078, -inf
        %v4525 = vsel %vm1353, %v4134, -inf
        %v4526 = vmax.f32 %v4524, %v4525
        %v4527 = vsel %vm1353, %v4085, -inf
        %v4528 = vsel %vm1353, %v4141, -inf
        %v4529 = vmax.f32 %v4527, %v4528
        %v4530 = vsel %vm1353, %v4092, -inf
        %v4531 = vsel %vm1353, %v4148, -inf
        %v4532 = vmax.f32 %v4530, %v4531
        %v4533 = vsel %vm1353, %v4099, -inf
        %v4534 = vsel %vm1353, %v4155, -inf
        %v4535 = vmax.f32 %v4533, %v4534
        %v4536 = vsel %vm1353, %v4106, -inf
        %v4537 = vsel %vm1353, %v4162, -inf
        %v4538 = vmax.f32 %v4536, %v4537
        %v4539 = vsel %vm1353, %v4113, -inf
        %v4540 = vsel %vm1353, %v4169, -inf
        %v4541 = vmax.f32 %v4539, %v4540
        %v4542 = vsel %vm1353, %v4120, -inf
        %v4543 = vsel %vm1353, %v4176, -inf
        %v4544 = vmax.f32 %v4542, %v4543
        %v4545 = vsel %vm1353, %v4183, -inf
        %v4546 = vsel %vm1353, %v4239, -inf
        %v4547 = vmax.f32 %v4545, %v4546
        %v4548 = vsel %vm1353, %v4190, -inf
        %v4549 = vsel %vm1353, %v4246, -inf
        %v4550 = vmax.f32 %v4548, %v4549
        %v4551 = vsel %vm1353, %v4197, -inf
        %v4552 = vsel %vm1353, %v4253, -inf
        %v4553 = vmax.f32 %v4551, %v4552
        %v4554 = vsel %vm1353, %v4204, -inf
        %v4555 = vsel %vm1353, %v4260, -inf
        %v4556 = vmax.f32 %v4554, %v4555
        %v4557 = vsel %vm1353, %v4211, -inf
        %v4558 = vsel %vm1353, %v4267, -inf
        %v4559 = vmax.f32 %v4557, %v4558
        %v4560 = vsel %vm1353, %v4218, -inf
        %v4561 = vsel %vm1353, %v4274, -inf
        %v4562 = vmax.f32 %v4560, %v4561
        %v4563 = vsel %vm1353, %v4225, -inf
        %v4564 = vsel %vm1353, %v4281, -inf
        %v4565 = vmax.f32 %v4563, %v4564
        %v4566 = vsel %vm1353, %v4232, -inf
        %v4567 = vsel %vm1353, %v4288, -inf
        %v4568 = vmax.f32 %v4566, %v4567
        %v4569 = vsel %vm1353, %v4295, -inf
        %v4570 = vsel %vm1353, %v4351, -inf
        %v4571 = vmax.f32 %v4569, %v4570
        %v4572 = vsel %vm1353, %v4302, -inf
        %v4573 = vsel %vm1353, %v4358, -inf
        %v4574 = vmax.f32 %v4572, %v4573
        %v4575 = vsel %vm1353, %v4309, -inf
        %v4576 = vsel %vm1353, %v4365, -inf
        %v4577 = vmax.f32 %v4575, %v4576
        %v4578 = vsel %vm1353, %v4316, -inf
        %v4579 = vsel %vm1353, %v4372, -inf
        %v4580 = vmax.f32 %v4578, %v4579
        %v4581 = vsel %vm1353, %v4323, -inf
        %v4582 = vsel %vm1353, %v4379, -inf
        %v4583 = vmax.f32 %v4581, %v4582
        %v4584 = vsel %vm1353, %v4330, -inf
        %v4585 = vsel %vm1353, %v4386, -inf
        %v4586 = vmax.f32 %v4584, %v4585
        %v4587 = vsel %vm1353, %v4337, -inf
        %v4588 = vsel %vm1353, %v4393, -inf
        %v4589 = vmax.f32 %v4587, %v4588
        %v4590 = vsel %vm1353, %v4344, -inf
        %v4591 = vsel %vm1353, %v4400, -inf
        %v4592 = vmax.f32 %v4590, %v4591
        %vm4657 = vcmask 1041409
        %v4658 = vsel %vm4657, %v4406, %v4403
        %vm4659 = vcmask 1042434
        %v4660 = vsel %vm4659, %v4409, %v4658
        %vm4661 = vcmask 1043459
        %v4662 = vsel %vm4661, %v4412, %v4660
        %vm4663 = vcmask 1044484
        %v4664 = vsel %vm4663, %v4415, %v4662
        %vm4665 = vcmask 1045509
        %v4666 = vsel %vm4665, %v4418, %v4664
        %vm4667 = vcmask 1046534
        %v4668 = vsel %vm4667, %v4421, %v4666
        %vm4669 = vcmask 1047559
        %v4670 = vsel %vm4669, %v4424, %v4668
        %v4671 = vsel %vm4657, %v4430, %v4427
        %v4672 = vsel %vm4659, %v4433, %v4671
        %v4673 = vsel %vm4661, %v4436, %v4672
        %v4674 = vsel %vm4663, %v4439, %v4673
        %v4675 = vsel %vm4665, %v4442, %v4674
        %v4676 = vsel %vm4667, %v4445, %v4675
        %v4677 = vsel %vm4669, %v4448, %v4676
        %v4678 = vsel %vm4657, %v4454, %v4451
        %v4679 = vsel %vm4659, %v4457, %v4678
        %v4680 = vsel %vm4661, %v4460, %v4679
        %v4681 = vsel %vm4663, %v4463, %v4680
        %v4682 = vsel %vm4665, %v4466, %v4681
        %v4683 = vsel %vm4667, %v4469, %v4682
        %v4684 = vsel %vm4669, %v4472, %v4683
        %v4685 = vsel %vm4657, %v4478, %v4475
        %v4686 = vsel %vm4659, %v4481, %v4685
        %v4687 = vsel %vm4661, %v4484, %v4686
        %v4688 = vsel %vm4663, %v4487, %v4687
        %v4689 = vsel %vm4665, %v4490, %v4688
        %v4690 = vsel %vm4667, %v4493, %v4689
        %v4691 = vsel %vm4669, %v4496, %v4690
        %v4692 = vsel %vm4657, %v4502, %v4499
        %v4693 = vsel %vm4659, %v4505, %v4692
        %v4694 = vsel %vm4661, %v4508, %v4693
        %v4695 = vsel %vm4663, %v4511, %v4694
        %v4696 = vsel %vm4665, %v4514, %v4695
        %v4697 = vsel %vm4667, %v4517, %v4696
        %v4698 = vsel %vm4669, %v4520, %v4697
        %v4699 = vsel %vm4657, %v4526, %v4523
        %v4700 = vsel %vm4659, %v4529, %v4699
        %v4701 = vsel %vm4661, %v4532, %v4700
        %v4702 = vsel %vm4663, %v4535, %v4701
        %v4703 = vsel %vm4665, %v4538, %v4702
        %v4704 = vsel %vm4667, %v4541, %v4703
        %v4705 = vsel %vm4669, %v4544, %v4704
        %v4706 = vsel %vm4657, %v4550, %v4547
        %v4707 = vsel %vm4659, %v4553, %v4706
        %v4708 = vsel %vm4661, %v4556, %v4707
        %v4709 = vsel %vm4663, %v4559, %v4708
        %v4710 = vsel %vm4665, %v4562, %v4709
        %v4711 = vsel %vm4667, %v4565, %v4710
        %v4712 = vsel %vm4669, %v4568, %v4711
        %v4713 = vsel %vm4657, %v4574, %v4571
        %v4714 = vsel %vm4659, %v4577, %v4713
        %v4715 = vsel %vm4661, %v4580, %v4714
        %v4716 = vsel %vm4663, %v4583, %v4715
        %v4717 = vsel %vm4665, %v4586, %v4716
        %v4718 = vsel %vm4667, %v4589, %v4717
        %v4719 = vsel %vm4669, %v4592, %v4718
        %v4728 = vrot.slane %v4684, 4
        %v4729 = vsel %vm318, %v4728, %v4670
        %v4730 = vrot.slane %v4670, 4
        %v4731 = vsel %vm318, %v4684, %v4730
        %v4733 = vunpack.c.l.s4 1983009808
        %v4734 = vunpack.c.0.s8 %v4733
        %v4735 = vperm.slane %v4729, %v4734
        %v4737 = vunpack.c.l.s4 1983009808
        %v4738 = vunpack.c.0.s8 %v4737
        %v4739 = vperm.slane %v4731, %v4738
        %v4740 = vrot.slane %v4691, 4
        %v4741 = vsel %vm318, %v4740, %v4677
        %v4742 = vrot.slane %v4677, 4
        %v4743 = vsel %vm318, %v4691, %v4742
        %v4745 = vunpack.c.l.s4 1983009808
        %v4746 = vunpack.c.0.s8 %v4745
        %v4747 = vperm.slane %v4741, %v4746
        %v4749 = vunpack.c.l.s4 1983009808
        %v4750 = vunpack.c.0.s8 %v4749
        %v4751 = vperm.slane %v4743, %v4750
        %v4752 = vrot.slane %v4712, 4
        %v4753 = vsel %vm318, %v4752, %v4698
        %v4754 = vrot.slane %v4698, 4
        %v4755 = vsel %vm318, %v4712, %v4754
        %v4757 = vunpack.c.l.s4 1983009808
        %v4758 = vunpack.c.0.s8 %v4757
        %v4759 = vperm.slane %v4753, %v4758
        %v4761 = vunpack.c.l.s4 1983009808
        %v4762 = vunpack.c.0.s8 %v4761
        %v4763 = vperm.slane %v4755, %v4762
        %v4764 = vrot.slane %v4719, 4
        %v4765 = vsel %vm318, %v4764, %v4705
        %v4766 = vrot.slane %v4705, 4
        %v4767 = vsel %vm318, %v4719, %v4766
        %v4769 = vunpack.c.l.s4 1983009808
        %v4770 = vunpack.c.0.s8 %v4769
        %v4771 = vperm.slane %v4765, %v4770
        %v4773 = vunpack.c.l.s4 1983009808
        %v4774 = vunpack.c.0.s8 %v4773
        %v4775 = vperm.slane %v4767, %v4774
        %v4776 = vrot.slane %v4747, 4
        %v4777 = vsel %vm318, %v4776, %v4735
        %v4778 = vrot.slane %v4735, 4
        %v4779 = vsel %vm318, %v4747, %v4778
        %v4781 = vunpack.c.l.s4 1934713408
        %v4782 = vunpack.c.0.s8 %v4781
        %v4783 = vperm.slane %v4777, %v4782
        %v4785 = vunpack.c.l.s4 1934713408
        %v4786 = vunpack.c.0.s8 %v4785
        %v4787 = vperm.slane %v4779, %v4786
        %v4788 = vrot.slane %v4751, 4
        %v4789 = vsel %vm318, %v4788, %v4739
        %v4790 = vrot.slane %v4739, 4
        %v4791 = vsel %vm318, %v4751, %v4790
        %v4793 = vunpack.c.l.s4 1934713408
        %v4794 = vunpack.c.0.s8 %v4793
        %v4795 = vperm.slane %v4789, %v4794
        %v4797 = vunpack.c.l.s4 1934713408
        %v4798 = vunpack.c.0.s8 %v4797
        %v4799 = vperm.slane %v4791, %v4798
        %v4800 = vrot.slane %v4771, 4
        %v4801 = vsel %vm318, %v4800, %v4759
        %v4802 = vrot.slane %v4759, 4
        %v4803 = vsel %vm318, %v4771, %v4802
        %v4805 = vunpack.c.l.s4 1934713408
        %v4806 = vunpack.c.0.s8 %v4805
        %v4807 = vperm.slane %v4801, %v4806
        %v4809 = vunpack.c.l.s4 1934713408
        %v4810 = vunpack.c.0.s8 %v4809
        %v4811 = vperm.slane %v4803, %v4810
        %v4812 = vrot.slane %v4775, 4
        %v4813 = vsel %vm318, %v4812, %v4763
        %v4814 = vrot.slane %v4763, 4
        %v4815 = vsel %vm318, %v4775, %v4814
        %v4817 = vunpack.c.l.s4 1934713408
        %v4818 = vunpack.c.0.s8 %v4817
        %v4819 = vperm.slane %v4813, %v4818
        %v4821 = vunpack.c.l.s4 1934713408
        %v4822 = vunpack.c.0.s8 %v4821
        %v4823 = vperm.slane %v4815, %v4822
        %v4824 = vrot.slane %v4807, 4
        %v4825 = vsel %vm318, %v4824, %v4783
        %v4826 = vrot.slane %v4783, 4
        %v4827 = vsel %vm318, %v4807, %v4826
        %v4828 = vrot.slane %v4811, 4
        %v4829 = vsel %vm318, %v4828, %v4787
        %v4830 = vrot.slane %v4787, 4
        %v4831 = vsel %vm318, %v4811, %v4830
        %v4832 = vrot.slane %v4819, 4
        %v4833 = vsel %vm318, %v4832, %v4795
        %v4834 = vrot.slane %v4795, 4
        %v4835 = vsel %vm318, %v4819, %v4834
        %v4836 = vrot.slane %v4823, 4
        %v4837 = vsel %vm318, %v4836, %v4799
        %v4838 = vrot.slane %v4799, 4
        %v4839 = vsel %vm318, %v4823, %v4838
        %4841 = vrot.lane.b32.xlu0 %v4827, 8
        %v4842 = vpop.permute.xlu0 %4841
        %4845 = vrot.lane.b32.xlu0 %v4829, 16
        %v4846 = vpop.permute.xlu0 %4845
        %4849 = vrot.lane.b32.xlu0 %v4831, 24
        %v4850 = vpop.permute.xlu0 %4849
        %4853 = vrot.lane.b32.xlu0 %v4833, 32
        %v4854 = vpop.permute.xlu0 %4853
        %4857 = vrot.lane.b32.xlu0 %v4835, 40
        %v4858 = vpop.permute.xlu0 %4857
        %4861 = vrot.lane.b32.xlu0 %v4837, 48
        %v4862 = vpop.permute.xlu0 %4861
        %4865 = vrot.lane.b32.xlu0 %v4839, 56
        %v4866 = vpop.permute.xlu0 %4865
        %v4868 = vsel %vm1353, %v4825, %v4842
        %v4869 = vsel %vm2602, %v4868, %v4846
        %v4870 = vsel %vm2670, %v4869, %v4850
        %vm4871 = vcmask 261120
        %v4872 = vsel %vm4871, %v4870, %v4854
        %vm4873 = vcmask 326656
        %v4874 = vsel %vm4873, %v4872, %v4858
        %vm4875 = vcmask 392192
        %v4876 = vsel %vm4875, %v4874, %v4862
        %vm4877 = vcmask 457728
        %v4878 = vsel %vm4877, %v4876, %v4866
        %vm4879 = vcmask 523264
        %4880 = vst.msk [vmem:[%s217] sm:$0xff] %vm4879, %v4878
        %s4881 = sand.u32 %s137, 1
        %s4882 = scalar_lea.sflag [#allocation3], %s4881
        %s4883 = sand.u32 %s137, 1
        %s4884 = smul.addr %s4883, 8
        %s4885 = scalar_lea.vmem [#allocation2], %s4884
        // Predicated region
        $region41: #{tpu_custom_call.1} parent=39 // pred_check
          %p4886 = pneg %p147
        $region42: #{tpu_custom_call.1} parent=39 // pred_check_branch
          %4888 = sbr.rel (%p4886) target = $region44
        $region43: #{tpu_custom_call.1} parent=39 // pred_region
          %4890 = vsyncadd %s4882, 0
          %s4891 = smul.addr %s19, 8
          %s4892 = scalar_lea.hbm %s5, %s4891
          %s4894 = sshll.u32 %s4885, 4
          %s4895 = int_to_ptr.vmem [resolvable:$true] %s4894
          %s4896 = sshll.u32 %s4892, 4
          %s4897 = int_to_ptr.hbm [resolvable:$true] %s4896
          %4899 = dma.vmem_to_hbm [thread:$0]  %s4895, 128, %s4897, %s4882
        $region44: #{tpu_custom_call.1} parent=39 // pred_fallthru
          _
      $region40: #{tpu_custom_call.1} parent=5 // pred_fallthru
        _
      %p4900 = scmp.le.s32.totalorder 2, %s14
      // Predicated region
      $region45: #{tpu_custom_call.1} parent=5 // pred_check
        %p4901 = pneg %p4900
      $region46: #{tpu_custom_call.1} parent=5 // pred_check_branch
        %4903 = sbr.rel (%p4901) target = $region48
      $region47: #{tpu_custom_call.1} parent=5 // pred_region
        %s4904 = ssub.s32 %s14, 2
        // Predicated region
        $region49: #{tpu_custom_call.1} parent=47 // pred_check
          %p4905 = pneg %p153
        $region50: #{tpu_custom_call.1} parent=47 // pred_check_branch
          %4907 = sbr.rel (%p4905) target = $region52
        $region51: #{tpu_custom_call.1} parent=47 // pred_region
          %s4908 = sand.u32 %s138, 1
          %s4909 = scalar_lea.sflag [#allocation3], %s4908
          %s4910 = sand.u32 %s138, 1
          %s4911 = smul.addr %s4910, 8
          %s4912 = scalar_lea.vmem [#allocation2], %s4911
          %4914 = dma.done %s4909, 128
        $region52: #{tpu_custom_call.1} parent=47 // pred_fallthru
          _
      $region48: #{tpu_custom_call.1} parent=5 // pred_fallthru
        _
    $region6: #{tpu_custom_call.1} parent=1 // loop_footer
      %s18 = sadd.s32 1, %s14
    $region7: #{tpu_custom_call.1} parent=1 // loop_footer_branch
      %13 = sbr.rel target = $region3
    $region8: #{tpu_custom_call.1} parent=1 // loop_exit
      _
    %4915 = vsyncpa [#allocation3], 1
    %s4916 = scalar_lea.sflag [#allocation3], 1
    %4917 = vsyncpa %s4916, 1

</llo_original>
